<compile_context>
chip_gen: v6e
topology: v6e:2x2x1
jax: 0.10.0
libtpu: 0.0.40
codegen_flags: <defaults>
</compile_context>

<pallas_src>
import jax
import jax.numpy as jnp
from jax.experimental import pallas as pl
from jax.experimental.pallas import tpu as pltpu

STATE_DIM = 10   # recurrent state width (matches the nn module)
HID = 10         # hidden width of the `state` / `glob` MLPs


def _recurrent_disc_kernel(
    states_ref,   # (TS, Ds, TB) f32   set-step major, batch on lanes
    act_ref,      # (Da, TB)     f32   batch on lanes
    w1h_ref,      # (HID, STATE_DIM)   state-part of first `state` Linear (pre-transposed)
    w1s_ref,      # (HID, Ds)          states-part
    w1a_ref,      # (HID, Da)          actions-part
    b1_ref,       # (HID, 1)
    w2_ref,       # (HID, HID)
    b2_ref,       # (HID, 1)
    w3_ref,       # (STATE_DIM, HID)
    b3_ref,       # (STATE_DIM, 1)
    g1_ref,       # (HID, STATE_DIM)
    gb1_ref,      # (HID, 1)
    g2_ref,       # (1, HID)
    gb2_ref,      # (1, 1)
    out_ref,      # (1, TB)
    state_acc,    # VMEM scratch (STATE_DIM, TB): recurrent state accumulator
    act_acc,      # VMEM scratch (HID, TB): action projection + b1 (set-constant)
):
    s_idx = pl.program_id(1)
    ts, _, tb = states_ref.shape

    @pl.when(s_idx == 0)
    def _init():
        state_acc[...] = jnp.zeros_like(state_acc)
        # Action term of the first `state` layer is constant over the set axis:
        # compute it (plus bias b1) once per batch block.
        act_acc[...] = (
            jnp.dot(w1a_ref[...], act_ref[...], preferred_element_type=jnp.float32)
            + jnp.broadcast_to(b1_ref[...], act_acc.shape)
        )

    w1h = w1h_ref[...]
    w1s = w1s_ref[...]
    w2 = w2_ref[...]
    w3 = w3_ref[...]
    # Hoisted bias broadcasts (once per S tile, not once per step).
    b2b = jnp.broadcast_to(b2_ref[...], (HID, tb))
    b3b = jnp.broadcast_to(b3_ref[...], (STATE_DIM, tb))
    xb1 = act_acc[...]                                     # (HID, TB)

    # Hoisted, state-independent projection of every set element in this tile:
    # off the serial dependency chain of the recurrence.
    xw = [
        jnp.dot(w1s, states_ref[i], preferred_element_type=jnp.float32) + xb1
        for i in range(ts)
    ]

    # Serial recurrence (fully unrolled; ts is a small static constant).
    state = state_acc[...]
    for i in range(ts):
        h = jnp.tanh(jnp.dot(w1h, state, preferred_element_type=jnp.float32) + xw[i])
        h = jnp.tanh(jnp.dot(w2, h, preferred_element_type=jnp.float32) + b2b)
        state = state + jnp.dot(w3, h, preferred_element_type=jnp.float32) + b3b
    state_acc[...] = state

    @pl.when(s_idx == pl.num_programs(1) - 1)
    def _final():
        g = jnp.tanh(
            jnp.dot(g1_ref[...], state, preferred_element_type=jnp.float32)
            + jnp.broadcast_to(gb1_ref[...], (HID, tb))
        )
        out_ref[...] = (
            jnp.dot(g2_ref[...], g, preferred_element_type=jnp.float32)
            + jnp.broadcast_to(gb2_ref[...], (1, tb))
        )


def init_params(key, ds, da):
    """Deterministic synthetic parameters (shapes nn.LazyLinear would create)."""
    dsa = ds + da
    keys = jax.random.split(key, 5)

    def lin(k, fan_in, fan_out):
        kw, kb = jax.random.split(k)
        bound = 1.0 / jnp.sqrt(fan_in)
        w = jax.random.uniform(kw, (fan_in, fan_out), jnp.float32, -bound, bound)
        b = jax.random.uniform(kb, (fan_out,), jnp.float32, -bound, bound)
        return w, b

    # state MLP: Linear(state_dim + dsa -> 10), Tanh, Linear(10 -> 10), Tanh,
    #            Linear(10 -> state_dim)
    w1, b1 = lin(keys[0], STATE_DIM + dsa, HID)
    w2, b2 = lin(keys[1], HID, HID)
    w3, b3 = lin(keys[2], HID, STATE_DIM)
    # glob MLP: Linear(state_dim -> 10), Tanh, Linear(10 -> 1)
    g1, gb1 = lin(keys[3], STATE_DIM, HID)
    g2, gb2 = lin(keys[4], HID, 1)
    return dict(w1=w1, b1=b1, w2=w2, b2=b2, w3=w3, b3=b3,
                g1=g1, gb1=gb1, g2=g2, gb2=gb2)


def _pick_batch_tile(b):
    # Batch is the MXU N / lane dimension: aim for a few hundred lanes per tile.
    for cand in (512, 384, 256, 128):
        if b % cand == 0:
            return cand
    return b  # small batches: a single (partially filled) lane tile


def _pick_set_tile(s, max_ts=8):
    # Number of recurrent steps handled (fully unrolled) per grid step.
    for cand in range(min(s, max_ts), 0, -1):
        if s % cand == 0:
            return cand
    return 1


def recurrent_discriminator(states, actions, params):
    """states: (B, S, Ds) f32; actions: (B, Da) f32 -> (B,) f32."""
    B, S, Ds = states.shape
    Da = actions.shape[-1]

    tb = _pick_batch_tile(B)
    ts = _pick_set_tile(S)

    # Lane-dense layout: batch on the last (lane) axis, set-step major.
    states_t = jnp.transpose(states, (1, 2, 0)).astype(jnp.float32)  # (S, Ds, B)
    act_t = jnp.transpose(actions, (1, 0)).astype(jnp.float32)       # (Da, B)

    w1 = params["w1"]
    kparams = (
        w1[:STATE_DIM].T,                      # w1h_t (HID, STATE_DIM)
        w1[STATE_DIM:STATE_DIM + Ds].T,        # w1s_t (HID, Ds)
        w1[STATE_DIM + Ds:].T,                 # w1a_t (HID, Da)
        params["b1"].reshape(HID, 1),
        params["w2"].T,                        # (HID, HID)
        params["b2"].reshape(HID, 1),
        params["w3"].T,                        # (STATE_DIM, HID)
        params["b3"].reshape(STATE_DIM, 1),
        params["g1"].T,                        # (HID, STATE_DIM)
        params["gb1"].reshape(HID, 1),
        params["g2"].T,                        # (1, HID)
        params["gb2"].reshape(1, 1),
    )

    def full_spec(arr):
        zeros = (0,) * arr.ndim
        return pl.BlockSpec(arr.shape, lambda b, s, _z=zeros: _z)

    grid = (B // tb, S // ts)
    in_specs = [
        pl.BlockSpec((ts, Ds, tb), lambda b, s: (s, 0, b)),  # states: streamed over s
        pl.BlockSpec((Da, tb), lambda b, s: (0, b)),         # actions: per batch block
    ] + [full_spec(p) for p in kparams]
    out_spec = pl.BlockSpec((1, tb), lambda b, s: (0, b))

    out = pl.pallas_call(
        _recurrent_disc_kernel,
        out_shape=jax.ShapeDtypeStruct((1, B), jnp.float32),
        grid=grid,
        in_specs=in_specs,
        out_specs=out_spec,
        scratch_shapes=[
            pltpu.VMEM((STATE_DIM, tb), jnp.float32),  # recurrent state
            pltpu.VMEM((HID, tb), jnp.float32),        # action projection + b1
        ],
        compiler_params=pltpu.CompilerParams(
            dimension_semantics=("parallel", "arbitrary"),
            vmem_limit_bytes=32 * 1024 * 1024,
        ),
    )(states_t, act_t, *kparams)
    return out[0]  # (B,)


def _reference(states, actions, p):
    """Pure-JAX reference mirroring the PyTorch forward."""
    B, S, Ds = states.shape
    Da = actions.shape[-1]
    act_e = jnp.broadcast_to(actions[:, None, :], (B, S, Da))
    sa = jnp.concatenate([states, act_e], axis=-1)
    state = jnp.zeros((B, STATE_DIM), jnp.float32)
    for i in range(S):
        inp = jnp.concatenate([state, sa[:, i, :]], axis=-1)
        h = jnp.tanh(inp @ p["w1"] + p["b1"])
        h = jnp.tanh(h @ p["w2"] + p["b2"])
        state = state + h @ p["w3"] + p["b3"]
    g = jnp.tanh(state @ p["g1"] + p["gb1"])
    return (g @ p["g2"] + p["gb2"])[:, 0]


if __name__ == "__main__":
    key = jax.random.PRNGKey(0)
    k_par, k_s, k_a = jax.random.split(key, 3)

    B, S, Ds, Da = 2, 8, 6, 4  # batch, set_size, state feature dim, action dim
    states = jax.random.normal(k_s, (B, S, Ds), jnp.float32)
    actions = jax.random.normal(k_a, (B, Da), jnp.float32)
    params = init_params(k_par, Ds, Da)

    out = recurrent_discriminator(states, actions, params)
    out = jax.block_until_ready(out)

    ref = _reference(states, actions, params)
    assert out.shape == (B,)
    assert jnp.allclose(out, ref, atol=1e-5, rtol=1e-5), (out, ref)
    print("KERNEL_OK")
</pallas_src>

<mosaic_0001>
module attributes {stable_mosaic.version = 11 : i64} {
  func.func @_recurrent_disc_kernel(%arg0: i32, %arg1: i32, %arg2: memref<8x6x2xf32, #tpu.memory_space<vmem>>, %arg3: memref<4x2xf32, #tpu.memory_space<vmem>>, %arg4: memref<10x10xf32, #tpu.memory_space<vmem>>, %arg5: memref<10x6xf32, #tpu.memory_space<vmem>>, %arg6: memref<10x4xf32, #tpu.memory_space<vmem>>, %arg7: memref<10x1xf32, #tpu.memory_space<vmem>>, %arg8: memref<10x10xf32, #tpu.memory_space<vmem>>, %arg9: memref<10x1xf32, #tpu.memory_space<vmem>>, %arg10: memref<10x10xf32, #tpu.memory_space<vmem>>, %arg11: memref<10x1xf32, #tpu.memory_space<vmem>>, %arg12: memref<10x10xf32, #tpu.memory_space<vmem>>, %arg13: memref<10x1xf32, #tpu.memory_space<vmem>>, %arg14: memref<1x10xf32, #tpu.memory_space<vmem>>, %arg15: memref<1x1xf32, #tpu.memory_space<vmem>>, %arg16: memref<1x2xf32, #tpu.memory_space<vmem>>, %arg17: memref<10x2xf32, #tpu.memory_space<vmem>>, %arg18: memref<10x2xf32, #tpu.memory_space<vmem>>) attributes {dimension_semantics = [#tpu.dimension_semantics<parallel>, #tpu.dimension_semantics<arbitrary>], iteration_bounds = array<i64: 1, 1>, scalar_prefetch = 0 : i64, scratch_operands = 2 : i64, tpu.core_type = #tpu.core_type<tc>, window_params = [{transform_indices = @transform_0, window_bounds = array<i64: 8, 6, 2>}, {transform_indices = @transform_1, window_bounds = array<i64: 4, 2>}, {pipeline_mode = #tpu.pipeline_mode<synchronous>, transform_indices = @transform_2, window_bounds = array<i64: 10, 10>}, {pipeline_mode = #tpu.pipeline_mode<synchronous>, transform_indices = @transform_3, window_bounds = array<i64: 10, 6>}, {pipeline_mode = #tpu.pipeline_mode<synchronous>, transform_indices = @transform_4, window_bounds = array<i64: 10, 4>}, {pipeline_mode = #tpu.pipeline_mode<synchronous>, transform_indices = @transform_5, window_bounds = array<i64: 10, 1>}, {pipeline_mode = #tpu.pipeline_mode<synchronous>, transform_indices = @transform_6, window_bounds = array<i64: 10, 10>}, {pipeline_mode = #tpu.pipeline_mode<synchronous>, transform_indices = @transform_7, window_bounds = array<i64: 10, 1>}, {pipeline_mode = #tpu.pipeline_mode<synchronous>, transform_indices = @transform_8, window_bounds = array<i64: 10, 10>}, {pipeline_mode = #tpu.pipeline_mode<synchronous>, transform_indices = @transform_9, window_bounds = array<i64: 10, 1>}, {pipeline_mode = #tpu.pipeline_mode<synchronous>, transform_indices = @transform_10, window_bounds = array<i64: 10, 10>}, {pipeline_mode = #tpu.pipeline_mode<synchronous>, transform_indices = @transform_11, window_bounds = array<i64: 10, 1>}, {pipeline_mode = #tpu.pipeline_mode<synchronous>, transform_indices = @transform_12, window_bounds = array<i64: 1, 10>}, {pipeline_mode = #tpu.pipeline_mode<synchronous>, transform_indices = @transform_13, window_bounds = array<i64: 1, 1>}, {transform_indices = @transform_14, window_bounds = array<i64: 1, 2>}]} {
    %c0_i32 = arith.constant 0 : i32
    %0 = arith.cmpi eq, %arg1, %c0_i32 : i32
    %1 = arith.extui %0 : i1 to i32
    %c0_i32_0 = arith.constant 0 : i32
    %2 = arith.cmpi ne, %1, %c0_i32_0 : i32
    scf.if %2 {
      %cst_68 = arith.constant 0.000000e+00 : f32
      %123 = vector.broadcast %cst_68 : f32 to vector<10x2xf32>
      %c0_69 = arith.constant 0 : index
      %c0_70 = arith.constant 0 : index
      %124 = vector.load %arg17[%c0_69, %c0_70] : memref<10x2xf32, #tpu.memory_space<vmem>>, vector<10x2xf32>
      tpu.vector_store %arg17[%c0_69, %c0_70], %123 {strides = array<i32>} : memref<10x2xf32, #tpu.memory_space<vmem>>, vector<10x2xf32>,
      %c0_71 = arith.constant 0 : index
      %c0_72 = arith.constant 0 : index
      %125 = vector.load %arg6[%c0_71, %c0_72] : memref<10x4xf32, #tpu.memory_space<vmem>>, vector<10x4xf32>
      %c0_73 = arith.constant 0 : index
      %c0_74 = arith.constant 0 : index
      %126 = vector.load %arg3[%c0_73, %c0_74] : memref<4x2xf32, #tpu.memory_space<vmem>>, vector<4x2xf32>
      %cst_75 = arith.constant dense<0.000000e+00> : vector<10x2xf32>
      %127 = tpu.matmul %125, %126, %cst_75 {dimension_numbers = #tpu.dot_dimension_numbers<[1], [0], [0], [1], [0, 0, 1, 1], [], []>} : vector<10x4xf32>, vector<4x2xf32>, vector<10x2xf32> -> vector<10x2xf32>
      %c0_76 = arith.constant 0 : index
      %c0_77 = arith.constant 0 : index
      %128 = vector.load %arg7[%c0_76, %c0_77] : memref<10x1xf32, #tpu.memory_space<vmem>>, vector<10x1xf32>
      %129 = vector.shape_cast %128 : vector<10x1xf32> to vector<10x1xf32>
      %130 = vector.broadcast %129 : vector<10x1xf32> to vector<10x2xf32>
      %131 = arith.addf %127, %130 : vector<10x2xf32>
      %c0_78 = arith.constant 0 : index
      %c0_79 = arith.constant 0 : index
      %132 = vector.load %arg18[%c0_78, %c0_79] : memref<10x2xf32, #tpu.memory_space<vmem>>, vector<10x2xf32>
      tpu.vector_store %arg18[%c0_78, %c0_79], %131 {strides = array<i32>} : memref<10x2xf32, #tpu.memory_space<vmem>>, vector<10x2xf32>,
    } else {
    }
    %c0 = arith.constant 0 : index
    %c0_1 = arith.constant 0 : index
    %3 = vector.load %arg4[%c0, %c0_1] : memref<10x10xf32, #tpu.memory_space<vmem>>, vector<10x10xf32>
    %c0_2 = arith.constant 0 : index
    %c0_3 = arith.constant 0 : index
    %4 = vector.load %arg5[%c0_2, %c0_3] : memref<10x6xf32, #tpu.memory_space<vmem>>, vector<10x6xf32>
    %c0_4 = arith.constant 0 : index
    %c0_5 = arith.constant 0 : index
    %5 = vector.load %arg8[%c0_4, %c0_5] : memref<10x10xf32, #tpu.memory_space<vmem>>, vector<10x10xf32>
    %c0_6 = arith.constant 0 : index
    %c0_7 = arith.constant 0 : index
    %6 = vector.load %arg10[%c0_6, %c0_7] : memref<10x10xf32, #tpu.memory_space<vmem>>, vector<10x10xf32>
    %c0_8 = arith.constant 0 : index
    %c0_9 = arith.constant 0 : index
    %7 = vector.load %arg9[%c0_8, %c0_9] : memref<10x1xf32, #tpu.memory_space<vmem>>, vector<10x1xf32>
    %8 = vector.shape_cast %7 : vector<10x1xf32> to vector<10x1xf32>
    %9 = vector.broadcast %8 : vector<10x1xf32> to vector<10x2xf32>
    %c0_10 = arith.constant 0 : index
    %c0_11 = arith.constant 0 : index
    %10 = vector.load %arg11[%c0_10, %c0_11] : memref<10x1xf32, #tpu.memory_space<vmem>>, vector<10x1xf32>
    %11 = vector.shape_cast %10 : vector<10x1xf32> to vector<10x1xf32>
    %12 = vector.broadcast %11 : vector<10x1xf32> to vector<10x2xf32>
    %c0_12 = arith.constant 0 : index
    %c0_13 = arith.constant 0 : index
    %13 = vector.load %arg18[%c0_12, %c0_13] : memref<10x2xf32, #tpu.memory_space<vmem>>, vector<10x2xf32>
    %c0_14 = arith.constant 0 : index
    %c0_15 = arith.constant 0 : index
    %c0_16 = arith.constant 0 : index
    %14 = vector.load %arg2[%c0_14, %c0_15, %c0_16] : memref<8x6x2xf32, #tpu.memory_space<vmem>>, vector<1x6x2xf32>
    %15 = vector.shape_cast %14 : vector<1x6x2xf32> to vector<6x2xf32>
    %cst = arith.constant dense<0.000000e+00> : vector<10x2xf32>
    %16 = tpu.matmul %4, %15, %cst {dimension_numbers = #tpu.dot_dimension_numbers<[1], [0], [0], [1], [0, 0, 1, 1], [], []>} : vector<10x6xf32>, vector<6x2xf32>, vector<10x2xf32> -> vector<10x2xf32>
    %17 = arith.addf %16, %13 : vector<10x2xf32>
    %c1 = arith.constant 1 : index
    %c0_17 = arith.constant 0 : index
    %c0_18 = arith.constant 0 : index
    %18 = vector.load %arg2[%c1, %c0_17, %c0_18] : memref<8x6x2xf32, #tpu.memory_space<vmem>>, vector<1x6x2xf32>
    %19 = vector.shape_cast %18 : vector<1x6x2xf32> to vector<6x2xf32>
    %cst_19 = arith.constant dense<0.000000e+00> : vector<10x2xf32>
    %20 = tpu.matmul %4, %19, %cst_19 {dimension_numbers = #tpu.dot_dimension_numbers<[1], [0], [0], [1], [0, 0, 1, 1], [], []>} : vector<10x6xf32>, vector<6x2xf32>, vector<10x2xf32> -> vector<10x2xf32>
    %21 = arith.addf %20, %13 : vector<10x2xf32>
    %c2 = arith.constant 2 : index
    %c0_20 = arith.constant 0 : index
    %c0_21 = arith.constant 0 : index
    %22 = vector.load %arg2[%c2, %c0_20, %c0_21] : memref<8x6x2xf32, #tpu.memory_space<vmem>>, vector<1x6x2xf32>
    %23 = vector.shape_cast %22 : vector<1x6x2xf32> to vector<6x2xf32>
    %cst_22 = arith.constant dense<0.000000e+00> : vector<10x2xf32>
    %24 = tpu.matmul %4, %23, %cst_22 {dimension_numbers = #tpu.dot_dimension_numbers<[1], [0], [0], [1], [0, 0, 1, 1], [], []>} : vector<10x6xf32>, vector<6x2xf32>, vector<10x2xf32> -> vector<10x2xf32>
    %25 = arith.addf %24, %13 : vector<10x2xf32>
    %c3 = arith.constant 3 : index
    %c0_23 = arith.constant 0 : index
    %c0_24 = arith.constant 0 : index
    %26 = vector.load %arg2[%c3, %c0_23, %c0_24] : memref<8x6x2xf32, #tpu.memory_space<vmem>>, vector<1x6x2xf32>
    %27 = vector.shape_cast %26 : vector<1x6x2xf32> to vector<6x2xf32>
    %cst_25 = arith.constant dense<0.000000e+00> : vector<10x2xf32>
    %28 = tpu.matmul %4, %27, %cst_25 {dimension_numbers = #tpu.dot_dimension_numbers<[1], [0], [0], [1], [0, 0, 1, 1], [], []>} : vector<10x6xf32>, vector<6x2xf32>, vector<10x2xf32> -> vector<10x2xf32>
    %29 = arith.addf %28, %13 : vector<10x2xf32>
    %c4 = arith.constant 4 : index
    %c0_26 = arith.constant 0 : index
    %c0_27 = arith.constant 0 : index
    %30 = vector.load %arg2[%c4, %c0_26, %c0_27] : memref<8x6x2xf32, #tpu.memory_space<vmem>>, vector<1x6x2xf32>
    %31 = vector.shape_cast %30 : vector<1x6x2xf32> to vector<6x2xf32>
    %cst_28 = arith.constant dense<0.000000e+00> : vector<10x2xf32>
    %32 = tpu.matmul %4, %31, %cst_28 {dimension_numbers = #tpu.dot_dimension_numbers<[1], [0], [0], [1], [0, 0, 1, 1], [], []>} : vector<10x6xf32>, vector<6x2xf32>, vector<10x2xf32> -> vector<10x2xf32>
    %33 = arith.addf %32, %13 : vector<10x2xf32>
    %c5 = arith.constant 5 : index
    %c0_29 = arith.constant 0 : index
    %c0_30 = arith.constant 0 : index
    %34 = vector.load %arg2[%c5, %c0_29, %c0_30] : memref<8x6x2xf32, #tpu.memory_space<vmem>>, vector<1x6x2xf32>
    %35 = vector.shape_cast %34 : vector<1x6x2xf32> to vector<6x2xf32>
    %cst_31 = arith.constant dense<0.000000e+00> : vector<10x2xf32>
    %36 = tpu.matmul %4, %35, %cst_31 {dimension_numbers = #tpu.dot_dimension_numbers<[1], [0], [0], [1], [0, 0, 1, 1], [], []>} : vector<10x6xf32>, vector<6x2xf32>, vector<10x2xf32> -> vector<10x2xf32>
    %37 = arith.addf %36, %13 : vector<10x2xf32>
    %c6 = arith.constant 6 : index
    %c0_32 = arith.constant 0 : index
    %c0_33 = arith.constant 0 : index
    %38 = vector.load %arg2[%c6, %c0_32, %c0_33] : memref<8x6x2xf32, #tpu.memory_space<vmem>>, vector<1x6x2xf32>
    %39 = vector.shape_cast %38 : vector<1x6x2xf32> to vector<6x2xf32>
    %cst_34 = arith.constant dense<0.000000e+00> : vector<10x2xf32>
    %40 = tpu.matmul %4, %39, %cst_34 {dimension_numbers = #tpu.dot_dimension_numbers<[1], [0], [0], [1], [0, 0, 1, 1], [], []>} : vector<10x6xf32>, vector<6x2xf32>, vector<10x2xf32> -> vector<10x2xf32>
    %41 = arith.addf %40, %13 : vector<10x2xf32>
    %c7 = arith.constant 7 : index
    %c0_35 = arith.constant 0 : index
    %c0_36 = arith.constant 0 : index
    %42 = vector.load %arg2[%c7, %c0_35, %c0_36] : memref<8x6x2xf32, #tpu.memory_space<vmem>>, vector<1x6x2xf32>
    %43 = vector.shape_cast %42 : vector<1x6x2xf32> to vector<6x2xf32>
    %cst_37 = arith.constant dense<0.000000e+00> : vector<10x2xf32>
    %44 = tpu.matmul %4, %43, %cst_37 {dimension_numbers = #tpu.dot_dimension_numbers<[1], [0], [0], [1], [0, 0, 1, 1], [], []>} : vector<10x6xf32>, vector<6x2xf32>, vector<10x2xf32> -> vector<10x2xf32>
    %45 = arith.addf %44, %13 : vector<10x2xf32>
    %c0_38 = arith.constant 0 : index
    %c0_39 = arith.constant 0 : index
    %46 = vector.load %arg17[%c0_38, %c0_39] : memref<10x2xf32, #tpu.memory_space<vmem>>, vector<10x2xf32>
    %cst_40 = arith.constant dense<0.000000e+00> : vector<10x2xf32>
    %47 = tpu.matmul %3, %46, %cst_40 {dimension_numbers = #tpu.dot_dimension_numbers<[1], [0], [0], [1], [0, 0, 1, 1], [], []>} : vector<10x10xf32>, vector<10x2xf32>, vector<10x2xf32> -> vector<10x2xf32>
    %48 = arith.addf %47, %17 : vector<10x2xf32>
    %49 = math.tanh %48 : vector<10x2xf32>
    %cst_41 = arith.constant dense<0.000000e+00> : vector<10x2xf32>
    %50 = tpu.matmul %5, %49, %cst_41 {dimension_numbers = #tpu.dot_dimension_numbers<[1], [0], [0], [1], [0, 0, 1, 1], [], []>} : vector<10x10xf32>, vector<10x2xf32>, vector<10x2xf32> -> vector<10x2xf32>
    %51 = arith.addf %50, %9 : vector<10x2xf32>
    %52 = math.tanh %51 : vector<10x2xf32>
    %cst_42 = arith.constant dense<0.000000e+00> : vector<10x2xf32>
    %53 = tpu.matmul %6, %52, %cst_42 {dimension_numbers = #tpu.dot_dimension_numbers<[1], [0], [0], [1], [0, 0, 1, 1], [], []>} : vector<10x10xf32>, vector<10x2xf32>, vector<10x2xf32> -> vector<10x2xf32>
    %54 = arith.addf %46, %53 : vector<10x2xf32>
    %55 = arith.addf %54, %12 : vector<10x2xf32>
    %cst_43 = arith.constant dense<0.000000e+00> : vector<10x2xf32>
    %56 = tpu.matmul %3, %55, %cst_43 {dimension_numbers = #tpu.dot_dimension_numbers<[1], [0], [0], [1], [0, 0, 1, 1], [], []>} : vector<10x10xf32>, vector<10x2xf32>, vector<10x2xf32> -> vector<10x2xf32>
    %57 = arith.addf %56, %21 : vector<10x2xf32>
    %58 = math.tanh %57 : vector<10x2xf32>
    %cst_44 = arith.constant dense<0.000000e+00> : vector<10x2xf32>
    %59 = tpu.matmul %5, %58, %cst_44 {dimension_numbers = #tpu.dot_dimension_numbers<[1], [0], [0], [1], [0, 0, 1, 1], [], []>} : vector<10x10xf32>, vector<10x2xf32>, vector<10x2xf32> -> vector<10x2xf32>
    %60 = arith.addf %59, %9 : vector<10x2xf32>
    %61 = math.tanh %60 : vector<10x2xf32>
    %cst_45 = arith.constant dense<0.000000e+00> : vector<10x2xf32>
    %62 = tpu.matmul %6, %61, %cst_45 {dimension_numbers = #tpu.dot_dimension_numbers<[1], [0], [0], [1], [0, 0, 1, 1], [], []>} : vector<10x10xf32>, vector<10x2xf32>, vector<10x2xf32> -> vector<10x2xf32>
    %63 = arith.addf %55, %62 : vector<10x2xf32>
    %64 = arith.addf %63, %12 : vector<10x2xf32>
    %cst_46 = arith.constant dense<0.000000e+00> : vector<10x2xf32>
    %65 = tpu.matmul %3, %64, %cst_46 {dimension_numbers = #tpu.dot_dimension_numbers<[1], [0], [0], [1], [0, 0, 1, 1], [], []>} : vector<10x10xf32>, vector<10x2xf32>, vector<10x2xf32> -> vector<10x2xf32>
    %66 = arith.addf %65, %25 : vector<10x2xf32>
    %67 = math.tanh %66 : vector<10x2xf32>
    %cst_47 = arith.constant dense<0.000000e+00> : vector<10x2xf32>
    %68 = tpu.matmul %5, %67, %cst_47 {dimension_numbers = #tpu.dot_dimension_numbers<[1], [0], [0], [1], [0, 0, 1, 1], [], []>} : vector<10x10xf32>, vector<10x2xf32>, vector<10x2xf32> -> vector<10x2xf32>
    %69 = arith.addf %68, %9 : vector<10x2xf32>
    %70 = math.tanh %69 : vector<10x2xf32>
    %cst_48 = arith.constant dense<0.000000e+00> : vector<10x2xf32>
    %71 = tpu.matmul %6, %70, %cst_48 {dimension_numbers = #tpu.dot_dimension_numbers<[1], [0], [0], [1], [0, 0, 1, 1], [], []>} : vector<10x10xf32>, vector<10x2xf32>, vector<10x2xf32> -> vector<10x2xf32>
    %72 = arith.addf %64, %71 : vector<10x2xf32>
    %73 = arith.addf %72, %12 : vector<10x2xf32>
    %cst_49 = arith.constant dense<0.000000e+00> : vector<10x2xf32>
    %74 = tpu.matmul %3, %73, %cst_49 {dimension_numbers = #tpu.dot_dimension_numbers<[1], [0], [0], [1], [0, 0, 1, 1], [], []>} : vector<10x10xf32>, vector<10x2xf32>, vector<10x2xf32> -> vector<10x2xf32>
    %75 = arith.addf %74, %29 : vector<10x2xf32>
    %76 = math.tanh %75 : vector<10x2xf32>
    %cst_50 = arith.constant dense<0.000000e+00> : vector<10x2xf32>
    %77 = tpu.matmul %5, %76, %cst_50 {dimension_numbers = #tpu.dot_dimension_numbers<[1], [0], [0], [1], [0, 0, 1, 1], [], []>} : vector<10x10xf32>, vector<10x2xf32>, vector<10x2xf32> -> vector<10x2xf32>
    %78 = arith.addf %77, %9 : vector<10x2xf32>
    %79 = math.tanh %78 : vector<10x2xf32>
    %cst_51 = arith.constant dense<0.000000e+00> : vector<10x2xf32>
    %80 = tpu.matmul %6, %79, %cst_51 {dimension_numbers = #tpu.dot_dimension_numbers<[1], [0], [0], [1], [0, 0, 1, 1], [], []>} : vector<10x10xf32>, vector<10x2xf32>, vector<10x2xf32> -> vector<10x2xf32>
    %81 = arith.addf %73, %80 : vector<10x2xf32>
    %82 = arith.addf %81, %12 : vector<10x2xf32>
    %cst_52 = arith.constant dense<0.000000e+00> : vector<10x2xf32>
    %83 = tpu.matmul %3, %82, %cst_52 {dimension_numbers = #tpu.dot_dimension_numbers<[1], [0], [0], [1], [0, 0, 1, 1], [], []>} : vector<10x10xf32>, vector<10x2xf32>, vector<10x2xf32> -> vector<10x2xf32>
    %84 = arith.addf %83, %33 : vector<10x2xf32>
    %85 = math.tanh %84 : vector<10x2xf32>
    %cst_53 = arith.constant dense<0.000000e+00> : vector<10x2xf32>
    %86 = tpu.matmul %5, %85, %cst_53 {dimension_numbers = #tpu.dot_dimension_numbers<[1], [0], [0], [1], [0, 0, 1, 1], [], []>} : vector<10x10xf32>, vector<10x2xf32>, vector<10x2xf32> -> vector<10x2xf32>
    %87 = arith.addf %86, %9 : vector<10x2xf32>
    %88 = math.tanh %87 : vector<10x2xf32>
    %cst_54 = arith.constant dense<0.000000e+00> : vector<10x2xf32>
    %89 = tpu.matmul %6, %88, %cst_54 {dimension_numbers = #tpu.dot_dimension_numbers<[1], [0], [0], [1], [0, 0, 1, 1], [], []>} : vector<10x10xf32>, vector<10x2xf32>, vector<10x2xf32> -> vector<10x2xf32>
    %90 = arith.addf %82, %89 : vector<10x2xf32>
    %91 = arith.addf %90, %12 : vector<10x2xf32>
    %cst_55 = arith.constant dense<0.000000e+00> : vector<10x2xf32>
    %92 = tpu.matmul %3, %91, %cst_55 {dimension_numbers = #tpu.dot_dimension_numbers<[1], [0], [0], [1], [0, 0, 1, 1], [], []>} : vector<10x10xf32>, vector<10x2xf32>, vector<10x2xf32> -> vector<10x2xf32>
    %93 = arith.addf %92, %37 : vector<10x2xf32>
    %94 = math.tanh %93 : vector<10x2xf32>
    %cst_56 = arith.constant dense<0.000000e+00> : vector<10x2xf32>
    %95 = tpu.matmul %5, %94, %cst_56 {dimension_numbers = #tpu.dot_dimension_numbers<[1], [0], [0], [1], [0, 0, 1, 1], [], []>} : vector<10x10xf32>, vector<10x2xf32>, vector<10x2xf32> -> vector<10x2xf32>
    %96 = arith.addf %95, %9 : vector<10x2xf32>
    %97 = math.tanh %96 : vector<10x2xf32>
    %cst_57 = arith.constant dense<0.000000e+00> : vector<10x2xf32>
    %98 = tpu.matmul %6, %97, %cst_57 {dimension_numbers = #tpu.dot_dimension_numbers<[1], [0], [0], [1], [0, 0, 1, 1], [], []>} : vector<10x10xf32>, vector<10x2xf32>, vector<10x2xf32> -> vector<10x2xf32>
    %99 = arith.addf %91, %98 : vector<10x2xf32>
    %100 = arith.addf %99, %12 : vector<10x2xf32>
    %cst_58 = arith.constant dense<0.000000e+00> : vector<10x2xf32>
    %101 = tpu.matmul %3, %100, %cst_58 {dimension_numbers = #tpu.dot_dimension_numbers<[1], [0], [0], [1], [0, 0, 1, 1], [], []>} : vector<10x10xf32>, vector<10x2xf32>, vector<10x2xf32> -> vector<10x2xf32>
    %102 = arith.addf %101, %41 : vector<10x2xf32>
    %103 = math.tanh %102 : vector<10x2xf32>
    %cst_59 = arith.constant dense<0.000000e+00> : vector<10x2xf32>
    %104 = tpu.matmul %5, %103, %cst_59 {dimension_numbers = #tpu.dot_dimension_numbers<[1], [0], [0], [1], [0, 0, 1, 1], [], []>} : vector<10x10xf32>, vector<10x2xf32>, vector<10x2xf32> -> vector<10x2xf32>
    %105 = arith.addf %104, %9 : vector<10x2xf32>
    %106 = math.tanh %105 : vector<10x2xf32>
    %cst_60 = arith.constant dense<0.000000e+00> : vector<10x2xf32>
    %107 = tpu.matmul %6, %106, %cst_60 {dimension_numbers = #tpu.dot_dimension_numbers<[1], [0], [0], [1], [0, 0, 1, 1], [], []>} : vector<10x10xf32>, vector<10x2xf32>, vector<10x2xf32> -> vector<10x2xf32>
    %108 = arith.addf %100, %107 : vector<10x2xf32>
    %109 = arith.addf %108, %12 : vector<10x2xf32>
    %cst_61 = arith.constant dense<0.000000e+00> : vector<10x2xf32>
    %110 = tpu.matmul %3, %109, %cst_61 {dimension_numbers = #tpu.dot_dimension_numbers<[1], [0], [0], [1], [0, 0, 1, 1], [], []>} : vector<10x10xf32>, vector<10x2xf32>, vector<10x2xf32> -> vector<10x2xf32>
    %111 = arith.addf %110, %45 : vector<10x2xf32>
    %112 = math.tanh %111 : vector<10x2xf32>
    %cst_62 = arith.constant dense<0.000000e+00> : vector<10x2xf32>
    %113 = tpu.matmul %5, %112, %cst_62 {dimension_numbers = #tpu.dot_dimension_numbers<[1], [0], [0], [1], [0, 0, 1, 1], [], []>} : vector<10x10xf32>, vector<10x2xf32>, vector<10x2xf32> -> vector<10x2xf32>
    %114 = arith.addf %113, %9 : vector<10x2xf32>
    %115 = math.tanh %114 : vector<10x2xf32>
    %cst_63 = arith.constant dense<0.000000e+00> : vector<10x2xf32>
    %116 = tpu.matmul %6, %115, %cst_63 {dimension_numbers = #tpu.dot_dimension_numbers<[1], [0], [0], [1], [0, 0, 1, 1], [], []>} : vector<10x10xf32>, vector<10x2xf32>, vector<10x2xf32> -> vector<10x2xf32>
    %117 = arith.addf %109, %116 : vector<10x2xf32>
    %118 = arith.addf %117, %12 : vector<10x2xf32>
    %c0_64 = arith.constant 0 : index
    %c0_65 = arith.constant 0 : index
    %119 = vector.load %arg17[%c0_64, %c0_65] : memref<10x2xf32, #tpu.memory_space<vmem>>, vector<10x2xf32>
    tpu.vector_store %arg17[%c0_64, %c0_65], %118 {strides = array<i32>} : memref<10x2xf32, #tpu.memory_space<vmem>>, vector<10x2xf32>,
    %c0_i32_66 = arith.constant 0 : i32
    %120 = arith.cmpi eq, %arg1, %c0_i32_66 : i32
    %121 = arith.extui %120 : i1 to i32
    %c0_i32_67 = arith.constant 0 : i32
    %122 = arith.cmpi ne, %121, %c0_i32_67 : i32
    scf.if %122 {
      %c0_68 = arith.constant 0 : index
      %c0_69 = arith.constant 0 : index
      %123 = vector.load %arg12[%c0_68, %c0_69] : memref<10x10xf32, #tpu.memory_space<vmem>>, vector<10x10xf32>
      %cst_70 = arith.constant dense<0.000000e+00> : vector<10x2xf32>
      %124 = tpu.matmul %123, %118, %cst_70 {dimension_numbers = #tpu.dot_dimension_numbers<[1], [0], [0], [1], [0, 0, 1, 1], [], []>} : vector<10x10xf32>, vector<10x2xf32>, vector<10x2xf32> -> vector<10x2xf32>
      %c0_71 = arith.constant 0 : index
      %c0_72 = arith.constant 0 : index
      %125 = vector.load %arg13[%c0_71, %c0_72] : memref<10x1xf32, #tpu.memory_space<vmem>>, vector<10x1xf32>
      %126 = vector.shape_cast %125 : vector<10x1xf32> to vector<10x1xf32>
      %127 = vector.broadcast %126 : vector<10x1xf32> to vector<10x2xf32>
      %128 = arith.addf %124, %127 : vector<10x2xf32>
      %129 = math.tanh %128 : vector<10x2xf32>
      %c0_73 = arith.constant 0 : index
      %c0_74 = arith.constant 0 : index
      %130 = vector.load %arg14[%c0_73, %c0_74] : memref<1x10xf32, #tpu.memory_space<vmem>>, vector<1x10xf32>
      %cst_75 = arith.constant dense<0.000000e+00> : vector<1x2xf32>
      %131 = tpu.matmul %130, %129, %cst_75 {dimension_numbers = #tpu.dot_dimension_numbers<[1], [0], [0], [1], [0, 0, 1, 1], [], []>} : vector<1x10xf32>, vector<10x2xf32>, vector<1x2xf32> -> vector<1x2xf32>
      %c0_76 = arith.constant 0 : index
      %c0_77 = arith.constant 0 : index
      %132 = vector.load %arg15[%c0_76, %c0_77] : memref<1x1xf32, #tpu.memory_space<vmem>>, vector<1x1xf32>
      %133 = vector.shape_cast %132 : vector<1x1xf32> to vector<1x1xf32>
      %134 = vector.broadcast %133 : vector<1x1xf32> to vector<1x2xf32>
      %135 = arith.addf %131, %134 : vector<1x2xf32>
      %c0_78 = arith.constant 0 : index
      %c0_79 = arith.constant 0 : index
      %136 = vector.load %arg16[%c0_78, %c0_79] : memref<1x2xf32, #tpu.memory_space<vmem>>, vector<1x2xf32>
      tpu.vector_store %arg16[%c0_78, %c0_79], %135 {strides = array<i32>} : memref<1x2xf32, #tpu.memory_space<vmem>>, vector<1x2xf32>,
    } else {
    }
    return
  }
  func.func @transform_0(%arg0: i32, %arg1: i32) -> (i32, i32, i32) {
    %c0_i32 = arith.constant 0 : i32
    %c0_i32_0 = arith.constant 0 : i32
    return %arg1, %c0_i32, %arg0 : i32, i32, i32
  }
  func.func @transform_1(%arg0: i32, %arg1: i32) -> (i32, i32) {
    %c0_i32 = arith.constant 0 : i32
    %c0_i32_0 = arith.constant 0 : i32
    return %c0_i32, %arg0 : i32, i32
  }
  func.func @transform_2(%arg0: i32, %arg1: i32) -> (i32, i32) {
    %c0_i32 = arith.constant 0 : i32
    %c0_i32_0 = arith.constant 0 : i32
    %c0_i32_1 = arith.constant 0 : i32
    return %c0_i32, %c0_i32_0 : i32, i32
  }
  func.func @transform_3(%arg0: i32, %arg1: i32) -> (i32, i32) {
    %c0_i32 = arith.constant 0 : i32
    %c0_i32_0 = arith.constant 0 : i32
    %c0_i32_1 = arith.constant 0 : i32
    return %c0_i32, %c0_i32_0 : i32, i32
  }
  func.func @transform_4(%arg0: i32, %arg1: i32) -> (i32, i32) {
    %c0_i32 = arith.constant 0 : i32
    %c0_i32_0 = arith.constant 0 : i32
    %c0_i32_1 = arith.constant 0 : i32
    return %c0_i32, %c0_i32_0 : i32, i32
  }
  func.func @transform_5(%arg0: i32, %arg1: i32) -> (i32, i32) {
    %c0_i32 = arith.constant 0 : i32
    %c0_i32_0 = arith.constant 0 : i32
    %c0_i32_1 = arith.constant 0 : i32
    return %c0_i32, %c0_i32_0 : i32, i32
  }
  func.func @transform_6(%arg0: i32, %arg1: i32) -> (i32, i32) {
    %c0_i32 = arith.constant 0 : i32
    %c0_i32_0 = arith.constant 0 : i32
    %c0_i32_1 = arith.constant 0 : i32
    return %c0_i32, %c0_i32_0 : i32, i32
  }
  func.func @transform_7(%arg0: i32, %arg1: i32) -> (i32, i32) {
    %c0_i32 = arith.constant 0 : i32
    %c0_i32_0 = arith.constant 0 : i32
    %c0_i32_1 = arith.constant 0 : i32
    return %c0_i32, %c0_i32_0 : i32, i32
  }
  func.func @transform_8(%arg0: i32, %arg1: i32) -> (i32, i32) {
    %c0_i32 = arith.constant 0 : i32
    %c0_i32_0 = arith.constant 0 : i32
    %c0_i32_1 = arith.constant 0 : i32
    return %c0_i32, %c0_i32_0 : i32, i32
  }
  func.func @transform_9(%arg0: i32, %arg1: i32) -> (i32, i32) {
    %c0_i32 = arith.constant 0 : i32
    %c0_i32_0 = arith.constant 0 : i32
    %c0_i32_1 = arith.constant 0 : i32
    return %c0_i32, %c0_i32_0 : i32, i32
  }
  func.func @transform_10(%arg0: i32, %arg1: i32) -> (i32, i32) {
    %c0_i32 = arith.constant 0 : i32
    %c0_i32_0 = arith.constant 0 : i32
    %c0_i32_1 = arith.constant 0 : i32
    return %c0_i32, %c0_i32_0 : i32, i32
  }
  func.func @transform_11(%arg0: i32, %arg1: i32) -> (i32, i32) {
    %c0_i32 = arith.constant 0 : i32
    %c0_i32_0 = arith.constant 0 : i32
    %c0_i32_1 = arith.constant 0 : i32
    return %c0_i32, %c0_i32_0 : i32, i32
  }
  func.func @transform_12(%arg0: i32, %arg1: i32) -> (i32, i32) {
    %c0_i32 = arith.constant 0 : i32
    %c0_i32_0 = arith.constant 0 : i32
    %c0_i32_1 = arith.constant 0 : i32
    return %c0_i32, %c0_i32_0 : i32, i32
  }
  func.func @transform_13(%arg0: i32, %arg1: i32) -> (i32, i32) {
    %c0_i32 = arith.constant 0 : i32
    %c0_i32_0 = arith.constant 0 : i32
    %c0_i32_1 = arith.constant 0 : i32
    return %c0_i32, %c0_i32_0 : i32, i32
  }
  func.func @transform_14(%arg0: i32, %arg1: i32) -> (i32, i32) {
    %c0_i32 = arith.constant 0 : i32
    %c0_i32_0 = arith.constant 0 : i32
    return %c0_i32, %arg0 : i32, i32
  }
}

</mosaic_0001>

<llo_original>
// kernel: tpu_custom_call.1
$region0: #{tpu_custom_call.1}
  #allocation0 [shape = 'u32[]', space=smem, size = 0x4, offset = 0x4, fixed_abs, tag = 'smem constant byte address 0x4 - core index']
  #allocation1 [shape = 'u32[144,128]{1,0:T(1,128)}', space=vmem, size = 0x12000, scoped, tag = 'internal scratch']
  #allocation2 [shape = 'f32[10,2]{1,0:T(8,128)}', space=vmem, size = 0x2000, scoped, tag = 'scratch operand']
  #allocation3 [shape = 'f32[10,2]{1,0:T(8,128)}', space=vmem, size = 0x2000, scoped, tag = 'scratch operand']
  #allocation4 [shape = 'f32[1,1]{1,0:T(1,128)S(1)}', space=vmem, size = 0x200, scoped, tag = 'scoped memory for tpu_custom_call.1']
  %s0 = inlined_call_operand.vmem [shape: f32[8,6,2], index: 0, kind: input, shape index: {}]
  %s1 = inlined_call_operand.vmem [shape: f32[4,2], index: 1, kind: input, shape index: {}]
  %s2 = inlined_call_operand.vmem [shape: f32[10,10], index: 2, kind: input, shape index: {}]
  %s3 = inlined_call_operand.vmem [shape: f32[10,6], index: 3, kind: input, shape index: {}]
  %s4 = inlined_call_operand.vmem [shape: f32[10,4], index: 4, kind: input, shape index: {}]
  %s5 = inlined_call_operand.vmem [shape: f32[10,1], index: 5, kind: input, shape index: {}]
  %s6 = inlined_call_operand.vmem [shape: f32[10,10], index: 6, kind: input, shape index: {}]
  %s7 = inlined_call_operand.vmem [shape: f32[10,1], index: 7, kind: input, shape index: {}]
  %s8 = inlined_call_operand.vmem [shape: f32[10,10], index: 8, kind: input, shape index: {}]
  %s9 = inlined_call_operand.vmem [shape: f32[10,1], index: 9, kind: input, shape index: {}]
  %s10 = inlined_call_operand.vmem [shape: f32[10,10], index: 10, kind: input, shape index: {}]
  %s11 = inlined_call_operand.vmem [shape: f32[10,1], index: 11, kind: input, shape index: {}]
  %s12 = inlined_call_operand.vmem [shape: f32[1,10], index: 12, kind: input, shape index: {}]
  %s13 = inlined_call_operand.<no memory space> [shape: f32[1,1], index: 13, kind: input, shape index: {}]
  %s14 = inlined_call_operand.hbm [shape: f32[1,2], index: 14, kind: output, shape index: {}]
  %s15 = sld [smem:[#allocation0]]
  $region74: #{tpu_custom_call.1} parent=0
    _
  %s17 = ssub.s32 1, %s15
  %s18 = scalar_select 0, %s17, %s15
  %v19 = vstv %s13
  %20 = vst [vmem:[#allocation4] sm:$0x1] %v19
  $region1: #{tpu_custom_call.1} parent=0
    #allocation5 [shape = 'u8[512]{0}', space=vmem, size = 0x400, scoped, tag = 'output window, operand 0, single buffered']
    #allocation6 [shape = 's32[1]{0}', space=sflag, size = 0x4, scoped, tag = 'scoped memory for tpu_custom_call.1']
    %21 = vsyncpa [#allocation6], 0
    // Predicated region
    $region2: #{tpu_custom_call.1} parent=1 // pred_check
      _
    $region3: #{tpu_custom_call.1} parent=1 // pred_check_branch
      %23 = sbr.rel (0) target = $region5
    $region4: #{tpu_custom_call.1} parent=1 // pred_region
      _
    $region5: #{tpu_custom_call.1} parent=1 // pred_fallthru
      _
    // Predicated region
    $region6: #{tpu_custom_call.1} parent=1 // pred_check
      _
    $region7: #{tpu_custom_call.1} parent=1 // pred_check_branch
      %25 = sbr.rel (0) target = $region9
    $region8: #{tpu_custom_call.1} parent=1 // pred_region
      _
    $region9: #{tpu_custom_call.1} parent=1 // pred_fallthru
      _
    // Predicated region
    $region10: #{tpu_custom_call.1} parent=1 // pred_check
      _
    $region11: #{tpu_custom_call.1} parent=1 // pred_check_branch
      %27 = sbr.rel (0) target = $region13
    $region12: #{tpu_custom_call.1} parent=1 // pred_region
      _
    $region13: #{tpu_custom_call.1} parent=1 // pred_fallthru
      _
    // Predicated region
    $region14: #{tpu_custom_call.1} parent=1 // pred_check
      _
    $region15: #{tpu_custom_call.1} parent=1 // pred_check_branch
      %29 = sbr.rel (0) target = $region17
    $region16: #{tpu_custom_call.1} parent=1 // pred_region
      _
    $region17: #{tpu_custom_call.1} parent=1 // pred_fallthru
      _
    // Predicated region
    $region18: #{tpu_custom_call.1} parent=1 // pred_check
      _
    $region19: #{tpu_custom_call.1} parent=1 // pred_check_branch
      %31 = sbr.rel (0) target = $region21
    $region20: #{tpu_custom_call.1} parent=1 // pred_region
      _
    $region21: #{tpu_custom_call.1} parent=1 // pred_fallthru
      _
    // Predicated region
    $region22: #{tpu_custom_call.1} parent=1 // pred_check
      _
    $region23: #{tpu_custom_call.1} parent=1 // pred_check_branch
      %33 = sbr.rel (0) target = $region25
    $region24: #{tpu_custom_call.1} parent=1 // pred_region
      _
    $region25: #{tpu_custom_call.1} parent=1 // pred_fallthru
      _
    // Predicated region
    $region26: #{tpu_custom_call.1} parent=1 // pred_check
      _
    $region27: #{tpu_custom_call.1} parent=1 // pred_check_branch
      %35 = sbr.rel (0) target = $region29
    $region28: #{tpu_custom_call.1} parent=1 // pred_region
      _
    $region29: #{tpu_custom_call.1} parent=1 // pred_fallthru
      _
    // Predicated region
    $region30: #{tpu_custom_call.1} parent=1 // pred_check
      _
    $region31: #{tpu_custom_call.1} parent=1 // pred_check_branch
      %37 = sbr.rel (0) target = $region33
    $region32: #{tpu_custom_call.1} parent=1 // pred_region
      _
    $region33: #{tpu_custom_call.1} parent=1 // pred_fallthru
      _
    // Predicated region
    $region34: #{tpu_custom_call.1} parent=1 // pred_check
      _
    $region35: #{tpu_custom_call.1} parent=1 // pred_check_branch
      %39 = sbr.rel (0) target = $region37
    $region36: #{tpu_custom_call.1} parent=1 // pred_region
      _
    $region37: #{tpu_custom_call.1} parent=1 // pred_fallthru
      _
    // Predicated region
    $region38: #{tpu_custom_call.1} parent=1 // pred_check
      _
    $region39: #{tpu_custom_call.1} parent=1 // pred_check_branch
      %41 = sbr.rel (0) target = $region41
    $region40: #{tpu_custom_call.1} parent=1 // pred_region
      _
    $region41: #{tpu_custom_call.1} parent=1 // pred_fallthru
      _
    // Predicated region
    $region42: #{tpu_custom_call.1} parent=1 // pred_check
      _
    $region43: #{tpu_custom_call.1} parent=1 // pred_check_branch
      %43 = sbr.rel (0) target = $region45
    $region44: #{tpu_custom_call.1} parent=1 // pred_region
      _
    $region45: #{tpu_custom_call.1} parent=1 // pred_fallthru
      _
    // Predicated region
    $region46: #{tpu_custom_call.1} parent=1 // pred_check
      _
    $region47: #{tpu_custom_call.1} parent=1 // pred_check_branch
      %45 = sbr.rel (0) target = $region49
    $region48: #{tpu_custom_call.1} parent=1 // pred_region
      _
    $region49: #{tpu_custom_call.1} parent=1 // pred_fallthru
      _
    // Predicated region
    $region50: #{tpu_custom_call.1} parent=1 // pred_check
      _
    $region51: #{tpu_custom_call.1} parent=1 // pred_check_branch
      %47 = sbr.rel (0) target = $region53
    $region52: #{tpu_custom_call.1} parent=1 // pred_region
      _
    $region53: #{tpu_custom_call.1} parent=1 // pred_fallthru
      _
    // Predicated region
    $region54: #{tpu_custom_call.1} parent=1 // pred_check
      _
    $region55: #{tpu_custom_call.1} parent=1 // pred_check_branch
      %49 = sbr.rel (0) target = $region57
    $region56: #{tpu_custom_call.1} parent=1 // pred_region
      _
    $region57: #{tpu_custom_call.1} parent=1 // pred_fallthru
      _
    %p50 = scmp.eq.s32.totalorder 0, 0
    // Predicated region
    $region58: #{tpu_custom_call.1} parent=1 // pred_check
      %p51 = pneg %p50
    $region59: #{tpu_custom_call.1} parent=1 // pred_check_branch
      %53 = sbr.rel (%p51) target = $region61
    $region60: #{tpu_custom_call.1} parent=1 // pred_region
      %vm54 = vcmask 15360
      %55 = vst.msk [vmem:[#allocation2] sm:$0xff] %vm54, 0.0
      %vm56 = vcmask 9216
      %57 = vst.msk [vmem:[#allocation2 + $0x8] sm:$0x3] %vm56, 0.0
      %v58 = vld [vmem:[%s4] sm:$0xff]
      %v59 = vld [vmem:[%s4 + $0x8] sm:$0x3]
      %v60 = vld [vmem:[%s1] sm:$0xf]
      %v61 = vld [vmem:[%s5] sm:$0xff]
      %v62 = vld [vmem:[%s5 + $0x8] sm:$0x3]
      %64 = vset.pattern.permute.xlu0 0
      %65 = vperm.xlu0 %64, %v61
      %v66 = vpop.permute.xlu0 %65
      %69 = vset.pattern.permute.xlu0 0
      %70 = vperm.xlu0 %69, %v62
      %v71 = vpop.permute.xlu0 %70
      %vm73 = vcmask 31744
      %v75 = vsel %vm73, %v58, 0
      %v78 = vsel %vm73, %v59, 0
      %vm80 = vcmask 1043456
      %v82 = vsel %vm80, %v60, 0
      %84 = vmatprep.subr.mxu0 0.0
      %85 = vmatpush1.msra.mxu0 0.0
      %86 = vmatprep.subr.mxu0 0.0
      %87 = vmatpush1.msra.mxu0 0.0
      %88 = vmatprep.subr.mxu0 0.0
      %89 = vmatpush1.msra.mxu0 0.0
      %90 = vmatprep.subr.mxu0 0.0
      %91 = vmatpush1.msra.mxu0 0.0
      %92 = vmatprep.subr.mxu0 0.0
      %93 = vmatpush1.msra.mxu0 0.0
      %94 = vmatprep.subr.mxu0 0.0
      %95 = vmatpush1.msra.mxu0 0.0
      %96 = vmatprep.subr.mxu0 0.0
      %97 = vmatpush1.msra.mxu0 0.0
      %98 = vmatprep.subr.mxu0 0.0
      %99 = vmatpush1.msra.mxu0 0.0
      %100 = vmatprep.subr.mxu0 0.0
      %101 = vmatpush1.msra.mxu0 0.0
      %102 = vmatprep.subr.mxu0 0.0
      %103 = vmatpush1.msra.mxu0 0.0
      %104 = vmatprep.subr.mxu0 0.0
      %105 = vmatpush1.msra.mxu0 0.0
      %106 = vmatprep.subr.mxu0 0.0
      %107 = vmatpush1.msra.mxu0 0.0
      %108 = vmatprep.subr.mxu0 0.0
      %109 = vmatpush1.msra.mxu0 0.0
      %110 = vmatprep.subr.mxu0 0.0
      %111 = vmatpush1.msra.mxu0 0.0
      %112 = vmatprep.subr.mxu0 0.0
      %113 = vmatpush1.msra.mxu0 0.0
      %114 = vmatprep.subr.mxu0 0.0
      %115 = vmatpush1.msra.mxu0 %v82
      %116 = vmatprep.subr.mxu0 0.0
      %117 = vmatpush2.msra.mxu0 0.0
      %118 = vmatprep.subr.mxu0 0.0
      %119 = vmatpush2.msra.mxu0 0.0
      %120 = vmatprep.subr.mxu0 0.0
      %121 = vmatpush2.msra.mxu0 0.0
      %122 = vmatprep.subr.mxu0 0.0
      %123 = vmatpush2.msra.mxu0 0.0
      %124 = vmatprep.subr.mxu0 0.0
      %125 = vmatpush2.msra.mxu0 0.0
      %126 = vmatprep.subr.mxu0 0.0
      %127 = vmatpush2.msra.mxu0 0.0
      %128 = vmatprep.subr.mxu0 0.0
      %129 = vmatpush2.msra.mxu0 0.0
      %130 = vmatprep.subr.mxu0 0.0
      %131 = vmatpush2.msra.mxu0 0.0
      %132 = vmatprep.subr.mxu0 0.0
      %133 = vmatpush2.msra.mxu0 0.0
      %134 = vmatprep.subr.mxu0 0.0
      %135 = vmatpush2.msra.mxu0 0.0
      %136 = vmatprep.subr.mxu0 0.0
      %137 = vmatpush2.msra.mxu0 0.0
      %138 = vmatprep.subr.mxu0 0.0
      %139 = vmatpush2.msra.mxu0 0.0
      %140 = vmatprep.subr.mxu0 0.0
      %141 = vmatpush2.msra.mxu0 0.0
      %142 = vmatprep.subr.mxu0 0.0
      %143 = vmatpush2.msra.mxu0 0.0
      %144 = vmatprep.subr.mxu0 0.0
      %145 = vmatpush2.msra.mxu0 0.0
      %146 = vmatprep.subr.mxu0 0.0
      %147 = vmatpush2.msra.mxu0 0.0
      %148 = vmatprep.mubr.f32.mxu0 0.0
      %149 = vmatmul.mubr.f32.gmra.mxu0 %v75
      %v150 = vpop.f32.mrf.mxu0
      %v151 = vadd.f32 %v66, %v150
      %v152 = vpop.f32.mrf.mxu0
      %153 = vmatprep.mubr.f32.mxu0 0.0
      %154 = vmatmul.mubr.f32.gmra.mxu0 %v78
      %v155 = vpop.f32.mrf.mxu0
      %v156 = vadd.f32 %v71, %v155
      %v157 = vpop.f32.mrf.mxu0
      %158 = vdwg.mxu0
      %159 = vst.msk [vmem:[#allocation3] sm:$0xff] %vm54, %v151
      %160 = vst.msk [vmem:[#allocation3 + $0x8] sm:$0x3] %vm56, %v156
    $region61: #{tpu_custom_call.1} parent=1 // pred_fallthru
      _
    %v161 = vld [vmem:[%s2] sm:$0xff]
    %v162 = vld [vmem:[%s2 + $0x8] sm:$0x3]
    %v163 = vld [vmem:[%s3] sm:$0xff]
    %v164 = vld [vmem:[%s3 + $0x8] sm:$0x3]
    %v165 = vld [vmem:[%s6] sm:$0xff]
    %v166 = vld [vmem:[%s6 + $0x8] sm:$0x3]
    %v167 = vld [vmem:[%s8] sm:$0xff]
    %v168 = vld [vmem:[%s8 + $0x8] sm:$0x3]
    %v169 = vld [vmem:[%s7] sm:$0xff]
    %v170 = vld [vmem:[%s7 + $0x8] sm:$0x3]
    %172 = vset.pattern.permute.xlu0 0
    %173 = vperm.xlu0 %172, %v169
    %v174 = vpop.permute.xlu0 %173
    %177 = vset.pattern.permute.xlu0 0
    %178 = vperm.xlu0 %177, %v170
    %v179 = vpop.permute.xlu0 %178
    %v181 = vld [vmem:[%s9] sm:$0xff]
    %v182 = vld [vmem:[%s9 + $0x8] sm:$0x3]
    %184 = vset.pattern.permute.xlu0 0
    %185 = vperm.xlu0 %184, %v181
    %v186 = vpop.permute.xlu0 %185
    %189 = vset.pattern.permute.xlu0 0
    %190 = vperm.xlu0 %189, %v182
    %v191 = vpop.permute.xlu0 %190
    %v193 = vld [vmem:[#allocation3] sm:$0xff]
    %v194 = vld [vmem:[#allocation3 + $0x8] sm:$0x3]
    %v195 = vld [vmem:[%s0] sm:$0x3f]
    %vm196 = vcmask 48128
    %v198 = vsel %vm196, %v163, 0
    %v201 = vsel %vm196, %v164, 0
    %vm203 = vcmask 1045504
    %v205 = vsel %vm203, %v195, 0
    %207 = vmatprep.subr.mxu0 0.0
    %208 = vmatpush1.msra.mxu0 0.0
    %209 = vmatprep.subr.mxu0 0.0
    %210 = vmatpush1.msra.mxu0 0.0
    %211 = vmatprep.subr.mxu0 0.0
    %212 = vmatpush1.msra.mxu0 0.0
    %213 = vmatprep.subr.mxu0 0.0
    %214 = vmatpush1.msra.mxu0 0.0
    %215 = vmatprep.subr.mxu0 0.0
    %216 = vmatpush1.msra.mxu0 0.0
    %217 = vmatprep.subr.mxu0 0.0
    %218 = vmatpush1.msra.mxu0 0.0
    %219 = vmatprep.subr.mxu0 0.0
    %220 = vmatpush1.msra.mxu0 0.0
    %221 = vmatprep.subr.mxu0 0.0
    %222 = vmatpush1.msra.mxu0 0.0
    %223 = vmatprep.subr.mxu0 0.0
    %224 = vmatpush1.msra.mxu0 0.0
    %225 = vmatprep.subr.mxu0 0.0
    %226 = vmatpush1.msra.mxu0 0.0
    %227 = vmatprep.subr.mxu0 0.0
    %228 = vmatpush1.msra.mxu0 0.0
    %229 = vmatprep.subr.mxu0 0.0
    %230 = vmatpush1.msra.mxu0 0.0
    %231 = vmatprep.subr.mxu0 0.0
    %232 = vmatpush1.msra.mxu0 0.0
    %233 = vmatprep.subr.mxu0 0.0
    %234 = vmatpush1.msra.mxu0 0.0
    %235 = vmatprep.subr.mxu0 0.0
    %236 = vmatpush1.msra.mxu0 0.0
    %237 = vmatprep.subr.mxu0 0.0
    %238 = vmatpush1.msra.mxu0 %v205
    %239 = vmatprep.subr.mxu0 0.0
    %240 = vmatpush2.msra.mxu0 0.0
    %241 = vmatprep.subr.mxu0 0.0
    %242 = vmatpush2.msra.mxu0 0.0
    %243 = vmatprep.subr.mxu0 0.0
    %244 = vmatpush2.msra.mxu0 0.0
    %245 = vmatprep.subr.mxu0 0.0
    %246 = vmatpush2.msra.mxu0 0.0
    %247 = vmatprep.subr.mxu0 0.0
    %248 = vmatpush2.msra.mxu0 0.0
    %249 = vmatprep.subr.mxu0 0.0
    %250 = vmatpush2.msra.mxu0 0.0
    %251 = vmatprep.subr.mxu0 0.0
    %252 = vmatpush2.msra.mxu0 0.0
    %253 = vmatprep.subr.mxu0 0.0
    %254 = vmatpush2.msra.mxu0 0.0
    %255 = vmatprep.subr.mxu0 0.0
    %256 = vmatpush2.msra.mxu0 0.0
    %257 = vmatprep.subr.mxu0 0.0
    %258 = vmatpush2.msra.mxu0 0.0
    %259 = vmatprep.subr.mxu0 0.0
    %260 = vmatpush2.msra.mxu0 0.0
    %261 = vmatprep.subr.mxu0 0.0
    %262 = vmatpush2.msra.mxu0 0.0
    %263 = vmatprep.subr.mxu0 0.0
    %264 = vmatpush2.msra.mxu0 0.0
    %265 = vmatprep.subr.mxu0 0.0
    %266 = vmatpush2.msra.mxu0 0.0
    %267 = vmatprep.subr.mxu0 0.0
    %268 = vmatpush2.msra.mxu0 0.0
    %269 = vmatprep.subr.mxu0 0.0
    %270 = vmatpush2.msra.mxu0 0.0
    %271 = vmatprep.mubr.f32.mxu0 0.0
    %272 = vmatmul.mubr.f32.gmra.mxu0 %v198
    %v273 = vpop.f32.mrf.mxu0
    %v274 = vadd.f32 %v193, %v273
    %v275 = vpop.f32.mrf.mxu0
    %276 = vmatprep.mubr.f32.mxu0 0.0
    %277 = vmatmul.mubr.f32.gmra.mxu0 %v201
    %v278 = vpop.f32.mrf.mxu0
    %v279 = vadd.f32 %v194, %v278
    %v280 = vpop.f32.mrf.mxu0
    %281 = vdwg.mxu0
    %s282 = scalar_lea.vmem %s0, 8
    %v283 = vld [vmem:[%s282] sm:$0x3f]
    %v285 = vsel %vm203, %v283, 0
    %287 = vmatprep.subr.mxu0 0.0
    %288 = vmatpush1.msra.mxu0 0.0
    %289 = vmatprep.subr.mxu0 0.0
    %290 = vmatpush1.msra.mxu0 0.0
    %291 = vmatprep.subr.mxu0 0.0
    %292 = vmatpush1.msra.mxu0 0.0
    %293 = vmatprep.subr.mxu0 0.0
    %294 = vmatpush1.msra.mxu0 0.0
    %295 = vmatprep.subr.mxu0 0.0
    %296 = vmatpush1.msra.mxu0 0.0
    %297 = vmatprep.subr.mxu0 0.0
    %298 = vmatpush1.msra.mxu0 0.0
    %299 = vmatprep.subr.mxu0 0.0
    %300 = vmatpush1.msra.mxu0 0.0
    %301 = vmatprep.subr.mxu0 0.0
    %302 = vmatpush1.msra.mxu0 0.0
    %303 = vmatprep.subr.mxu0 0.0
    %304 = vmatpush1.msra.mxu0 0.0
    %305 = vmatprep.subr.mxu0 0.0
    %306 = vmatpush1.msra.mxu0 0.0
    %307 = vmatprep.subr.mxu0 0.0
    %308 = vmatpush1.msra.mxu0 0.0
    %309 = vmatprep.subr.mxu0 0.0
    %310 = vmatpush1.msra.mxu0 0.0
    %311 = vmatprep.subr.mxu0 0.0
    %312 = vmatpush1.msra.mxu0 0.0
    %313 = vmatprep.subr.mxu0 0.0
    %314 = vmatpush1.msra.mxu0 0.0
    %315 = vmatprep.subr.mxu0 0.0
    %316 = vmatpush1.msra.mxu0 0.0
    %317 = vmatprep.subr.mxu0 0.0
    %318 = vmatpush1.msra.mxu0 %v285
    %319 = vmatprep.subr.mxu0 0.0
    %320 = vmatpush2.msra.mxu0 0.0
    %321 = vmatprep.subr.mxu0 0.0
    %322 = vmatpush2.msra.mxu0 0.0
    %323 = vmatprep.subr.mxu0 0.0
    %324 = vmatpush2.msra.mxu0 0.0
    %325 = vmatprep.subr.mxu0 0.0
    %326 = vmatpush2.msra.mxu0 0.0
    %327 = vmatprep.subr.mxu0 0.0
    %328 = vmatpush2.msra.mxu0 0.0
    %329 = vmatprep.subr.mxu0 0.0
    %330 = vmatpush2.msra.mxu0 0.0
    %331 = vmatprep.subr.mxu0 0.0
    %332 = vmatpush2.msra.mxu0 0.0
    %333 = vmatprep.subr.mxu0 0.0
    %334 = vmatpush2.msra.mxu0 0.0
    %335 = vmatprep.subr.mxu0 0.0
    %336 = vmatpush2.msra.mxu0 0.0
    %337 = vmatprep.subr.mxu0 0.0
    %338 = vmatpush2.msra.mxu0 0.0
    %339 = vmatprep.subr.mxu0 0.0
    %340 = vmatpush2.msra.mxu0 0.0
    %341 = vmatprep.subr.mxu0 0.0
    %342 = vmatpush2.msra.mxu0 0.0
    %343 = vmatprep.subr.mxu0 0.0
    %344 = vmatpush2.msra.mxu0 0.0
    %345 = vmatprep.subr.mxu0 0.0
    %346 = vmatpush2.msra.mxu0 0.0
    %347 = vmatprep.subr.mxu0 0.0
    %348 = vmatpush2.msra.mxu0 0.0
    %349 = vmatprep.subr.mxu0 0.0
    %350 = vmatpush2.msra.mxu0 0.0
    %351 = vmatprep.mubr.f32.mxu0 0.0
    %352 = vmatmul.mubr.f32.gmra.mxu0 %v198
    %v353 = vpop.f32.mrf.mxu0
    %v354 = vadd.f32 %v193, %v353
    %v355 = vpop.f32.mrf.mxu0
    %356 = vmatprep.mubr.f32.mxu0 0.0
    %357 = vmatmul.mubr.f32.gmra.mxu0 %v201
    %v358 = vpop.f32.mrf.mxu0
    %v359 = vadd.f32 %v194, %v358
    %v360 = vpop.f32.mrf.mxu0
    %361 = vdwg.mxu0
    %s362 = scalar_lea.vmem %s0, 16
    %v363 = vld [vmem:[%s362] sm:$0x3f]
    %v365 = vsel %vm203, %v363, 0
    %367 = vmatprep.subr.mxu0 0.0
    %368 = vmatpush1.msra.mxu0 0.0
    %369 = vmatprep.subr.mxu0 0.0
    %370 = vmatpush1.msra.mxu0 0.0
    %371 = vmatprep.subr.mxu0 0.0
    %372 = vmatpush1.msra.mxu0 0.0
    %373 = vmatprep.subr.mxu0 0.0
    %374 = vmatpush1.msra.mxu0 0.0
    %375 = vmatprep.subr.mxu0 0.0
    %376 = vmatpush1.msra.mxu0 0.0
    %377 = vmatprep.subr.mxu0 0.0
    %378 = vmatpush1.msra.mxu0 0.0
    %379 = vmatprep.subr.mxu0 0.0
    %380 = vmatpush1.msra.mxu0 0.0
    %381 = vmatprep.subr.mxu0 0.0
    %382 = vmatpush1.msra.mxu0 0.0
    %383 = vmatprep.subr.mxu0 0.0
    %384 = vmatpush1.msra.mxu0 0.0
    %385 = vmatprep.subr.mxu0 0.0
    %386 = vmatpush1.msra.mxu0 0.0
    %387 = vmatprep.subr.mxu0 0.0
    %388 = vmatpush1.msra.mxu0 0.0
    %389 = vmatprep.subr.mxu0 0.0
    %390 = vmatpush1.msra.mxu0 0.0
    %391 = vmatprep.subr.mxu0 0.0
    %392 = vmatpush1.msra.mxu0 0.0
    %393 = vmatprep.subr.mxu0 0.0
    %394 = vmatpush1.msra.mxu0 0.0
    %395 = vmatprep.subr.mxu0 0.0
    %396 = vmatpush1.msra.mxu0 0.0
    %397 = vmatprep.subr.mxu0 0.0
    %398 = vmatpush1.msra.mxu0 %v365
    %399 = vmatprep.subr.mxu0 0.0
    %400 = vmatpush2.msra.mxu0 0.0
    %401 = vmatprep.subr.mxu0 0.0
    %402 = vmatpush2.msra.mxu0 0.0
    %403 = vmatprep.subr.mxu0 0.0
    %404 = vmatpush2.msra.mxu0 0.0
    %405 = vmatprep.subr.mxu0 0.0
    %406 = vmatpush2.msra.mxu0 0.0
    %407 = vmatprep.subr.mxu0 0.0
    %408 = vmatpush2.msra.mxu0 0.0
    %409 = vmatprep.subr.mxu0 0.0
    %410 = vmatpush2.msra.mxu0 0.0
    %411 = vmatprep.subr.mxu0 0.0
    %412 = vmatpush2.msra.mxu0 0.0
    %413 = vmatprep.subr.mxu0 0.0
    %414 = vmatpush2.msra.mxu0 0.0
    %415 = vmatprep.subr.mxu0 0.0
    %416 = vmatpush2.msra.mxu0 0.0
    %417 = vmatprep.subr.mxu0 0.0
    %418 = vmatpush2.msra.mxu0 0.0
    %419 = vmatprep.subr.mxu0 0.0
    %420 = vmatpush2.msra.mxu0 0.0
    %421 = vmatprep.subr.mxu0 0.0
    %422 = vmatpush2.msra.mxu0 0.0
    %423 = vmatprep.subr.mxu0 0.0
    %424 = vmatpush2.msra.mxu0 0.0
    %425 = vmatprep.subr.mxu0 0.0
    %426 = vmatpush2.msra.mxu0 0.0
    %427 = vmatprep.subr.mxu0 0.0
    %428 = vmatpush2.msra.mxu0 0.0
    %429 = vmatprep.subr.mxu0 0.0
    %430 = vmatpush2.msra.mxu0 0.0
    %431 = vmatprep.mubr.f32.mxu0 0.0
    %432 = vmatmul.mubr.f32.gmra.mxu0 %v198
    %v433 = vpop.f32.mrf.mxu0
    %v434 = vadd.f32 %v193, %v433
    %v435 = vpop.f32.mrf.mxu0
    %436 = vmatprep.mubr.f32.mxu0 0.0
    %437 = vmatmul.mubr.f32.gmra.mxu0 %v201
    %v438 = vpop.f32.mrf.mxu0
    %v439 = vadd.f32 %v194, %v438
    %v440 = vpop.f32.mrf.mxu0
    %441 = vdwg.mxu0
    %s442 = scalar_lea.vmem %s0, 24
    %v443 = vld [vmem:[%s442] sm:$0x3f]
    %v445 = vsel %vm203, %v443, 0
    %447 = vmatprep.subr.mxu0 0.0
    %448 = vmatpush1.msra.mxu0 0.0
    %449 = vmatprep.subr.mxu0 0.0
    %450 = vmatpush1.msra.mxu0 0.0
    %451 = vmatprep.subr.mxu0 0.0
    %452 = vmatpush1.msra.mxu0 0.0
    %453 = vmatprep.subr.mxu0 0.0
    %454 = vmatpush1.msra.mxu0 0.0
    %455 = vmatprep.subr.mxu0 0.0
    %456 = vmatpush1.msra.mxu0 0.0
    %457 = vmatprep.subr.mxu0 0.0
    %458 = vmatpush1.msra.mxu0 0.0
    %459 = vmatprep.subr.mxu0 0.0
    %460 = vmatpush1.msra.mxu0 0.0
    %461 = vmatprep.subr.mxu0 0.0
    %462 = vmatpush1.msra.mxu0 0.0
    %463 = vmatprep.subr.mxu0 0.0
    %464 = vmatpush1.msra.mxu0 0.0
    %465 = vmatprep.subr.mxu0 0.0
    %466 = vmatpush1.msra.mxu0 0.0
    %467 = vmatprep.subr.mxu0 0.0
    %468 = vmatpush1.msra.mxu0 0.0
    %469 = vmatprep.subr.mxu0 0.0
    %470 = vmatpush1.msra.mxu0 0.0
    %471 = vmatprep.subr.mxu0 0.0
    %472 = vmatpush1.msra.mxu0 0.0
    %473 = vmatprep.subr.mxu0 0.0
    %474 = vmatpush1.msra.mxu0 0.0
    %475 = vmatprep.subr.mxu0 0.0
    %476 = vmatpush1.msra.mxu0 0.0
    %477 = vmatprep.subr.mxu0 0.0
    %478 = vmatpush1.msra.mxu0 %v445
    %479 = vmatprep.subr.mxu0 0.0
    %480 = vmatpush2.msra.mxu0 0.0
    %481 = vmatprep.subr.mxu0 0.0
    %482 = vmatpush2.msra.mxu0 0.0
    %483 = vmatprep.subr.mxu0 0.0
    %484 = vmatpush2.msra.mxu0 0.0
    %485 = vmatprep.subr.mxu0 0.0
    %486 = vmatpush2.msra.mxu0 0.0
    %487 = vmatprep.subr.mxu0 0.0
    %488 = vmatpush2.msra.mxu0 0.0
    %489 = vmatprep.subr.mxu0 0.0
    %490 = vmatpush2.msra.mxu0 0.0
    %491 = vmatprep.subr.mxu0 0.0
    %492 = vmatpush2.msra.mxu0 0.0
    %493 = vmatprep.subr.mxu0 0.0
    %494 = vmatpush2.msra.mxu0 0.0
    %495 = vmatprep.subr.mxu0 0.0
    %496 = vmatpush2.msra.mxu0 0.0
    %497 = vmatprep.subr.mxu0 0.0
    %498 = vmatpush2.msra.mxu0 0.0
    %499 = vmatprep.subr.mxu0 0.0
    %500 = vmatpush2.msra.mxu0 0.0
    %501 = vmatprep.subr.mxu0 0.0
    %502 = vmatpush2.msra.mxu0 0.0
    %503 = vmatprep.subr.mxu0 0.0
    %504 = vmatpush2.msra.mxu0 0.0
    %505 = vmatprep.subr.mxu0 0.0
    %506 = vmatpush2.msra.mxu0 0.0
    %507 = vmatprep.subr.mxu0 0.0
    %508 = vmatpush2.msra.mxu0 0.0
    %509 = vmatprep.subr.mxu0 0.0
    %510 = vmatpush2.msra.mxu0 0.0
    %511 = vmatprep.mubr.f32.mxu0 0.0
    %512 = vmatmul.mubr.f32.gmra.mxu0 %v198
    %v513 = vpop.f32.mrf.mxu0
    %v514 = vadd.f32 %v193, %v513
    %v515 = vpop.f32.mrf.mxu0
    %516 = vmatprep.mubr.f32.mxu0 0.0
    %517 = vmatmul.mubr.f32.gmra.mxu0 %v201
    %v518 = vpop.f32.mrf.mxu0
    %v519 = vadd.f32 %v194, %v518
    %v520 = vpop.f32.mrf.mxu0
    %521 = vdwg.mxu0
    %s522 = scalar_lea.vmem %s0, 32
    %v523 = vld [vmem:[%s522] sm:$0x3f]
    %v525 = vsel %vm203, %v523, 0
    %527 = vmatprep.subr.mxu0 0.0
    %528 = vmatpush1.msra.mxu0 0.0
    %529 = vmatprep.subr.mxu0 0.0
    %530 = vmatpush1.msra.mxu0 0.0
    %531 = vmatprep.subr.mxu0 0.0
    %532 = vmatpush1.msra.mxu0 0.0
    %533 = vmatprep.subr.mxu0 0.0
    %534 = vmatpush1.msra.mxu0 0.0
    %535 = vmatprep.subr.mxu0 0.0
    %536 = vmatpush1.msra.mxu0 0.0
    %537 = vmatprep.subr.mxu0 0.0
    %538 = vmatpush1.msra.mxu0 0.0
    %539 = vmatprep.subr.mxu0 0.0
    %540 = vmatpush1.msra.mxu0 0.0
    %541 = vmatprep.subr.mxu0 0.0
    %542 = vmatpush1.msra.mxu0 0.0
    %543 = vmatprep.subr.mxu0 0.0
    %544 = vmatpush1.msra.mxu0 0.0
    %545 = vmatprep.subr.mxu0 0.0
    %546 = vmatpush1.msra.mxu0 0.0
    %547 = vmatprep.subr.mxu0 0.0
    %548 = vmatpush1.msra.mxu0 0.0
    %549 = vmatprep.subr.mxu0 0.0
    %550 = vmatpush1.msra.mxu0 0.0
    %551 = vmatprep.subr.mxu0 0.0
    %552 = vmatpush1.msra.mxu0 0.0
    %553 = vmatprep.subr.mxu0 0.0
    %554 = vmatpush1.msra.mxu0 0.0
    %555 = vmatprep.subr.mxu0 0.0
    %556 = vmatpush1.msra.mxu0 0.0
    %557 = vmatprep.subr.mxu0 0.0
    %558 = vmatpush1.msra.mxu0 %v525
    %559 = vmatprep.subr.mxu0 0.0
    %560 = vmatpush2.msra.mxu0 0.0
    %561 = vmatprep.subr.mxu0 0.0
    %562 = vmatpush2.msra.mxu0 0.0
    %563 = vmatprep.subr.mxu0 0.0
    %564 = vmatpush2.msra.mxu0 0.0
    %565 = vmatprep.subr.mxu0 0.0
    %566 = vmatpush2.msra.mxu0 0.0
    %567 = vmatprep.subr.mxu0 0.0
    %568 = vmatpush2.msra.mxu0 0.0
    %569 = vmatprep.subr.mxu0 0.0
    %570 = vmatpush2.msra.mxu0 0.0
    %571 = vmatprep.subr.mxu0 0.0
    %572 = vmatpush2.msra.mxu0 0.0
    %573 = vmatprep.subr.mxu0 0.0
    %574 = vmatpush2.msra.mxu0 0.0
    %575 = vmatprep.subr.mxu0 0.0
    %576 = vmatpush2.msra.mxu0 0.0
    %577 = vmatprep.subr.mxu0 0.0
    %578 = vmatpush2.msra.mxu0 0.0
    %579 = vmatprep.subr.mxu0 0.0
    %580 = vmatpush2.msra.mxu0 0.0
    %581 = vmatprep.subr.mxu0 0.0
    %582 = vmatpush2.msra.mxu0 0.0
    %583 = vmatprep.subr.mxu0 0.0
    %584 = vmatpush2.msra.mxu0 0.0
    %585 = vmatprep.subr.mxu0 0.0
    %586 = vmatpush2.msra.mxu0 0.0
    %587 = vmatprep.subr.mxu0 0.0
    %588 = vmatpush2.msra.mxu0 0.0
    %589 = vmatprep.subr.mxu0 0.0
    %590 = vmatpush2.msra.mxu0 0.0
    %591 = vmatprep.mubr.f32.mxu0 0.0
    %592 = vmatmul.mubr.f32.gmra.mxu0 %v198
    %v593 = vpop.f32.mrf.mxu0
    %v594 = vadd.f32 %v193, %v593
    %v595 = vpop.f32.mrf.mxu0
    %596 = vmatprep.mubr.f32.mxu0 0.0
    %597 = vmatmul.mubr.f32.gmra.mxu0 %v201
    %v598 = vpop.f32.mrf.mxu0
    %v599 = vadd.f32 %v194, %v598
    %v600 = vpop.f32.mrf.mxu0
    %601 = vdwg.mxu0
    %s602 = scalar_lea.vmem %s0, 40
    %v603 = vld [vmem:[%s602] sm:$0x3f]
    %v605 = vsel %vm203, %v603, 0
    %607 = vmatprep.subr.mxu0 0.0
    %608 = vmatpush1.msra.mxu0 0.0
    %609 = vmatprep.subr.mxu0 0.0
    %610 = vmatpush1.msra.mxu0 0.0
    %611 = vmatprep.subr.mxu0 0.0
    %612 = vmatpush1.msra.mxu0 0.0
    %613 = vmatprep.subr.mxu0 0.0
    %614 = vmatpush1.msra.mxu0 0.0
    %615 = vmatprep.subr.mxu0 0.0
    %616 = vmatpush1.msra.mxu0 0.0
    %617 = vmatprep.subr.mxu0 0.0
    %618 = vmatpush1.msra.mxu0 0.0
    %619 = vmatprep.subr.mxu0 0.0
    %620 = vmatpush1.msra.mxu0 0.0
    %621 = vmatprep.subr.mxu0 0.0
    %622 = vmatpush1.msra.mxu0 0.0
    %623 = vmatprep.subr.mxu0 0.0
    %624 = vmatpush1.msra.mxu0 0.0
    %625 = vmatprep.subr.mxu0 0.0
    %626 = vmatpush1.msra.mxu0 0.0
    %627 = vmatprep.subr.mxu0 0.0
    %628 = vmatpush1.msra.mxu0 0.0
    %629 = vmatprep.subr.mxu0 0.0
    %630 = vmatpush1.msra.mxu0 0.0
    %631 = vmatprep.subr.mxu0 0.0
    %632 = vmatpush1.msra.mxu0 0.0
    %633 = vmatprep.subr.mxu0 0.0
    %634 = vmatpush1.msra.mxu0 0.0
    %635 = vmatprep.subr.mxu0 0.0
    %636 = vmatpush1.msra.mxu0 0.0
    %637 = vmatprep.subr.mxu0 0.0
    %638 = vmatpush1.msra.mxu0 %v605
    %639 = vmatprep.subr.mxu0 0.0
    %640 = vmatpush2.msra.mxu0 0.0
    %641 = vmatprep.subr.mxu0 0.0
    %642 = vmatpush2.msra.mxu0 0.0
    %643 = vmatprep.subr.mxu0 0.0
    %644 = vmatpush2.msra.mxu0 0.0
    %645 = vmatprep.subr.mxu0 0.0
    %646 = vmatpush2.msra.mxu0 0.0
    %647 = vmatprep.subr.mxu0 0.0
    %648 = vmatpush2.msra.mxu0 0.0
    %649 = vmatprep.subr.mxu0 0.0
    %650 = vmatpush2.msra.mxu0 0.0
    %651 = vmatprep.subr.mxu0 0.0
    %652 = vmatpush2.msra.mxu0 0.0
    %653 = vmatprep.subr.mxu0 0.0
    %654 = vmatpush2.msra.mxu0 0.0
    %655 = vmatprep.subr.mxu0 0.0
    %656 = vmatpush2.msra.mxu0 0.0
    %657 = vmatprep.subr.mxu0 0.0
    %658 = vmatpush2.msra.mxu0 0.0
    %659 = vmatprep.subr.mxu0 0.0
    %660 = vmatpush2.msra.mxu0 0.0
    %661 = vmatprep.subr.mxu0 0.0
    %662 = vmatpush2.msra.mxu0 0.0
    %663 = vmatprep.subr.mxu0 0.0
    %664 = vmatpush2.msra.mxu0 0.0
    %665 = vmatprep.subr.mxu0 0.0
    %666 = vmatpush2.msra.mxu0 0.0
    %667 = vmatprep.subr.mxu0 0.0
    %668 = vmatpush2.msra.mxu0 0.0
    %669 = vmatprep.subr.mxu0 0.0
    %670 = vmatpush2.msra.mxu0 0.0
    %671 = vmatprep.mubr.f32.mxu0 0.0
    %672 = vmatmul.mubr.f32.gmra.mxu0 %v198
    %v673 = vpop.f32.mrf.mxu0
    %v674 = vadd.f32 %v193, %v673
    %v675 = vpop.f32.mrf.mxu0
    %676 = vmatprep.mubr.f32.mxu0 0.0
    %677 = vmatmul.mubr.f32.gmra.mxu0 %v201
    %v678 = vpop.f32.mrf.mxu0
    %v679 = vadd.f32 %v194, %v678
    %v680 = vpop.f32.mrf.mxu0
    %681 = vdwg.mxu0
    %s682 = scalar_lea.vmem %s0, 48
    %v683 = vld [vmem:[%s682] sm:$0x3f]
    %v685 = vsel %vm203, %v683, 0
    %687 = vmatprep.subr.mxu0 0.0
    %688 = vmatpush1.msra.mxu0 0.0
    %689 = vmatprep.subr.mxu0 0.0
    %690 = vmatpush1.msra.mxu0 0.0
    %691 = vmatprep.subr.mxu0 0.0
    %692 = vmatpush1.msra.mxu0 0.0
    %693 = vmatprep.subr.mxu0 0.0
    %694 = vmatpush1.msra.mxu0 0.0
    %695 = vmatprep.subr.mxu0 0.0
    %696 = vmatpush1.msra.mxu0 0.0
    %697 = vmatprep.subr.mxu0 0.0
    %698 = vmatpush1.msra.mxu0 0.0
    %699 = vmatprep.subr.mxu0 0.0
    %700 = vmatpush1.msra.mxu0 0.0
    %701 = vmatprep.subr.mxu0 0.0
    %702 = vmatpush1.msra.mxu0 0.0
    %703 = vmatprep.subr.mxu0 0.0
    %704 = vmatpush1.msra.mxu0 0.0
    %705 = vmatprep.subr.mxu0 0.0
    %706 = vmatpush1.msra.mxu0 0.0
    %707 = vmatprep.subr.mxu0 0.0
    %708 = vmatpush1.msra.mxu0 0.0
    %709 = vmatprep.subr.mxu0 0.0
    %710 = vmatpush1.msra.mxu0 0.0
    %711 = vmatprep.subr.mxu0 0.0
    %712 = vmatpush1.msra.mxu0 0.0
    %713 = vmatprep.subr.mxu0 0.0
    %714 = vmatpush1.msra.mxu0 0.0
    %715 = vmatprep.subr.mxu0 0.0
    %716 = vmatpush1.msra.mxu0 0.0
    %717 = vmatprep.subr.mxu0 0.0
    %718 = vmatpush1.msra.mxu0 %v685
    %719 = vmatprep.subr.mxu0 0.0
    %720 = vmatpush2.msra.mxu0 0.0
    %721 = vmatprep.subr.mxu0 0.0
    %722 = vmatpush2.msra.mxu0 0.0
    %723 = vmatprep.subr.mxu0 0.0
    %724 = vmatpush2.msra.mxu0 0.0
    %725 = vmatprep.subr.mxu0 0.0
    %726 = vmatpush2.msra.mxu0 0.0
    %727 = vmatprep.subr.mxu0 0.0
    %728 = vmatpush2.msra.mxu0 0.0
    %729 = vmatprep.subr.mxu0 0.0
    %730 = vmatpush2.msra.mxu0 0.0
    %731 = vmatprep.subr.mxu0 0.0
    %732 = vmatpush2.msra.mxu0 0.0
    %733 = vmatprep.subr.mxu0 0.0
    %734 = vmatpush2.msra.mxu0 0.0
    %735 = vmatprep.subr.mxu0 0.0
    %736 = vmatpush2.msra.mxu0 0.0
    %737 = vmatprep.subr.mxu0 0.0
    %738 = vmatpush2.msra.mxu0 0.0
    %739 = vmatprep.subr.mxu0 0.0
    %740 = vmatpush2.msra.mxu0 0.0
    %741 = vmatprep.subr.mxu0 0.0
    %742 = vmatpush2.msra.mxu0 0.0
    %743 = vmatprep.subr.mxu0 0.0
    %744 = vmatpush2.msra.mxu0 0.0
    %745 = vmatprep.subr.mxu0 0.0
    %746 = vmatpush2.msra.mxu0 0.0
    %747 = vmatprep.subr.mxu0 0.0
    %748 = vmatpush2.msra.mxu0 0.0
    %749 = vmatprep.subr.mxu0 0.0
    %750 = vmatpush2.msra.mxu0 0.0
    %751 = vmatprep.mubr.f32.mxu0 0.0
    %752 = vmatmul.mubr.f32.gmra.mxu0 %v198
    %v753 = vpop.f32.mrf.mxu0
    %v754 = vadd.f32 %v193, %v753
    %v755 = vpop.f32.mrf.mxu0
    %756 = vmatprep.mubr.f32.mxu0 0.0
    %757 = vmatmul.mubr.f32.gmra.mxu0 %v201
    %v758 = vpop.f32.mrf.mxu0
    %v759 = vadd.f32 %v194, %v758
    %v760 = vpop.f32.mrf.mxu0
    %761 = vdwg.mxu0
    %s762 = scalar_lea.vmem %s0, 56
    %v763 = vld [vmem:[%s762] sm:$0x3f]
    %v765 = vsel %vm203, %v763, 0
    %767 = vmatprep.subr.mxu0 0.0
    %768 = vmatpush1.msra.mxu0 0.0
    %769 = vmatprep.subr.mxu0 0.0
    %770 = vmatpush1.msra.mxu0 0.0
    %771 = vmatprep.subr.mxu0 0.0
    %772 = vmatpush1.msra.mxu0 0.0
    %773 = vmatprep.subr.mxu0 0.0
    %774 = vmatpush1.msra.mxu0 0.0
    %775 = vmatprep.subr.mxu0 0.0
    %776 = vmatpush1.msra.mxu0 0.0
    %777 = vmatprep.subr.mxu0 0.0
    %778 = vmatpush1.msra.mxu0 0.0
    %779 = vmatprep.subr.mxu0 0.0
    %780 = vmatpush1.msra.mxu0 0.0
    %781 = vmatprep.subr.mxu0 0.0
    %782 = vmatpush1.msra.mxu0 0.0
    %783 = vmatprep.subr.mxu0 0.0
    %784 = vmatpush1.msra.mxu0 0.0
    %785 = vmatprep.subr.mxu0 0.0
    %786 = vmatpush1.msra.mxu0 0.0
    %787 = vmatprep.subr.mxu0 0.0
    %788 = vmatpush1.msra.mxu0 0.0
    %789 = vmatprep.subr.mxu0 0.0
    %790 = vmatpush1.msra.mxu0 0.0
    %791 = vmatprep.subr.mxu0 0.0
    %792 = vmatpush1.msra.mxu0 0.0
    %793 = vmatprep.subr.mxu0 0.0
    %794 = vmatpush1.msra.mxu0 0.0
    %795 = vmatprep.subr.mxu0 0.0
    %796 = vmatpush1.msra.mxu0 0.0
    %797 = vmatprep.subr.mxu0 0.0
    %798 = vmatpush1.msra.mxu0 %v765
    %799 = vmatprep.subr.mxu0 0.0
    %800 = vmatpush2.msra.mxu0 0.0
    %801 = vmatprep.subr.mxu0 0.0
    %802 = vmatpush2.msra.mxu0 0.0
    %803 = vmatprep.subr.mxu0 0.0
    %804 = vmatpush2.msra.mxu0 0.0
    %805 = vmatprep.subr.mxu0 0.0
    %806 = vmatpush2.msra.mxu0 0.0
    %807 = vmatprep.subr.mxu0 0.0
    %808 = vmatpush2.msra.mxu0 0.0
    %809 = vmatprep.subr.mxu0 0.0
    %810 = vmatpush2.msra.mxu0 0.0
    %811 = vmatprep.subr.mxu0 0.0
    %812 = vmatpush2.msra.mxu0 0.0
    %813 = vmatprep.subr.mxu0 0.0
    %814 = vmatpush2.msra.mxu0 0.0
    %815 = vmatprep.subr.mxu0 0.0
    %816 = vmatpush2.msra.mxu0 0.0
    %817 = vmatprep.subr.mxu0 0.0
    %818 = vmatpush2.msra.mxu0 0.0
    %819 = vmatprep.subr.mxu0 0.0
    %820 = vmatpush2.msra.mxu0 0.0
    %821 = vmatprep.subr.mxu0 0.0
    %822 = vmatpush2.msra.mxu0 0.0
    %823 = vmatprep.subr.mxu0 0.0
    %824 = vmatpush2.msra.mxu0 0.0
    %825 = vmatprep.subr.mxu0 0.0
    %826 = vmatpush2.msra.mxu0 0.0
    %827 = vmatprep.subr.mxu0 0.0
    %828 = vmatpush2.msra.mxu0 0.0
    %829 = vmatprep.subr.mxu0 0.0
    %830 = vmatpush2.msra.mxu0 0.0
    %831 = vmatprep.mubr.f32.mxu0 0.0
    %832 = vmatmul.mubr.f32.gmra.mxu0 %v198
    %v833 = vpop.f32.mrf.mxu0
    %v834 = vadd.f32 %v193, %v833
    %v835 = vpop.f32.mrf.mxu0
    %836 = vmatprep.mubr.f32.mxu0 0.0
    %837 = vmatmul.mubr.f32.gmra.mxu0 %v201
    %v838 = vpop.f32.mrf.mxu0
    %v839 = vadd.f32 %v194, %v838
    %v840 = vpop.f32.mrf.mxu0
    %841 = vdwg.mxu0
    %v842 = vld [vmem:[#allocation2] sm:$0xff]
    %v843 = vld [vmem:[#allocation2 + $0x8] sm:$0x3]
    %vm844 = vcmask 80896
    %v846 = vsel %vm844, %v161, 0
    %v849 = vsel %vm844, %v162, 0
    %vm851 = vcmask 1041408
    %v853 = vsel %vm851, %v843, 0
    %855 = vmatprep.subr.mxu0 0.0
    %856 = vmatpush1.msra.mxu0 0.0
    %857 = vmatprep.subr.mxu0 0.0
    %858 = vmatpush1.msra.mxu0 0.0
    %859 = vmatprep.subr.mxu0 0.0
    %860 = vmatpush1.msra.mxu0 0.0
    %861 = vmatprep.subr.mxu0 0.0
    %862 = vmatpush1.msra.mxu0 0.0
    %863 = vmatprep.subr.mxu0 0.0
    %864 = vmatpush1.msra.mxu0 0.0
    %865 = vmatprep.subr.mxu0 0.0
    %866 = vmatpush1.msra.mxu0 0.0
    %867 = vmatprep.subr.mxu0 0.0
    %868 = vmatpush1.msra.mxu0 0.0
    %869 = vmatprep.subr.mxu0 0.0
    %870 = vmatpush1.msra.mxu0 0.0
    %871 = vmatprep.subr.mxu0 0.0
    %872 = vmatpush1.msra.mxu0 0.0
    %873 = vmatprep.subr.mxu0 0.0
    %874 = vmatpush1.msra.mxu0 0.0
    %875 = vmatprep.subr.mxu0 0.0
    %876 = vmatpush1.msra.mxu0 0.0
    %877 = vmatprep.subr.mxu0 0.0
    %878 = vmatpush1.msra.mxu0 0.0
    %879 = vmatprep.subr.mxu0 0.0
    %880 = vmatpush1.msra.mxu0 0.0
    %881 = vmatprep.subr.mxu0 0.0
    %882 = vmatpush1.msra.mxu0 0.0
    %883 = vmatprep.subr.mxu0 0.0
    %884 = vmatpush1.msra.mxu0 %v853
    %885 = vmatprep.subr.mxu0 0.0
    %886 = vmatpush1.msra.mxu0 %v842
    %887 = vmatprep.subr.mxu0 0.0
    %888 = vmatpush2.msra.mxu0 0.0
    %889 = vmatprep.subr.mxu0 0.0
    %890 = vmatpush2.msra.mxu0 0.0
    %891 = vmatprep.subr.mxu0 0.0
    %892 = vmatpush2.msra.mxu0 0.0
    %893 = vmatprep.subr.mxu0 0.0
    %894 = vmatpush2.msra.mxu0 0.0
    %895 = vmatprep.subr.mxu0 0.0
    %896 = vmatpush2.msra.mxu0 0.0
    %897 = vmatprep.subr.mxu0 0.0
    %898 = vmatpush2.msra.mxu0 0.0
    %899 = vmatprep.subr.mxu0 0.0
    %900 = vmatpush2.msra.mxu0 0.0
    %901 = vmatprep.subr.mxu0 0.0
    %902 = vmatpush2.msra.mxu0 0.0
    %903 = vmatprep.subr.mxu0 0.0
    %904 = vmatpush2.msra.mxu0 0.0
    %905 = vmatprep.subr.mxu0 0.0
    %906 = vmatpush2.msra.mxu0 0.0
    %907 = vmatprep.subr.mxu0 0.0
    %908 = vmatpush2.msra.mxu0 0.0
    %909 = vmatprep.subr.mxu0 0.0
    %910 = vmatpush2.msra.mxu0 0.0
    %911 = vmatprep.subr.mxu0 0.0
    %912 = vmatpush2.msra.mxu0 0.0
    %913 = vmatprep.subr.mxu0 0.0
    %914 = vmatpush2.msra.mxu0 0.0
    %915 = vmatprep.subr.mxu0 0.0
    %916 = vmatpush2.msra.mxu0 0.0
    %917 = vmatprep.subr.mxu0 0.0
    %918 = vmatpush2.msra.mxu0 0.0
    %919 = vmatprep.mubr.f32.mxu0 0.0
    %920 = vmatmul.mubr.f32.gmra.mxu0 %v846
    %v921 = vpop.f32.mrf.mxu0
    %v922 = vadd.f32 %v274, %v921
    %v923 = vpop.f32.mrf.mxu0
    %924 = vmatprep.mubr.f32.mxu0 0.0
    %925 = vmatmul.mubr.f32.gmra.mxu0 %v849
    %v926 = vpop.f32.mrf.mxu0
    %v927 = vadd.f32 %v279, %v926
    %v928 = vpop.f32.mrf.mxu0
    %929 = vdwg.mxu0
    %v930 = vtanh.pop %v922
    %v931 = vtanh.pop %v927
    %v933 = vsel %vm844, %v165, 0
    %v936 = vsel %vm844, %v166, 0
    %v939 = vsel %vm851, %v931, 0
    %941 = vmatprep.subr.mxu0 0.0
    %942 = vmatpush1.msra.mxu0 0.0
    %943 = vmatprep.subr.mxu0 0.0
    %944 = vmatpush1.msra.mxu0 0.0
    %945 = vmatprep.subr.mxu0 0.0
    %946 = vmatpush1.msra.mxu0 0.0
    %947 = vmatprep.subr.mxu0 0.0
    %948 = vmatpush1.msra.mxu0 0.0
    %949 = vmatprep.subr.mxu0 0.0
    %950 = vmatpush1.msra.mxu0 0.0
    %951 = vmatprep.subr.mxu0 0.0
    %952 = vmatpush1.msra.mxu0 0.0
    %953 = vmatprep.subr.mxu0 0.0
    %954 = vmatpush1.msra.mxu0 0.0
    %955 = vmatprep.subr.mxu0 0.0
    %956 = vmatpush1.msra.mxu0 0.0
    %957 = vmatprep.subr.mxu0 0.0
    %958 = vmatpush1.msra.mxu0 0.0
    %959 = vmatprep.subr.mxu0 0.0
    %960 = vmatpush1.msra.mxu0 0.0
    %961 = vmatprep.subr.mxu0 0.0
    %962 = vmatpush1.msra.mxu0 0.0
    %963 = vmatprep.subr.mxu0 0.0
    %964 = vmatpush1.msra.mxu0 0.0
    %965 = vmatprep.subr.mxu0 0.0
    %966 = vmatpush1.msra.mxu0 0.0
    %967 = vmatprep.subr.mxu0 0.0
    %968 = vmatpush1.msra.mxu0 0.0
    %969 = vmatprep.subr.mxu0 0.0
    %970 = vmatpush1.msra.mxu0 %v939
    %971 = vmatprep.subr.mxu0 0.0
    %972 = vmatpush1.msra.mxu0 %v930
    %973 = vmatprep.subr.mxu0 0.0
    %974 = vmatpush2.msra.mxu0 0.0
    %975 = vmatprep.subr.mxu0 0.0
    %976 = vmatpush2.msra.mxu0 0.0
    %977 = vmatprep.subr.mxu0 0.0
    %978 = vmatpush2.msra.mxu0 0.0
    %979 = vmatprep.subr.mxu0 0.0
    %980 = vmatpush2.msra.mxu0 0.0
    %981 = vmatprep.subr.mxu0 0.0
    %982 = vmatpush2.msra.mxu0 0.0
    %983 = vmatprep.subr.mxu0 0.0
    %984 = vmatpush2.msra.mxu0 0.0
    %985 = vmatprep.subr.mxu0 0.0
    %986 = vmatpush2.msra.mxu0 0.0
    %987 = vmatprep.subr.mxu0 0.0
    %988 = vmatpush2.msra.mxu0 0.0
    %989 = vmatprep.subr.mxu0 0.0
    %990 = vmatpush2.msra.mxu0 0.0
    %991 = vmatprep.subr.mxu0 0.0
    %992 = vmatpush2.msra.mxu0 0.0
    %993 = vmatprep.subr.mxu0 0.0
    %994 = vmatpush2.msra.mxu0 0.0
    %995 = vmatprep.subr.mxu0 0.0
    %996 = vmatpush2.msra.mxu0 0.0
    %997 = vmatprep.subr.mxu0 0.0
    %998 = vmatpush2.msra.mxu0 0.0
    %999 = vmatprep.subr.mxu0 0.0
    %1000 = vmatpush2.msra.mxu0 0.0
    %1001 = vmatprep.subr.mxu0 0.0
    %1002 = vmatpush2.msra.mxu0 0.0
    %1003 = vmatprep.subr.mxu0 0.0
    %1004 = vmatpush2.msra.mxu0 0.0
    %1005 = vmatprep.mubr.f32.mxu0 0.0
    %1006 = vmatmul.mubr.f32.gmra.mxu0 %v933
    %v1007 = vpop.f32.mrf.mxu0
    %v1008 = vadd.f32 %v174, %v1007
    %v1009 = vpop.f32.mrf.mxu0
    %1010 = vmatprep.mubr.f32.mxu0 0.0
    %1011 = vmatmul.mubr.f32.gmra.mxu0 %v936
    %v1012 = vpop.f32.mrf.mxu0
    %v1013 = vadd.f32 %v179, %v1012
    %v1014 = vpop.f32.mrf.mxu0
    %1015 = vdwg.mxu0
    %v1016 = vtanh.pop %v1008
    %v1017 = vtanh.pop %v1013
    %v1019 = vsel %vm844, %v167, 0
    %v1022 = vsel %vm844, %v168, 0
    %v1025 = vsel %vm851, %v1017, 0
    %1027 = vmatprep.subr.mxu0 0.0
    %1028 = vmatpush1.msra.mxu0 0.0
    %1029 = vmatprep.subr.mxu0 0.0
    %1030 = vmatpush1.msra.mxu0 0.0
    %1031 = vmatprep.subr.mxu0 0.0
    %1032 = vmatpush1.msra.mxu0 0.0
    %1033 = vmatprep.subr.mxu0 0.0
    %1034 = vmatpush1.msra.mxu0 0.0
    %1035 = vmatprep.subr.mxu0 0.0
    %1036 = vmatpush1.msra.mxu0 0.0
    %1037 = vmatprep.subr.mxu0 0.0
    %1038 = vmatpush1.msra.mxu0 0.0
    %1039 = vmatprep.subr.mxu0 0.0
    %1040 = vmatpush1.msra.mxu0 0.0
    %1041 = vmatprep.subr.mxu0 0.0
    %1042 = vmatpush1.msra.mxu0 0.0
    %1043 = vmatprep.subr.mxu0 0.0
    %1044 = vmatpush1.msra.mxu0 0.0
    %1045 = vmatprep.subr.mxu0 0.0
    %1046 = vmatpush1.msra.mxu0 0.0
    %1047 = vmatprep.subr.mxu0 0.0
    %1048 = vmatpush1.msra.mxu0 0.0
    %1049 = vmatprep.subr.mxu0 0.0
    %1050 = vmatpush1.msra.mxu0 0.0
    %1051 = vmatprep.subr.mxu0 0.0
    %1052 = vmatpush1.msra.mxu0 0.0
    %1053 = vmatprep.subr.mxu0 0.0
    %1054 = vmatpush1.msra.mxu0 0.0
    %1055 = vmatprep.subr.mxu0 0.0
    %1056 = vmatpush1.msra.mxu0 %v1025
    %1057 = vmatprep.subr.mxu0 0.0
    %1058 = vmatpush1.msra.mxu0 %v1016
    %1059 = vmatprep.subr.mxu0 0.0
    %1060 = vmatpush2.msra.mxu0 0.0
    %1061 = vmatprep.subr.mxu0 0.0
    %1062 = vmatpush2.msra.mxu0 0.0
    %1063 = vmatprep.subr.mxu0 0.0
    %1064 = vmatpush2.msra.mxu0 0.0
    %1065 = vmatprep.subr.mxu0 0.0
    %1066 = vmatpush2.msra.mxu0 0.0
    %1067 = vmatprep.subr.mxu0 0.0
    %1068 = vmatpush2.msra.mxu0 0.0
    %1069 = vmatprep.subr.mxu0 0.0
    %1070 = vmatpush2.msra.mxu0 0.0
    %1071 = vmatprep.subr.mxu0 0.0
    %1072 = vmatpush2.msra.mxu0 0.0
    %1073 = vmatprep.subr.mxu0 0.0
    %1074 = vmatpush2.msra.mxu0 0.0
    %1075 = vmatprep.subr.mxu0 0.0
    %1076 = vmatpush2.msra.mxu0 0.0
    %1077 = vmatprep.subr.mxu0 0.0
    %1078 = vmatpush2.msra.mxu0 0.0
    %1079 = vmatprep.subr.mxu0 0.0
    %1080 = vmatpush2.msra.mxu0 0.0
    %1081 = vmatprep.subr.mxu0 0.0
    %1082 = vmatpush2.msra.mxu0 0.0
    %1083 = vmatprep.subr.mxu0 0.0
    %1084 = vmatpush2.msra.mxu0 0.0
    %1085 = vmatprep.subr.mxu0 0.0
    %1086 = vmatpush2.msra.mxu0 0.0
    %1087 = vmatprep.subr.mxu0 0.0
    %1088 = vmatpush2.msra.mxu0 0.0
    %1089 = vmatprep.subr.mxu0 0.0
    %1090 = vmatpush2.msra.mxu0 0.0
    %1091 = vmatprep.mubr.f32.mxu0 0.0
    %1092 = vmatmul.mubr.f32.gmra.mxu0 %v1019
    %v1093 = vpop.f32.mrf.mxu0
    %v1094 = vadd.f32 0.0, %v1093
    %v1095 = vpop.f32.mrf.mxu0
    %1096 = vmatprep.mubr.f32.mxu0 0.0
    %1097 = vmatmul.mubr.f32.gmra.mxu0 %v1022
    %v1098 = vpop.f32.mrf.mxu0
    %v1099 = vadd.f32 0.0, %v1098
    %v1100 = vpop.f32.mrf.mxu0
    %1101 = vdwg.mxu0
    %v1102 = vadd.f32 %v842, %v1094
    %v1103 = vadd.f32 %v843, %v1099
    %v1104 = vadd.f32 %v1102, %v186
    %v1105 = vadd.f32 %v1103, %v191
    %v1107 = vsel %vm851, %v1105, 0
    %1109 = vmatprep.subr.mxu0 0.0
    %1110 = vmatpush1.msra.mxu0 0.0
    %1111 = vmatprep.subr.mxu0 0.0
    %1112 = vmatpush1.msra.mxu0 0.0
    %1113 = vmatprep.subr.mxu0 0.0
    %1114 = vmatpush1.msra.mxu0 0.0
    %1115 = vmatprep.subr.mxu0 0.0
    %1116 = vmatpush1.msra.mxu0 0.0
    %1117 = vmatprep.subr.mxu0 0.0
    %1118 = vmatpush1.msra.mxu0 0.0
    %1119 = vmatprep.subr.mxu0 0.0
    %1120 = vmatpush1.msra.mxu0 0.0
    %1121 = vmatprep.subr.mxu0 0.0
    %1122 = vmatpush1.msra.mxu0 0.0
    %1123 = vmatprep.subr.mxu0 0.0
    %1124 = vmatpush1.msra.mxu0 0.0
    %1125 = vmatprep.subr.mxu0 0.0
    %1126 = vmatpush1.msra.mxu0 0.0
    %1127 = vmatprep.subr.mxu0 0.0
    %1128 = vmatpush1.msra.mxu0 0.0
    %1129 = vmatprep.subr.mxu0 0.0
    %1130 = vmatpush1.msra.mxu0 0.0
    %1131 = vmatprep.subr.mxu0 0.0
    %1132 = vmatpush1.msra.mxu0 0.0
    %1133 = vmatprep.subr.mxu0 0.0
    %1134 = vmatpush1.msra.mxu0 0.0
    %1135 = vmatprep.subr.mxu0 0.0
    %1136 = vmatpush1.msra.mxu0 0.0
    %1137 = vmatprep.subr.mxu0 0.0
    %1138 = vmatpush1.msra.mxu0 %v1107
    %1139 = vmatprep.subr.mxu0 0.0
    %1140 = vmatpush1.msra.mxu0 %v1104
    %1141 = vmatprep.subr.mxu0 0.0
    %1142 = vmatpush2.msra.mxu0 0.0
    %1143 = vmatprep.subr.mxu0 0.0
    %1144 = vmatpush2.msra.mxu0 0.0
    %1145 = vmatprep.subr.mxu0 0.0
    %1146 = vmatpush2.msra.mxu0 0.0
    %1147 = vmatprep.subr.mxu0 0.0
    %1148 = vmatpush2.msra.mxu0 0.0
    %1149 = vmatprep.subr.mxu0 0.0
    %1150 = vmatpush2.msra.mxu0 0.0
    %1151 = vmatprep.subr.mxu0 0.0
    %1152 = vmatpush2.msra.mxu0 0.0
    %1153 = vmatprep.subr.mxu0 0.0
    %1154 = vmatpush2.msra.mxu0 0.0
    %1155 = vmatprep.subr.mxu0 0.0
    %1156 = vmatpush2.msra.mxu0 0.0
    %1157 = vmatprep.subr.mxu0 0.0
    %1158 = vmatpush2.msra.mxu0 0.0
    %1159 = vmatprep.subr.mxu0 0.0
    %1160 = vmatpush2.msra.mxu0 0.0
    %1161 = vmatprep.subr.mxu0 0.0
    %1162 = vmatpush2.msra.mxu0 0.0
    %1163 = vmatprep.subr.mxu0 0.0
    %1164 = vmatpush2.msra.mxu0 0.0
    %1165 = vmatprep.subr.mxu0 0.0
    %1166 = vmatpush2.msra.mxu0 0.0
    %1167 = vmatprep.subr.mxu0 0.0
    %1168 = vmatpush2.msra.mxu0 0.0
    %1169 = vmatprep.subr.mxu0 0.0
    %1170 = vmatpush2.msra.mxu0 0.0
    %1171 = vmatprep.subr.mxu0 0.0
    %1172 = vmatpush2.msra.mxu0 0.0
    %1173 = vmatprep.mubr.f32.mxu0 0.0
    %1174 = vmatmul.mubr.f32.gmra.mxu0 %v846
    %v1175 = vpop.f32.mrf.mxu0
    %v1176 = vadd.f32 %v354, %v1175
    %v1177 = vpop.f32.mrf.mxu0
    %1178 = vmatprep.mubr.f32.mxu0 0.0
    %1179 = vmatmul.mubr.f32.gmra.mxu0 %v849
    %v1180 = vpop.f32.mrf.mxu0
    %v1181 = vadd.f32 %v359, %v1180
    %v1182 = vpop.f32.mrf.mxu0
    %1183 = vdwg.mxu0
    %v1184 = vtanh.pop %v1176
    %v1185 = vtanh.pop %v1181
    %v1187 = vsel %vm851, %v1185, 0
    %1189 = vmatprep.subr.mxu0 0.0
    %1190 = vmatpush1.msra.mxu0 0.0
    %1191 = vmatprep.subr.mxu0 0.0
    %1192 = vmatpush1.msra.mxu0 0.0
    %1193 = vmatprep.subr.mxu0 0.0
    %1194 = vmatpush1.msra.mxu0 0.0
    %1195 = vmatprep.subr.mxu0 0.0
    %1196 = vmatpush1.msra.mxu0 0.0
    %1197 = vmatprep.subr.mxu0 0.0
    %1198 = vmatpush1.msra.mxu0 0.0
    %1199 = vmatprep.subr.mxu0 0.0
    %1200 = vmatpush1.msra.mxu0 0.0
    %1201 = vmatprep.subr.mxu0 0.0
    %1202 = vmatpush1.msra.mxu0 0.0
    %1203 = vmatprep.subr.mxu0 0.0
    %1204 = vmatpush1.msra.mxu0 0.0
    %1205 = vmatprep.subr.mxu0 0.0
    %1206 = vmatpush1.msra.mxu0 0.0
    %1207 = vmatprep.subr.mxu0 0.0
    %1208 = vmatpush1.msra.mxu0 0.0
    %1209 = vmatprep.subr.mxu0 0.0
    %1210 = vmatpush1.msra.mxu0 0.0
    %1211 = vmatprep.subr.mxu0 0.0
    %1212 = vmatpush1.msra.mxu0 0.0
    %1213 = vmatprep.subr.mxu0 0.0
    %1214 = vmatpush1.msra.mxu0 0.0
    %1215 = vmatprep.subr.mxu0 0.0
    %1216 = vmatpush1.msra.mxu0 0.0
    %1217 = vmatprep.subr.mxu0 0.0
    %1218 = vmatpush1.msra.mxu0 %v1187
    %1219 = vmatprep.subr.mxu0 0.0
    %1220 = vmatpush1.msra.mxu0 %v1184
    %1221 = vmatprep.subr.mxu0 0.0
    %1222 = vmatpush2.msra.mxu0 0.0
    %1223 = vmatprep.subr.mxu0 0.0
    %1224 = vmatpush2.msra.mxu0 0.0
    %1225 = vmatprep.subr.mxu0 0.0
    %1226 = vmatpush2.msra.mxu0 0.0
    %1227 = vmatprep.subr.mxu0 0.0
    %1228 = vmatpush2.msra.mxu0 0.0
    %1229 = vmatprep.subr.mxu0 0.0
    %1230 = vmatpush2.msra.mxu0 0.0
    %1231 = vmatprep.subr.mxu0 0.0
    %1232 = vmatpush2.msra.mxu0 0.0
    %1233 = vmatprep.subr.mxu0 0.0
    %1234 = vmatpush2.msra.mxu0 0.0
    %1235 = vmatprep.subr.mxu0 0.0
    %1236 = vmatpush2.msra.mxu0 0.0
    %1237 = vmatprep.subr.mxu0 0.0
    %1238 = vmatpush2.msra.mxu0 0.0
    %1239 = vmatprep.subr.mxu0 0.0
    %1240 = vmatpush2.msra.mxu0 0.0
    %1241 = vmatprep.subr.mxu0 0.0
    %1242 = vmatpush2.msra.mxu0 0.0
    %1243 = vmatprep.subr.mxu0 0.0
    %1244 = vmatpush2.msra.mxu0 0.0
    %1245 = vmatprep.subr.mxu0 0.0
    %1246 = vmatpush2.msra.mxu0 0.0
    %1247 = vmatprep.subr.mxu0 0.0
    %1248 = vmatpush2.msra.mxu0 0.0
    %1249 = vmatprep.subr.mxu0 0.0
    %1250 = vmatpush2.msra.mxu0 0.0
    %1251 = vmatprep.subr.mxu0 0.0
    %1252 = vmatpush2.msra.mxu0 0.0
    %1253 = vmatprep.mubr.f32.mxu0 0.0
    %1254 = vmatmul.mubr.f32.gmra.mxu0 %v933
    %v1255 = vpop.f32.mrf.mxu0
    %v1256 = vadd.f32 %v174, %v1255
    %v1257 = vpop.f32.mrf.mxu0
    %1258 = vmatprep.mubr.f32.mxu0 0.0
    %1259 = vmatmul.mubr.f32.gmra.mxu0 %v936
    %v1260 = vpop.f32.mrf.mxu0
    %v1261 = vadd.f32 %v179, %v1260
    %v1262 = vpop.f32.mrf.mxu0
    %1263 = vdwg.mxu0
    %v1264 = vtanh.pop %v1256
    %v1265 = vtanh.pop %v1261
    %v1267 = vsel %vm851, %v1265, 0
    %1269 = vmatprep.subr.mxu0 0.0
    %1270 = vmatpush1.msra.mxu0 0.0
    %1271 = vmatprep.subr.mxu0 0.0
    %1272 = vmatpush1.msra.mxu0 0.0
    %1273 = vmatprep.subr.mxu0 0.0
    %1274 = vmatpush1.msra.mxu0 0.0
    %1275 = vmatprep.subr.mxu0 0.0
    %1276 = vmatpush1.msra.mxu0 0.0
    %1277 = vmatprep.subr.mxu0 0.0
    %1278 = vmatpush1.msra.mxu0 0.0
    %1279 = vmatprep.subr.mxu0 0.0
    %1280 = vmatpush1.msra.mxu0 0.0
    %1281 = vmatprep.subr.mxu0 0.0
    %1282 = vmatpush1.msra.mxu0 0.0
    %1283 = vmatprep.subr.mxu0 0.0
    %1284 = vmatpush1.msra.mxu0 0.0
    %1285 = vmatprep.subr.mxu0 0.0
    %1286 = vmatpush1.msra.mxu0 0.0
    %1287 = vmatprep.subr.mxu0 0.0
    %1288 = vmatpush1.msra.mxu0 0.0
    %1289 = vmatprep.subr.mxu0 0.0
    %1290 = vmatpush1.msra.mxu0 0.0
    %1291 = vmatprep.subr.mxu0 0.0
    %1292 = vmatpush1.msra.mxu0 0.0
    %1293 = vmatprep.subr.mxu0 0.0
    %1294 = vmatpush1.msra.mxu0 0.0
    %1295 = vmatprep.subr.mxu0 0.0
    %1296 = vmatpush1.msra.mxu0 0.0
    %1297 = vmatprep.subr.mxu0 0.0
    %1298 = vmatpush1.msra.mxu0 %v1267
    %1299 = vmatprep.subr.mxu0 0.0
    %1300 = vmatpush1.msra.mxu0 %v1264
    %1301 = vmatprep.subr.mxu0 0.0
    %1302 = vmatpush2.msra.mxu0 0.0
    %1303 = vmatprep.subr.mxu0 0.0
    %1304 = vmatpush2.msra.mxu0 0.0
    %1305 = vmatprep.subr.mxu0 0.0
    %1306 = vmatpush2.msra.mxu0 0.0
    %1307 = vmatprep.subr.mxu0 0.0
    %1308 = vmatpush2.msra.mxu0 0.0
    %1309 = vmatprep.subr.mxu0 0.0
    %1310 = vmatpush2.msra.mxu0 0.0
    %1311 = vmatprep.subr.mxu0 0.0
    %1312 = vmatpush2.msra.mxu0 0.0
    %1313 = vmatprep.subr.mxu0 0.0
    %1314 = vmatpush2.msra.mxu0 0.0
    %1315 = vmatprep.subr.mxu0 0.0
    %1316 = vmatpush2.msra.mxu0 0.0
    %1317 = vmatprep.subr.mxu0 0.0
    %1318 = vmatpush2.msra.mxu0 0.0
    %1319 = vmatprep.subr.mxu0 0.0
    %1320 = vmatpush2.msra.mxu0 0.0
    %1321 = vmatprep.subr.mxu0 0.0
    %1322 = vmatpush2.msra.mxu0 0.0
    %1323 = vmatprep.subr.mxu0 0.0
    %1324 = vmatpush2.msra.mxu0 0.0
    %1325 = vmatprep.subr.mxu0 0.0
    %1326 = vmatpush2.msra.mxu0 0.0
    %1327 = vmatprep.subr.mxu0 0.0
    %1328 = vmatpush2.msra.mxu0 0.0
    %1329 = vmatprep.subr.mxu0 0.0
    %1330 = vmatpush2.msra.mxu0 0.0
    %1331 = vmatprep.subr.mxu0 0.0
    %1332 = vmatpush2.msra.mxu0 0.0
    %1333 = vmatprep.mubr.f32.mxu0 0.0
    %1334 = vmatmul.mubr.f32.gmra.mxu0 %v1019
    %v1335 = vpop.f32.mrf.mxu0
    %v1336 = vadd.f32 0.0, %v1335
    %v1337 = vpop.f32.mrf.mxu0
    %1338 = vmatprep.mubr.f32.mxu0 0.0
    %1339 = vmatmul.mubr.f32.gmra.mxu0 %v1022
    %v1340 = vpop.f32.mrf.mxu0
    %v1341 = vadd.f32 0.0, %v1340
    %v1342 = vpop.f32.mrf.mxu0
    %1343 = vdwg.mxu0
    %v1344 = vadd.f32 %v1104, %v1336
    %v1345 = vadd.f32 %v1105, %v1341
    %v1346 = vadd.f32 %v1344, %v186
    %v1347 = vadd.f32 %v1345, %v191
    %v1349 = vsel %vm851, %v1347, 0
    %1351 = vmatprep.subr.mxu0 0.0
    %1352 = vmatpush1.msra.mxu0 0.0
    %1353 = vmatprep.subr.mxu0 0.0
    %1354 = vmatpush1.msra.mxu0 0.0
    %1355 = vmatprep.subr.mxu0 0.0
    %1356 = vmatpush1.msra.mxu0 0.0
    %1357 = vmatprep.subr.mxu0 0.0
    %1358 = vmatpush1.msra.mxu0 0.0
    %1359 = vmatprep.subr.mxu0 0.0
    %1360 = vmatpush1.msra.mxu0 0.0
    %1361 = vmatprep.subr.mxu0 0.0
    %1362 = vmatpush1.msra.mxu0 0.0
    %1363 = vmatprep.subr.mxu0 0.0
    %1364 = vmatpush1.msra.mxu0 0.0
    %1365 = vmatprep.subr.mxu0 0.0
    %1366 = vmatpush1.msra.mxu0 0.0
    %1367 = vmatprep.subr.mxu0 0.0
    %1368 = vmatpush1.msra.mxu0 0.0
    %1369 = vmatprep.subr.mxu0 0.0
    %1370 = vmatpush1.msra.mxu0 0.0
    %1371 = vmatprep.subr.mxu0 0.0
    %1372 = vmatpush1.msra.mxu0 0.0
    %1373 = vmatprep.subr.mxu0 0.0
    %1374 = vmatpush1.msra.mxu0 0.0
    %1375 = vmatprep.subr.mxu0 0.0
    %1376 = vmatpush1.msra.mxu0 0.0
    %1377 = vmatprep.subr.mxu0 0.0
    %1378 = vmatpush1.msra.mxu0 0.0
    %1379 = vmatprep.subr.mxu0 0.0
    %1380 = vmatpush1.msra.mxu0 %v1349
    %1381 = vmatprep.subr.mxu0 0.0
    %1382 = vmatpush1.msra.mxu0 %v1346
    %1383 = vmatprep.subr.mxu0 0.0
    %1384 = vmatpush2.msra.mxu0 0.0
    %1385 = vmatprep.subr.mxu0 0.0
    %1386 = vmatpush2.msra.mxu0 0.0
    %1387 = vmatprep.subr.mxu0 0.0
    %1388 = vmatpush2.msra.mxu0 0.0
    %1389 = vmatprep.subr.mxu0 0.0
    %1390 = vmatpush2.msra.mxu0 0.0
    %1391 = vmatprep.subr.mxu0 0.0
    %1392 = vmatpush2.msra.mxu0 0.0
    %1393 = vmatprep.subr.mxu0 0.0
    %1394 = vmatpush2.msra.mxu0 0.0
    %1395 = vmatprep.subr.mxu0 0.0
    %1396 = vmatpush2.msra.mxu0 0.0
    %1397 = vmatprep.subr.mxu0 0.0
    %1398 = vmatpush2.msra.mxu0 0.0
    %1399 = vmatprep.subr.mxu0 0.0
    %1400 = vmatpush2.msra.mxu0 0.0
    %1401 = vmatprep.subr.mxu0 0.0
    %1402 = vmatpush2.msra.mxu0 0.0
    %1403 = vmatprep.subr.mxu0 0.0
    %1404 = vmatpush2.msra.mxu0 0.0
    %1405 = vmatprep.subr.mxu0 0.0
    %1406 = vmatpush2.msra.mxu0 0.0
    %1407 = vmatprep.subr.mxu0 0.0
    %1408 = vmatpush2.msra.mxu0 0.0
    %1409 = vmatprep.subr.mxu0 0.0
    %1410 = vmatpush2.msra.mxu0 0.0
    %1411 = vmatprep.subr.mxu0 0.0
    %1412 = vmatpush2.msra.mxu0 0.0
    %1413 = vmatprep.subr.mxu0 0.0
    %1414 = vmatpush2.msra.mxu0 0.0
    %1415 = vmatprep.mubr.f32.mxu0 0.0
    %1416 = vmatmul.mubr.f32.gmra.mxu0 %v846
    %v1417 = vpop.f32.mrf.mxu0
    %v1418 = vadd.f32 %v434, %v1417
    %v1419 = vpop.f32.mrf.mxu0
    %1420 = vmatprep.mubr.f32.mxu0 0.0
    %1421 = vmatmul.mubr.f32.gmra.mxu0 %v849
    %v1422 = vpop.f32.mrf.mxu0
    %v1423 = vadd.f32 %v439, %v1422
    %v1424 = vpop.f32.mrf.mxu0
    %1425 = vdwg.mxu0
    %v1426 = vtanh.pop %v1418
    %v1427 = vtanh.pop %v1423
    %v1429 = vsel %vm851, %v1427, 0
    %1431 = vmatprep.subr.mxu0 0.0
    %1432 = vmatpush1.msra.mxu0 0.0
    %1433 = vmatprep.subr.mxu0 0.0
    %1434 = vmatpush1.msra.mxu0 0.0
    %1435 = vmatprep.subr.mxu0 0.0
    %1436 = vmatpush1.msra.mxu0 0.0
    %1437 = vmatprep.subr.mxu0 0.0
    %1438 = vmatpush1.msra.mxu0 0.0
    %1439 = vmatprep.subr.mxu0 0.0
    %1440 = vmatpush1.msra.mxu0 0.0
    %1441 = vmatprep.subr.mxu0 0.0
    %1442 = vmatpush1.msra.mxu0 0.0
    %1443 = vmatprep.subr.mxu0 0.0
    %1444 = vmatpush1.msra.mxu0 0.0
    %1445 = vmatprep.subr.mxu0 0.0
    %1446 = vmatpush1.msra.mxu0 0.0
    %1447 = vmatprep.subr.mxu0 0.0
    %1448 = vmatpush1.msra.mxu0 0.0
    %1449 = vmatprep.subr.mxu0 0.0
    %1450 = vmatpush1.msra.mxu0 0.0
    %1451 = vmatprep.subr.mxu0 0.0
    %1452 = vmatpush1.msra.mxu0 0.0
    %1453 = vmatprep.subr.mxu0 0.0
    %1454 = vmatpush1.msra.mxu0 0.0
    %1455 = vmatprep.subr.mxu0 0.0
    %1456 = vmatpush1.msra.mxu0 0.0
    %1457 = vmatprep.subr.mxu0 0.0
    %1458 = vmatpush1.msra.mxu0 0.0
    %1459 = vmatprep.subr.mxu0 0.0
    %1460 = vmatpush1.msra.mxu0 %v1429
    %1461 = vmatprep.subr.mxu0 0.0
    %1462 = vmatpush1.msra.mxu0 %v1426
    %1463 = vmatprep.subr.mxu0 0.0
    %1464 = vmatpush2.msra.mxu0 0.0
    %1465 = vmatprep.subr.mxu0 0.0
    %1466 = vmatpush2.msra.mxu0 0.0
    %1467 = vmatprep.subr.mxu0 0.0
    %1468 = vmatpush2.msra.mxu0 0.0
    %1469 = vmatprep.subr.mxu0 0.0
    %1470 = vmatpush2.msra.mxu0 0.0
    %1471 = vmatprep.subr.mxu0 0.0
    %1472 = vmatpush2.msra.mxu0 0.0
    %1473 = vmatprep.subr.mxu0 0.0
    %1474 = vmatpush2.msra.mxu0 0.0
    %1475 = vmatprep.subr.mxu0 0.0
    %1476 = vmatpush2.msra.mxu0 0.0
    %1477 = vmatprep.subr.mxu0 0.0
    %1478 = vmatpush2.msra.mxu0 0.0
    %1479 = vmatprep.subr.mxu0 0.0
    %1480 = vmatpush2.msra.mxu0 0.0
    %1481 = vmatprep.subr.mxu0 0.0
    %1482 = vmatpush2.msra.mxu0 0.0
    %1483 = vmatprep.subr.mxu0 0.0
    %1484 = vmatpush2.msra.mxu0 0.0
    %1485 = vmatprep.subr.mxu0 0.0
    %1486 = vmatpush2.msra.mxu0 0.0
    %1487 = vmatprep.subr.mxu0 0.0
    %1488 = vmatpush2.msra.mxu0 0.0
    %1489 = vmatprep.subr.mxu0 0.0
    %1490 = vmatpush2.msra.mxu0 0.0
    %1491 = vmatprep.subr.mxu0 0.0
    %1492 = vmatpush2.msra.mxu0 0.0
    %1493 = vmatprep.subr.mxu0 0.0
    %1494 = vmatpush2.msra.mxu0 0.0
    %1495 = vmatprep.mubr.f32.mxu0 0.0
    %1496 = vmatmul.mubr.f32.gmra.mxu0 %v933
    %v1497 = vpop.f32.mrf.mxu0
    %v1498 = vadd.f32 %v174, %v1497
    %v1499 = vpop.f32.mrf.mxu0
    %1500 = vmatprep.mubr.f32.mxu0 0.0
    %1501 = vmatmul.mubr.f32.gmra.mxu0 %v936
    %v1502 = vpop.f32.mrf.mxu0
    %v1503 = vadd.f32 %v179, %v1502
    %v1504 = vpop.f32.mrf.mxu0
    %1505 = vdwg.mxu0
    %v1506 = vtanh.pop %v1498
    %v1507 = vtanh.pop %v1503
    %v1509 = vsel %vm851, %v1507, 0
    %1511 = vmatprep.subr.mxu0 0.0
    %1512 = vmatpush1.msra.mxu0 0.0
    %1513 = vmatprep.subr.mxu0 0.0
    %1514 = vmatpush1.msra.mxu0 0.0
    %1515 = vmatprep.subr.mxu0 0.0
    %1516 = vmatpush1.msra.mxu0 0.0
    %1517 = vmatprep.subr.mxu0 0.0
    %1518 = vmatpush1.msra.mxu0 0.0
    %1519 = vmatprep.subr.mxu0 0.0
    %1520 = vmatpush1.msra.mxu0 0.0
    %1521 = vmatprep.subr.mxu0 0.0
    %1522 = vmatpush1.msra.mxu0 0.0
    %1523 = vmatprep.subr.mxu0 0.0
    %1524 = vmatpush1.msra.mxu0 0.0
    %1525 = vmatprep.subr.mxu0 0.0
    %1526 = vmatpush1.msra.mxu0 0.0
    %1527 = vmatprep.subr.mxu0 0.0
    %1528 = vmatpush1.msra.mxu0 0.0
    %1529 = vmatprep.subr.mxu0 0.0
    %1530 = vmatpush1.msra.mxu0 0.0
    %1531 = vmatprep.subr.mxu0 0.0
    %1532 = vmatpush1.msra.mxu0 0.0
    %1533 = vmatprep.subr.mxu0 0.0
    %1534 = vmatpush1.msra.mxu0 0.0
    %1535 = vmatprep.subr.mxu0 0.0
    %1536 = vmatpush1.msra.mxu0 0.0
    %1537 = vmatprep.subr.mxu0 0.0
    %1538 = vmatpush1.msra.mxu0 0.0
    %1539 = vmatprep.subr.mxu0 0.0
    %1540 = vmatpush1.msra.mxu0 %v1509
    %1541 = vmatprep.subr.mxu0 0.0
    %1542 = vmatpush1.msra.mxu0 %v1506
    %1543 = vmatprep.subr.mxu0 0.0
    %1544 = vmatpush2.msra.mxu0 0.0
    %1545 = vmatprep.subr.mxu0 0.0
    %1546 = vmatpush2.msra.mxu0 0.0
    %1547 = vmatprep.subr.mxu0 0.0
    %1548 = vmatpush2.msra.mxu0 0.0
    %1549 = vmatprep.subr.mxu0 0.0
    %1550 = vmatpush2.msra.mxu0 0.0
    %1551 = vmatprep.subr.mxu0 0.0
    %1552 = vmatpush2.msra.mxu0 0.0
    %1553 = vmatprep.subr.mxu0 0.0
    %1554 = vmatpush2.msra.mxu0 0.0
    %1555 = vmatprep.subr.mxu0 0.0
    %1556 = vmatpush2.msra.mxu0 0.0
    %1557 = vmatprep.subr.mxu0 0.0
    %1558 = vmatpush2.msra.mxu0 0.0
    %1559 = vmatprep.subr.mxu0 0.0
    %1560 = vmatpush2.msra.mxu0 0.0
    %1561 = vmatprep.subr.mxu0 0.0
    %1562 = vmatpush2.msra.mxu0 0.0
    %1563 = vmatprep.subr.mxu0 0.0
    %1564 = vmatpush2.msra.mxu0 0.0
    %1565 = vmatprep.subr.mxu0 0.0
    %1566 = vmatpush2.msra.mxu0 0.0
    %1567 = vmatprep.subr.mxu0 0.0
    %1568 = vmatpush2.msra.mxu0 0.0
    %1569 = vmatprep.subr.mxu0 0.0
    %1570 = vmatpush2.msra.mxu0 0.0
    %1571 = vmatprep.subr.mxu0 0.0
    %1572 = vmatpush2.msra.mxu0 0.0
    %1573 = vmatprep.subr.mxu0 0.0
    %1574 = vmatpush2.msra.mxu0 0.0
    %1575 = vmatprep.mubr.f32.mxu0 0.0
    %1576 = vmatmul.mubr.f32.gmra.mxu0 %v1019
    %v1577 = vpop.f32.mrf.mxu0
    %v1578 = vadd.f32 0.0, %v1577
    %v1579 = vpop.f32.mrf.mxu0
    %1580 = vmatprep.mubr.f32.mxu0 0.0
    %1581 = vmatmul.mubr.f32.gmra.mxu0 %v1022
    %v1582 = vpop.f32.mrf.mxu0
    %v1583 = vadd.f32 0.0, %v1582
    %v1584 = vpop.f32.mrf.mxu0
    %1585 = vdwg.mxu0
    %v1586 = vadd.f32 %v1346, %v1578
    %v1587 = vadd.f32 %v1347, %v1583
    %v1588 = vadd.f32 %v1586, %v186
    %v1589 = vadd.f32 %v1587, %v191
    %v1591 = vsel %vm851, %v1589, 0
    %1593 = vmatprep.subr.mxu0 0.0
    %1594 = vmatpush1.msra.mxu0 0.0
    %1595 = vmatprep.subr.mxu0 0.0
    %1596 = vmatpush1.msra.mxu0 0.0
    %1597 = vmatprep.subr.mxu0 0.0
    %1598 = vmatpush1.msra.mxu0 0.0
    %1599 = vmatprep.subr.mxu0 0.0
    %1600 = vmatpush1.msra.mxu0 0.0
    %1601 = vmatprep.subr.mxu0 0.0
    %1602 = vmatpush1.msra.mxu0 0.0
    %1603 = vmatprep.subr.mxu0 0.0
    %1604 = vmatpush1.msra.mxu0 0.0
    %1605 = vmatprep.subr.mxu0 0.0
    %1606 = vmatpush1.msra.mxu0 0.0
    %1607 = vmatprep.subr.mxu0 0.0
    %1608 = vmatpush1.msra.mxu0 0.0
    %1609 = vmatprep.subr.mxu0 0.0
    %1610 = vmatpush1.msra.mxu0 0.0
    %1611 = vmatprep.subr.mxu0 0.0
    %1612 = vmatpush1.msra.mxu0 0.0
    %1613 = vmatprep.subr.mxu0 0.0
    %1614 = vmatpush1.msra.mxu0 0.0
    %1615 = vmatprep.subr.mxu0 0.0
    %1616 = vmatpush1.msra.mxu0 0.0
    %1617 = vmatprep.subr.mxu0 0.0
    %1618 = vmatpush1.msra.mxu0 0.0
    %1619 = vmatprep.subr.mxu0 0.0
    %1620 = vmatpush1.msra.mxu0 0.0
    %1621 = vmatprep.subr.mxu0 0.0
    %1622 = vmatpush1.msra.mxu0 %v1591
    %1623 = vmatprep.subr.mxu0 0.0
    %1624 = vmatpush1.msra.mxu0 %v1588
    %1625 = vmatprep.subr.mxu0 0.0
    %1626 = vmatpush2.msra.mxu0 0.0
    %1627 = vmatprep.subr.mxu0 0.0
    %1628 = vmatpush2.msra.mxu0 0.0
    %1629 = vmatprep.subr.mxu0 0.0
    %1630 = vmatpush2.msra.mxu0 0.0
    %1631 = vmatprep.subr.mxu0 0.0
    %1632 = vmatpush2.msra.mxu0 0.0
    %1633 = vmatprep.subr.mxu0 0.0
    %1634 = vmatpush2.msra.mxu0 0.0
    %1635 = vmatprep.subr.mxu0 0.0
    %1636 = vmatpush2.msra.mxu0 0.0
    %1637 = vmatprep.subr.mxu0 0.0
    %1638 = vmatpush2.msra.mxu0 0.0
    %1639 = vmatprep.subr.mxu0 0.0
    %1640 = vmatpush2.msra.mxu0 0.0
    %1641 = vmatprep.subr.mxu0 0.0
    %1642 = vmatpush2.msra.mxu0 0.0
    %1643 = vmatprep.subr.mxu0 0.0
    %1644 = vmatpush2.msra.mxu0 0.0
    %1645 = vmatprep.subr.mxu0 0.0
    %1646 = vmatpush2.msra.mxu0 0.0
    %1647 = vmatprep.subr.mxu0 0.0
    %1648 = vmatpush2.msra.mxu0 0.0
    %1649 = vmatprep.subr.mxu0 0.0
    %1650 = vmatpush2.msra.mxu0 0.0
    %1651 = vmatprep.subr.mxu0 0.0
    %1652 = vmatpush2.msra.mxu0 0.0
    %1653 = vmatprep.subr.mxu0 0.0
    %1654 = vmatpush2.msra.mxu0 0.0
    %1655 = vmatprep.subr.mxu0 0.0
    %1656 = vmatpush2.msra.mxu0 0.0
    %1657 = vmatprep.mubr.f32.mxu0 0.0
    %1658 = vmatmul.mubr.f32.gmra.mxu0 %v846
    %v1659 = vpop.f32.mrf.mxu0
    %v1660 = vadd.f32 %v514, %v1659
    %v1661 = vpop.f32.mrf.mxu0
    %1662 = vmatprep.mubr.f32.mxu0 0.0
    %1663 = vmatmul.mubr.f32.gmra.mxu0 %v849
    %v1664 = vpop.f32.mrf.mxu0
    %v1665 = vadd.f32 %v519, %v1664
    %v1666 = vpop.f32.mrf.mxu0
    %1667 = vdwg.mxu0
    %v1668 = vtanh.pop %v1660
    %v1669 = vtanh.pop %v1665
    %v1671 = vsel %vm851, %v1669, 0
    %1673 = vmatprep.subr.mxu0 0.0
    %1674 = vmatpush1.msra.mxu0 0.0
    %1675 = vmatprep.subr.mxu0 0.0
    %1676 = vmatpush1.msra.mxu0 0.0
    %1677 = vmatprep.subr.mxu0 0.0
    %1678 = vmatpush1.msra.mxu0 0.0
    %1679 = vmatprep.subr.mxu0 0.0
    %1680 = vmatpush1.msra.mxu0 0.0
    %1681 = vmatprep.subr.mxu0 0.0
    %1682 = vmatpush1.msra.mxu0 0.0
    %1683 = vmatprep.subr.mxu0 0.0
    %1684 = vmatpush1.msra.mxu0 0.0
    %1685 = vmatprep.subr.mxu0 0.0
    %1686 = vmatpush1.msra.mxu0 0.0
    %1687 = vmatprep.subr.mxu0 0.0
    %1688 = vmatpush1.msra.mxu0 0.0
    %1689 = vmatprep.subr.mxu0 0.0
    %1690 = vmatpush1.msra.mxu0 0.0
    %1691 = vmatprep.subr.mxu0 0.0
    %1692 = vmatpush1.msra.mxu0 0.0
    %1693 = vmatprep.subr.mxu0 0.0
    %1694 = vmatpush1.msra.mxu0 0.0
    %1695 = vmatprep.subr.mxu0 0.0
    %1696 = vmatpush1.msra.mxu0 0.0
    %1697 = vmatprep.subr.mxu0 0.0
    %1698 = vmatpush1.msra.mxu0 0.0
    %1699 = vmatprep.subr.mxu0 0.0
    %1700 = vmatpush1.msra.mxu0 0.0
    %1701 = vmatprep.subr.mxu0 0.0
    %1702 = vmatpush1.msra.mxu0 %v1671
    %1703 = vmatprep.subr.mxu0 0.0
    %1704 = vmatpush1.msra.mxu0 %v1668
    %1705 = vmatprep.subr.mxu0 0.0
    %1706 = vmatpush2.msra.mxu0 0.0
    %1707 = vmatprep.subr.mxu0 0.0
    %1708 = vmatpush2.msra.mxu0 0.0
    %1709 = vmatprep.subr.mxu0 0.0
    %1710 = vmatpush2.msra.mxu0 0.0
    %1711 = vmatprep.subr.mxu0 0.0
    %1712 = vmatpush2.msra.mxu0 0.0
    %1713 = vmatprep.subr.mxu0 0.0
    %1714 = vmatpush2.msra.mxu0 0.0
    %1715 = vmatprep.subr.mxu0 0.0
    %1716 = vmatpush2.msra.mxu0 0.0
    %1717 = vmatprep.subr.mxu0 0.0
    %1718 = vmatpush2.msra.mxu0 0.0
    %1719 = vmatprep.subr.mxu0 0.0
    %1720 = vmatpush2.msra.mxu0 0.0
    %1721 = vmatprep.subr.mxu0 0.0
    %1722 = vmatpush2.msra.mxu0 0.0
    %1723 = vmatprep.subr.mxu0 0.0
    %1724 = vmatpush2.msra.mxu0 0.0
    %1725 = vmatprep.subr.mxu0 0.0
    %1726 = vmatpush2.msra.mxu0 0.0
    %1727 = vmatprep.subr.mxu0 0.0
    %1728 = vmatpush2.msra.mxu0 0.0
    %1729 = vmatprep.subr.mxu0 0.0
    %1730 = vmatpush2.msra.mxu0 0.0
    %1731 = vmatprep.subr.mxu0 0.0
    %1732 = vmatpush2.msra.mxu0 0.0
    %1733 = vmatprep.subr.mxu0 0.0
    %1734 = vmatpush2.msra.mxu0 0.0
    %1735 = vmatprep.subr.mxu0 0.0
    %1736 = vmatpush2.msra.mxu0 0.0
    %1737 = vmatprep.mubr.f32.mxu0 0.0
    %1738 = vmatmul.mubr.f32.gmra.mxu0 %v933
    %v1739 = vpop.f32.mrf.mxu0
    %v1740 = vadd.f32 %v174, %v1739
    %v1741 = vpop.f32.mrf.mxu0
    %1742 = vmatprep.mubr.f32.mxu0 0.0
    %1743 = vmatmul.mubr.f32.gmra.mxu0 %v936
    %v1744 = vpop.f32.mrf.mxu0
    %v1745 = vadd.f32 %v179, %v1744
    %v1746 = vpop.f32.mrf.mxu0
    %1747 = vdwg.mxu0
    %v1748 = vtanh.pop %v1740
    %v1749 = vtanh.pop %v1745
    %v1751 = vsel %vm851, %v1749, 0
    %1753 = vmatprep.subr.mxu0 0.0
    %1754 = vmatpush1.msra.mxu0 0.0
    %1755 = vmatprep.subr.mxu0 0.0
    %1756 = vmatpush1.msra.mxu0 0.0
    %1757 = vmatprep.subr.mxu0 0.0
    %1758 = vmatpush1.msra.mxu0 0.0
    %1759 = vmatprep.subr.mxu0 0.0
    %1760 = vmatpush1.msra.mxu0 0.0
    %1761 = vmatprep.subr.mxu0 0.0
    %1762 = vmatpush1.msra.mxu0 0.0
    %1763 = vmatprep.subr.mxu0 0.0
    %1764 = vmatpush1.msra.mxu0 0.0
    %1765 = vmatprep.subr.mxu0 0.0
    %1766 = vmatpush1.msra.mxu0 0.0
    %1767 = vmatprep.subr.mxu0 0.0
    %1768 = vmatpush1.msra.mxu0 0.0
    %1769 = vmatprep.subr.mxu0 0.0
    %1770 = vmatpush1.msra.mxu0 0.0
    %1771 = vmatprep.subr.mxu0 0.0
    %1772 = vmatpush1.msra.mxu0 0.0
    %1773 = vmatprep.subr.mxu0 0.0
    %1774 = vmatpush1.msra.mxu0 0.0
    %1775 = vmatprep.subr.mxu0 0.0
    %1776 = vmatpush1.msra.mxu0 0.0
    %1777 = vmatprep.subr.mxu0 0.0
    %1778 = vmatpush1.msra.mxu0 0.0
    %1779 = vmatprep.subr.mxu0 0.0
    %1780 = vmatpush1.msra.mxu0 0.0
    %1781 = vmatprep.subr.mxu0 0.0
    %1782 = vmatpush1.msra.mxu0 %v1751
    %1783 = vmatprep.subr.mxu0 0.0
    %1784 = vmatpush1.msra.mxu0 %v1748
    %1785 = vmatprep.subr.mxu0 0.0
    %1786 = vmatpush2.msra.mxu0 0.0
    %1787 = vmatprep.subr.mxu0 0.0
    %1788 = vmatpush2.msra.mxu0 0.0
    %1789 = vmatprep.subr.mxu0 0.0
    %1790 = vmatpush2.msra.mxu0 0.0
    %1791 = vmatprep.subr.mxu0 0.0
    %1792 = vmatpush2.msra.mxu0 0.0
    %1793 = vmatprep.subr.mxu0 0.0
    %1794 = vmatpush2.msra.mxu0 0.0
    %1795 = vmatprep.subr.mxu0 0.0
    %1796 = vmatpush2.msra.mxu0 0.0
    %1797 = vmatprep.subr.mxu0 0.0
    %1798 = vmatpush2.msra.mxu0 0.0
    %1799 = vmatprep.subr.mxu0 0.0
    %1800 = vmatpush2.msra.mxu0 0.0
    %1801 = vmatprep.subr.mxu0 0.0
    %1802 = vmatpush2.msra.mxu0 0.0
    %1803 = vmatprep.subr.mxu0 0.0
    %1804 = vmatpush2.msra.mxu0 0.0
    %1805 = vmatprep.subr.mxu0 0.0
    %1806 = vmatpush2.msra.mxu0 0.0
    %1807 = vmatprep.subr.mxu0 0.0
    %1808 = vmatpush2.msra.mxu0 0.0
    %1809 = vmatprep.subr.mxu0 0.0
    %1810 = vmatpush2.msra.mxu0 0.0
    %1811 = vmatprep.subr.mxu0 0.0
    %1812 = vmatpush2.msra.mxu0 0.0
    %1813 = vmatprep.subr.mxu0 0.0
    %1814 = vmatpush2.msra.mxu0 0.0
    %1815 = vmatprep.subr.mxu0 0.0
    %1816 = vmatpush2.msra.mxu0 0.0
    %1817 = vmatprep.mubr.f32.mxu0 0.0
    %1818 = vmatmul.mubr.f32.gmra.mxu0 %v1019
    %v1819 = vpop.f32.mrf.mxu0
    %v1820 = vadd.f32 0.0, %v1819
    %v1821 = vpop.f32.mrf.mxu0
    %1822 = vmatprep.mubr.f32.mxu0 0.0
    %1823 = vmatmul.mubr.f32.gmra.mxu0 %v1022
    %v1824 = vpop.f32.mrf.mxu0
    %v1825 = vadd.f32 0.0, %v1824
    %v1826 = vpop.f32.mrf.mxu0
    %1827 = vdwg.mxu0
    %v1828 = vadd.f32 %v1588, %v1820
    %v1829 = vadd.f32 %v1589, %v1825
    %v1830 = vadd.f32 %v1828, %v186
    %v1831 = vadd.f32 %v1829, %v191
    %v1833 = vsel %vm851, %v1831, 0
    %1835 = vmatprep.subr.mxu0 0.0
    %1836 = vmatpush1.msra.mxu0 0.0
    %1837 = vmatprep.subr.mxu0 0.0
    %1838 = vmatpush1.msra.mxu0 0.0
    %1839 = vmatprep.subr.mxu0 0.0
    %1840 = vmatpush1.msra.mxu0 0.0
    %1841 = vmatprep.subr.mxu0 0.0
    %1842 = vmatpush1.msra.mxu0 0.0
    %1843 = vmatprep.subr.mxu0 0.0
    %1844 = vmatpush1.msra.mxu0 0.0
    %1845 = vmatprep.subr.mxu0 0.0
    %1846 = vmatpush1.msra.mxu0 0.0
    %1847 = vmatprep.subr.mxu0 0.0
    %1848 = vmatpush1.msra.mxu0 0.0
    %1849 = vmatprep.subr.mxu0 0.0
    %1850 = vmatpush1.msra.mxu0 0.0
    %1851 = vmatprep.subr.mxu0 0.0
    %1852 = vmatpush1.msra.mxu0 0.0
    %1853 = vmatprep.subr.mxu0 0.0
    %1854 = vmatpush1.msra.mxu0 0.0
    %1855 = vmatprep.subr.mxu0 0.0
    %1856 = vmatpush1.msra.mxu0 0.0
    %1857 = vmatprep.subr.mxu0 0.0
    %1858 = vmatpush1.msra.mxu0 0.0
    %1859 = vmatprep.subr.mxu0 0.0
    %1860 = vmatpush1.msra.mxu0 0.0
    %1861 = vmatprep.subr.mxu0 0.0
    %1862 = vmatpush1.msra.mxu0 0.0
    %1863 = vmatprep.subr.mxu0 0.0
    %1864 = vmatpush1.msra.mxu0 %v1833
    %1865 = vmatprep.subr.mxu0 0.0
    %1866 = vmatpush1.msra.mxu0 %v1830
    %1867 = vmatprep.subr.mxu0 0.0
    %1868 = vmatpush2.msra.mxu0 0.0
    %1869 = vmatprep.subr.mxu0 0.0
    %1870 = vmatpush2.msra.mxu0 0.0
    %1871 = vmatprep.subr.mxu0 0.0
    %1872 = vmatpush2.msra.mxu0 0.0
    %1873 = vmatprep.subr.mxu0 0.0
    %1874 = vmatpush2.msra.mxu0 0.0
    %1875 = vmatprep.subr.mxu0 0.0
    %1876 = vmatpush2.msra.mxu0 0.0
    %1877 = vmatprep.subr.mxu0 0.0
    %1878 = vmatpush2.msra.mxu0 0.0
    %1879 = vmatprep.subr.mxu0 0.0
    %1880 = vmatpush2.msra.mxu0 0.0
    %1881 = vmatprep.subr.mxu0 0.0
    %1882 = vmatpush2.msra.mxu0 0.0
    %1883 = vmatprep.subr.mxu0 0.0
    %1884 = vmatpush2.msra.mxu0 0.0
    %1885 = vmatprep.subr.mxu0 0.0
    %1886 = vmatpush2.msra.mxu0 0.0
    %1887 = vmatprep.subr.mxu0 0.0
    %1888 = vmatpush2.msra.mxu0 0.0
    %1889 = vmatprep.subr.mxu0 0.0
    %1890 = vmatpush2.msra.mxu0 0.0
    %1891 = vmatprep.subr.mxu0 0.0
    %1892 = vmatpush2.msra.mxu0 0.0
    %1893 = vmatprep.subr.mxu0 0.0
    %1894 = vmatpush2.msra.mxu0 0.0
    %1895 = vmatprep.subr.mxu0 0.0
    %1896 = vmatpush2.msra.mxu0 0.0
    %1897 = vmatprep.subr.mxu0 0.0
    %1898 = vmatpush2.msra.mxu0 0.0
    %1899 = vmatprep.mubr.f32.mxu0 0.0
    %1900 = vmatmul.mubr.f32.gmra.mxu0 %v846
    %v1901 = vpop.f32.mrf.mxu0
    %v1902 = vadd.f32 %v594, %v1901
    %v1903 = vpop.f32.mrf.mxu0
    %1904 = vmatprep.mubr.f32.mxu0 0.0
    %1905 = vmatmul.mubr.f32.gmra.mxu0 %v849
    %v1906 = vpop.f32.mrf.mxu0
    %v1907 = vadd.f32 %v599, %v1906
    %v1908 = vpop.f32.mrf.mxu0
    %1909 = vdwg.mxu0
    %v1910 = vtanh.pop %v1902
    %v1911 = vtanh.pop %v1907
    %v1913 = vsel %vm851, %v1911, 0
    %1915 = vmatprep.subr.mxu0 0.0
    %1916 = vmatpush1.msra.mxu0 0.0
    %1917 = vmatprep.subr.mxu0 0.0
    %1918 = vmatpush1.msra.mxu0 0.0
    %1919 = vmatprep.subr.mxu0 0.0
    %1920 = vmatpush1.msra.mxu0 0.0
    %1921 = vmatprep.subr.mxu0 0.0
    %1922 = vmatpush1.msra.mxu0 0.0
    %1923 = vmatprep.subr.mxu0 0.0
    %1924 = vmatpush1.msra.mxu0 0.0
    %1925 = vmatprep.subr.mxu0 0.0
    %1926 = vmatpush1.msra.mxu0 0.0
    %1927 = vmatprep.subr.mxu0 0.0
    %1928 = vmatpush1.msra.mxu0 0.0
    %1929 = vmatprep.subr.mxu0 0.0
    %1930 = vmatpush1.msra.mxu0 0.0
    %1931 = vmatprep.subr.mxu0 0.0
    %1932 = vmatpush1.msra.mxu0 0.0
    %1933 = vmatprep.subr.mxu0 0.0
    %1934 = vmatpush1.msra.mxu0 0.0
    %1935 = vmatprep.subr.mxu0 0.0
    %1936 = vmatpush1.msra.mxu0 0.0
    %1937 = vmatprep.subr.mxu0 0.0
    %1938 = vmatpush1.msra.mxu0 0.0
    %1939 = vmatprep.subr.mxu0 0.0
    %1940 = vmatpush1.msra.mxu0 0.0
    %1941 = vmatprep.subr.mxu0 0.0
    %1942 = vmatpush1.msra.mxu0 0.0
    %1943 = vmatprep.subr.mxu0 0.0
    %1944 = vmatpush1.msra.mxu0 %v1913
    %1945 = vmatprep.subr.mxu0 0.0
    %1946 = vmatpush1.msra.mxu0 %v1910
    %1947 = vmatprep.subr.mxu0 0.0
    %1948 = vmatpush2.msra.mxu0 0.0
    %1949 = vmatprep.subr.mxu0 0.0
    %1950 = vmatpush2.msra.mxu0 0.0
    %1951 = vmatprep.subr.mxu0 0.0
    %1952 = vmatpush2.msra.mxu0 0.0
    %1953 = vmatprep.subr.mxu0 0.0
    %1954 = vmatpush2.msra.mxu0 0.0
    %1955 = vmatprep.subr.mxu0 0.0
    %1956 = vmatpush2.msra.mxu0 0.0
    %1957 = vmatprep.subr.mxu0 0.0
    %1958 = vmatpush2.msra.mxu0 0.0
    %1959 = vmatprep.subr.mxu0 0.0
    %1960 = vmatpush2.msra.mxu0 0.0
    %1961 = vmatprep.subr.mxu0 0.0
    %1962 = vmatpush2.msra.mxu0 0.0
    %1963 = vmatprep.subr.mxu0 0.0
    %1964 = vmatpush2.msra.mxu0 0.0
    %1965 = vmatprep.subr.mxu0 0.0
    %1966 = vmatpush2.msra.mxu0 0.0
    %1967 = vmatprep.subr.mxu0 0.0
    %1968 = vmatpush2.msra.mxu0 0.0
    %1969 = vmatprep.subr.mxu0 0.0
    %1970 = vmatpush2.msra.mxu0 0.0
    %1971 = vmatprep.subr.mxu0 0.0
    %1972 = vmatpush2.msra.mxu0 0.0
    %1973 = vmatprep.subr.mxu0 0.0
    %1974 = vmatpush2.msra.mxu0 0.0
    %1975 = vmatprep.subr.mxu0 0.0
    %1976 = vmatpush2.msra.mxu0 0.0
    %1977 = vmatprep.subr.mxu0 0.0
    %1978 = vmatpush2.msra.mxu0 0.0
    %1979 = vmatprep.mubr.f32.mxu0 0.0
    %1980 = vmatmul.mubr.f32.gmra.mxu0 %v933
    %v1981 = vpop.f32.mrf.mxu0
    %v1982 = vadd.f32 %v174, %v1981
    %v1983 = vpop.f32.mrf.mxu0
    %1984 = vmatprep.mubr.f32.mxu0 0.0
    %1985 = vmatmul.mubr.f32.gmra.mxu0 %v936
    %v1986 = vpop.f32.mrf.mxu0
    %v1987 = vadd.f32 %v179, %v1986
    %v1988 = vpop.f32.mrf.mxu0
    %1989 = vdwg.mxu0
    %v1990 = vtanh.pop %v1982
    %v1991 = vtanh.pop %v1987
    %v1993 = vsel %vm851, %v1991, 0
    %1995 = vmatprep.subr.mxu0 0.0
    %1996 = vmatpush1.msra.mxu0 0.0
    %1997 = vmatprep.subr.mxu0 0.0
    %1998 = vmatpush1.msra.mxu0 0.0
    %1999 = vmatprep.subr.mxu0 0.0
    %2000 = vmatpush1.msra.mxu0 0.0
    %2001 = vmatprep.subr.mxu0 0.0
    %2002 = vmatpush1.msra.mxu0 0.0
    %2003 = vmatprep.subr.mxu0 0.0
    %2004 = vmatpush1.msra.mxu0 0.0
    %2005 = vmatprep.subr.mxu0 0.0
    %2006 = vmatpush1.msra.mxu0 0.0
    %2007 = vmatprep.subr.mxu0 0.0
    %2008 = vmatpush1.msra.mxu0 0.0
    %2009 = vmatprep.subr.mxu0 0.0
    %2010 = vmatpush1.msra.mxu0 0.0
    %2011 = vmatprep.subr.mxu0 0.0
    %2012 = vmatpush1.msra.mxu0 0.0
    %2013 = vmatprep.subr.mxu0 0.0
    %2014 = vmatpush1.msra.mxu0 0.0
    %2015 = vmatprep.subr.mxu0 0.0
    %2016 = vmatpush1.msra.mxu0 0.0
    %2017 = vmatprep.subr.mxu0 0.0
    %2018 = vmatpush1.msra.mxu0 0.0
    %2019 = vmatprep.subr.mxu0 0.0
    %2020 = vmatpush1.msra.mxu0 0.0
    %2021 = vmatprep.subr.mxu0 0.0
    %2022 = vmatpush1.msra.mxu0 0.0
    %2023 = vmatprep.subr.mxu0 0.0
    %2024 = vmatpush1.msra.mxu0 %v1993
    %2025 = vmatprep.subr.mxu0 0.0
    %2026 = vmatpush1.msra.mxu0 %v1990
    %2027 = vmatprep.subr.mxu0 0.0
    %2028 = vmatpush2.msra.mxu0 0.0
    %2029 = vmatprep.subr.mxu0 0.0
    %2030 = vmatpush2.msra.mxu0 0.0
    %2031 = vmatprep.subr.mxu0 0.0
    %2032 = vmatpush2.msra.mxu0 0.0
    %2033 = vmatprep.subr.mxu0 0.0
    %2034 = vmatpush2.msra.mxu0 0.0
    %2035 = vmatprep.subr.mxu0 0.0
    %2036 = vmatpush2.msra.mxu0 0.0
    %2037 = vmatprep.subr.mxu0 0.0
    %2038 = vmatpush2.msra.mxu0 0.0
    %2039 = vmatprep.subr.mxu0 0.0
    %2040 = vmatpush2.msra.mxu0 0.0
    %2041 = vmatprep.subr.mxu0 0.0
    %2042 = vmatpush2.msra.mxu0 0.0
    %2043 = vmatprep.subr.mxu0 0.0
    %2044 = vmatpush2.msra.mxu0 0.0
    %2045 = vmatprep.subr.mxu0 0.0
    %2046 = vmatpush2.msra.mxu0 0.0
    %2047 = vmatprep.subr.mxu0 0.0
    %2048 = vmatpush2.msra.mxu0 0.0
    %2049 = vmatprep.subr.mxu0 0.0
    %2050 = vmatpush2.msra.mxu0 0.0
    %2051 = vmatprep.subr.mxu0 0.0
    %2052 = vmatpush2.msra.mxu0 0.0
    %2053 = vmatprep.subr.mxu0 0.0
    %2054 = vmatpush2.msra.mxu0 0.0
    %2055 = vmatprep.subr.mxu0 0.0
    %2056 = vmatpush2.msra.mxu0 0.0
    %2057 = vmatprep.subr.mxu0 0.0
    %2058 = vmatpush2.msra.mxu0 0.0
    %2059 = vmatprep.mubr.f32.mxu0 0.0
    %2060 = vmatmul.mubr.f32.gmra.mxu0 %v1019
    %v2061 = vpop.f32.mrf.mxu0
    %v2062 = vadd.f32 0.0, %v2061
    %v2063 = vpop.f32.mrf.mxu0
    %2064 = vmatprep.mubr.f32.mxu0 0.0
    %2065 = vmatmul.mubr.f32.gmra.mxu0 %v1022
    %v2066 = vpop.f32.mrf.mxu0
    %v2067 = vadd.f32 0.0, %v2066
    %v2068 = vpop.f32.mrf.mxu0
    %2069 = vdwg.mxu0
    %v2070 = vadd.f32 %v1830, %v2062
    %v2071 = vadd.f32 %v1831, %v2067
    %v2072 = vadd.f32 %v2070, %v186
    %v2073 = vadd.f32 %v2071, %v191
    %v2075 = vsel %vm851, %v2073, 0
    %2077 = vmatprep.subr.mxu0 0.0
    %2078 = vmatpush1.msra.mxu0 0.0
    %2079 = vmatprep.subr.mxu0 0.0
    %2080 = vmatpush1.msra.mxu0 0.0
    %2081 = vmatprep.subr.mxu0 0.0
    %2082 = vmatpush1.msra.mxu0 0.0
    %2083 = vmatprep.subr.mxu0 0.0
    %2084 = vmatpush1.msra.mxu0 0.0
    %2085 = vmatprep.subr.mxu0 0.0
    %2086 = vmatpush1.msra.mxu0 0.0
    %2087 = vmatprep.subr.mxu0 0.0
    %2088 = vmatpush1.msra.mxu0 0.0
    %2089 = vmatprep.subr.mxu0 0.0
    %2090 = vmatpush1.msra.mxu0 0.0
    %2091 = vmatprep.subr.mxu0 0.0
    %2092 = vmatpush1.msra.mxu0 0.0
    %2093 = vmatprep.subr.mxu0 0.0
    %2094 = vmatpush1.msra.mxu0 0.0
    %2095 = vmatprep.subr.mxu0 0.0
    %2096 = vmatpush1.msra.mxu0 0.0
    %2097 = vmatprep.subr.mxu0 0.0
    %2098 = vmatpush1.msra.mxu0 0.0
    %2099 = vmatprep.subr.mxu0 0.0
    %2100 = vmatpush1.msra.mxu0 0.0
    %2101 = vmatprep.subr.mxu0 0.0
    %2102 = vmatpush1.msra.mxu0 0.0
    %2103 = vmatprep.subr.mxu0 0.0
    %2104 = vmatpush1.msra.mxu0 0.0
    %2105 = vmatprep.subr.mxu0 0.0
    %2106 = vmatpush1.msra.mxu0 %v2075
    %2107 = vmatprep.subr.mxu0 0.0
    %2108 = vmatpush1.msra.mxu0 %v2072
    %2109 = vmatprep.subr.mxu0 0.0
    %2110 = vmatpush2.msra.mxu0 0.0
    %2111 = vmatprep.subr.mxu0 0.0
    %2112 = vmatpush2.msra.mxu0 0.0
    %2113 = vmatprep.subr.mxu0 0.0
    %2114 = vmatpush2.msra.mxu0 0.0
    %2115 = vmatprep.subr.mxu0 0.0
    %2116 = vmatpush2.msra.mxu0 0.0
    %2117 = vmatprep.subr.mxu0 0.0
    %2118 = vmatpush2.msra.mxu0 0.0
    %2119 = vmatprep.subr.mxu0 0.0
    %2120 = vmatpush2.msra.mxu0 0.0
    %2121 = vmatprep.subr.mxu0 0.0
    %2122 = vmatpush2.msra.mxu0 0.0
    %2123 = vmatprep.subr.mxu0 0.0
    %2124 = vmatpush2.msra.mxu0 0.0
    %2125 = vmatprep.subr.mxu0 0.0
    %2126 = vmatpush2.msra.mxu0 0.0
    %2127 = vmatprep.subr.mxu0 0.0
    %2128 = vmatpush2.msra.mxu0 0.0
    %2129 = vmatprep.subr.mxu0 0.0
    %2130 = vmatpush2.msra.mxu0 0.0
    %2131 = vmatprep.subr.mxu0 0.0
    %2132 = vmatpush2.msra.mxu0 0.0
    %2133 = vmatprep.subr.mxu0 0.0
    %2134 = vmatpush2.msra.mxu0 0.0
    %2135 = vmatprep.subr.mxu0 0.0
    %2136 = vmatpush2.msra.mxu0 0.0
    %2137 = vmatprep.subr.mxu0 0.0
    %2138 = vmatpush2.msra.mxu0 0.0
    %2139 = vmatprep.subr.mxu0 0.0
    %2140 = vmatpush2.msra.mxu0 0.0
    %2141 = vmatprep.mubr.f32.mxu0 0.0
    %2142 = vmatmul.mubr.f32.gmra.mxu0 %v846
    %v2143 = vpop.f32.mrf.mxu0
    %v2144 = vadd.f32 %v674, %v2143
    %v2145 = vpop.f32.mrf.mxu0
    %2146 = vmatprep.mubr.f32.mxu0 0.0
    %2147 = vmatmul.mubr.f32.gmra.mxu0 %v849
    %v2148 = vpop.f32.mrf.mxu0
    %v2149 = vadd.f32 %v679, %v2148
    %v2150 = vpop.f32.mrf.mxu0
    %2151 = vdwg.mxu0
    %v2152 = vtanh.pop %v2144
    %v2153 = vtanh.pop %v2149
    %v2155 = vsel %vm851, %v2153, 0
    %2157 = vmatprep.subr.mxu0 0.0
    %2158 = vmatpush1.msra.mxu0 0.0
    %2159 = vmatprep.subr.mxu0 0.0
    %2160 = vmatpush1.msra.mxu0 0.0
    %2161 = vmatprep.subr.mxu0 0.0
    %2162 = vmatpush1.msra.mxu0 0.0
    %2163 = vmatprep.subr.mxu0 0.0
    %2164 = vmatpush1.msra.mxu0 0.0
    %2165 = vmatprep.subr.mxu0 0.0
    %2166 = vmatpush1.msra.mxu0 0.0
    %2167 = vmatprep.subr.mxu0 0.0
    %2168 = vmatpush1.msra.mxu0 0.0
    %2169 = vmatprep.subr.mxu0 0.0
    %2170 = vmatpush1.msra.mxu0 0.0
    %2171 = vmatprep.subr.mxu0 0.0
    %2172 = vmatpush1.msra.mxu0 0.0
    %2173 = vmatprep.subr.mxu0 0.0
    %2174 = vmatpush1.msra.mxu0 0.0
    %2175 = vmatprep.subr.mxu0 0.0
    %2176 = vmatpush1.msra.mxu0 0.0
    %2177 = vmatprep.subr.mxu0 0.0
    %2178 = vmatpush1.msra.mxu0 0.0
    %2179 = vmatprep.subr.mxu0 0.0
    %2180 = vmatpush1.msra.mxu0 0.0
    %2181 = vmatprep.subr.mxu0 0.0
    %2182 = vmatpush1.msra.mxu0 0.0
    %2183 = vmatprep.subr.mxu0 0.0
    %2184 = vmatpush1.msra.mxu0 0.0
    %2185 = vmatprep.subr.mxu0 0.0
    %2186 = vmatpush1.msra.mxu0 %v2155
    %2187 = vmatprep.subr.mxu0 0.0
    %2188 = vmatpush1.msra.mxu0 %v2152
    %2189 = vmatprep.subr.mxu0 0.0
    %2190 = vmatpush2.msra.mxu0 0.0
    %2191 = vmatprep.subr.mxu0 0.0
    %2192 = vmatpush2.msra.mxu0 0.0
    %2193 = vmatprep.subr.mxu0 0.0
    %2194 = vmatpush2.msra.mxu0 0.0
    %2195 = vmatprep.subr.mxu0 0.0
    %2196 = vmatpush2.msra.mxu0 0.0
    %2197 = vmatprep.subr.mxu0 0.0
    %2198 = vmatpush2.msra.mxu0 0.0
    %2199 = vmatprep.subr.mxu0 0.0
    %2200 = vmatpush2.msra.mxu0 0.0
    %2201 = vmatprep.subr.mxu0 0.0
    %2202 = vmatpush2.msra.mxu0 0.0
    %2203 = vmatprep.subr.mxu0 0.0
    %2204 = vmatpush2.msra.mxu0 0.0
    %2205 = vmatprep.subr.mxu0 0.0
    %2206 = vmatpush2.msra.mxu0 0.0
    %2207 = vmatprep.subr.mxu0 0.0
    %2208 = vmatpush2.msra.mxu0 0.0
    %2209 = vmatprep.subr.mxu0 0.0
    %2210 = vmatpush2.msra.mxu0 0.0
    %2211 = vmatprep.subr.mxu0 0.0
    %2212 = vmatpush2.msra.mxu0 0.0
    %2213 = vmatprep.subr.mxu0 0.0
    %2214 = vmatpush2.msra.mxu0 0.0
    %2215 = vmatprep.subr.mxu0 0.0
    %2216 = vmatpush2.msra.mxu0 0.0
    %2217 = vmatprep.subr.mxu0 0.0
    %2218 = vmatpush2.msra.mxu0 0.0
    %2219 = vmatprep.subr.mxu0 0.0
    %2220 = vmatpush2.msra.mxu0 0.0
    %2221 = vmatprep.mubr.f32.mxu0 0.0
    %2222 = vmatmul.mubr.f32.gmra.mxu0 %v933
    %v2223 = vpop.f32.mrf.mxu0
    %v2224 = vadd.f32 %v174, %v2223
    %v2225 = vpop.f32.mrf.mxu0
    %2226 = vmatprep.mubr.f32.mxu0 0.0
    %2227 = vmatmul.mubr.f32.gmra.mxu0 %v936
    %v2228 = vpop.f32.mrf.mxu0
    %v2229 = vadd.f32 %v179, %v2228
    %v2230 = vpop.f32.mrf.mxu0
    %2231 = vdwg.mxu0
    %v2232 = vtanh.pop %v2224
    %v2233 = vtanh.pop %v2229
    %v2235 = vsel %vm851, %v2233, 0
    %2237 = vmatprep.subr.mxu0 0.0
    %2238 = vmatpush1.msra.mxu0 0.0
    %2239 = vmatprep.subr.mxu0 0.0
    %2240 = vmatpush1.msra.mxu0 0.0
    %2241 = vmatprep.subr.mxu0 0.0
    %2242 = vmatpush1.msra.mxu0 0.0
    %2243 = vmatprep.subr.mxu0 0.0
    %2244 = vmatpush1.msra.mxu0 0.0
    %2245 = vmatprep.subr.mxu0 0.0
    %2246 = vmatpush1.msra.mxu0 0.0
    %2247 = vmatprep.subr.mxu0 0.0
    %2248 = vmatpush1.msra.mxu0 0.0
    %2249 = vmatprep.subr.mxu0 0.0
    %2250 = vmatpush1.msra.mxu0 0.0
    %2251 = vmatprep.subr.mxu0 0.0
    %2252 = vmatpush1.msra.mxu0 0.0
    %2253 = vmatprep.subr.mxu0 0.0
    %2254 = vmatpush1.msra.mxu0 0.0
    %2255 = vmatprep.subr.mxu0 0.0
    %2256 = vmatpush1.msra.mxu0 0.0
    %2257 = vmatprep.subr.mxu0 0.0
    %2258 = vmatpush1.msra.mxu0 0.0
    %2259 = vmatprep.subr.mxu0 0.0
    %2260 = vmatpush1.msra.mxu0 0.0
    %2261 = vmatprep.subr.mxu0 0.0
    %2262 = vmatpush1.msra.mxu0 0.0
    %2263 = vmatprep.subr.mxu0 0.0
    %2264 = vmatpush1.msra.mxu0 0.0
    %2265 = vmatprep.subr.mxu0 0.0
    %2266 = vmatpush1.msra.mxu0 %v2235
    %2267 = vmatprep.subr.mxu0 0.0
    %2268 = vmatpush1.msra.mxu0 %v2232
    %2269 = vmatprep.subr.mxu0 0.0
    %2270 = vmatpush2.msra.mxu0 0.0
    %2271 = vmatprep.subr.mxu0 0.0
    %2272 = vmatpush2.msra.mxu0 0.0
    %2273 = vmatprep.subr.mxu0 0.0
    %2274 = vmatpush2.msra.mxu0 0.0
    %2275 = vmatprep.subr.mxu0 0.0
    %2276 = vmatpush2.msra.mxu0 0.0
    %2277 = vmatprep.subr.mxu0 0.0
    %2278 = vmatpush2.msra.mxu0 0.0
    %2279 = vmatprep.subr.mxu0 0.0
    %2280 = vmatpush2.msra.mxu0 0.0
    %2281 = vmatprep.subr.mxu0 0.0
    %2282 = vmatpush2.msra.mxu0 0.0
    %2283 = vmatprep.subr.mxu0 0.0
    %2284 = vmatpush2.msra.mxu0 0.0
    %2285 = vmatprep.subr.mxu0 0.0
    %2286 = vmatpush2.msra.mxu0 0.0
    %2287 = vmatprep.subr.mxu0 0.0
    %2288 = vmatpush2.msra.mxu0 0.0
    %2289 = vmatprep.subr.mxu0 0.0
    %2290 = vmatpush2.msra.mxu0 0.0
    %2291 = vmatprep.subr.mxu0 0.0
    %2292 = vmatpush2.msra.mxu0 0.0
    %2293 = vmatprep.subr.mxu0 0.0
    %2294 = vmatpush2.msra.mxu0 0.0
    %2295 = vmatprep.subr.mxu0 0.0
    %2296 = vmatpush2.msra.mxu0 0.0
    %2297 = vmatprep.subr.mxu0 0.0
    %2298 = vmatpush2.msra.mxu0 0.0
    %2299 = vmatprep.subr.mxu0 0.0
    %2300 = vmatpush2.msra.mxu0 0.0
    %2301 = vmatprep.mubr.f32.mxu0 0.0
    %2302 = vmatmul.mubr.f32.gmra.mxu0 %v1019
    %v2303 = vpop.f32.mrf.mxu0
    %v2304 = vadd.f32 0.0, %v2303
    %v2305 = vpop.f32.mrf.mxu0
    %2306 = vmatprep.mubr.f32.mxu0 0.0
    %2307 = vmatmul.mubr.f32.gmra.mxu0 %v1022
    %v2308 = vpop.f32.mrf.mxu0
    %v2309 = vadd.f32 0.0, %v2308
    %v2310 = vpop.f32.mrf.mxu0
    %2311 = vdwg.mxu0
    %v2312 = vadd.f32 %v2072, %v2304
    %v2313 = vadd.f32 %v2073, %v2309
    %v2314 = vadd.f32 %v2312, %v186
    %v2315 = vadd.f32 %v2313, %v191
    %v2317 = vsel %vm851, %v2315, 0
    %2319 = vmatprep.subr.mxu0 0.0
    %2320 = vmatpush1.msra.mxu0 0.0
    %2321 = vmatprep.subr.mxu0 0.0
    %2322 = vmatpush1.msra.mxu0 0.0
    %2323 = vmatprep.subr.mxu0 0.0
    %2324 = vmatpush1.msra.mxu0 0.0
    %2325 = vmatprep.subr.mxu0 0.0
    %2326 = vmatpush1.msra.mxu0 0.0
    %2327 = vmatprep.subr.mxu0 0.0
    %2328 = vmatpush1.msra.mxu0 0.0
    %2329 = vmatprep.subr.mxu0 0.0
    %2330 = vmatpush1.msra.mxu0 0.0
    %2331 = vmatprep.subr.mxu0 0.0
    %2332 = vmatpush1.msra.mxu0 0.0
    %2333 = vmatprep.subr.mxu0 0.0
    %2334 = vmatpush1.msra.mxu0 0.0
    %2335 = vmatprep.subr.mxu0 0.0
    %2336 = vmatpush1.msra.mxu0 0.0
    %2337 = vmatprep.subr.mxu0 0.0
    %2338 = vmatpush1.msra.mxu0 0.0
    %2339 = vmatprep.subr.mxu0 0.0
    %2340 = vmatpush1.msra.mxu0 0.0
    %2341 = vmatprep.subr.mxu0 0.0
    %2342 = vmatpush1.msra.mxu0 0.0
    %2343 = vmatprep.subr.mxu0 0.0
    %2344 = vmatpush1.msra.mxu0 0.0
    %2345 = vmatprep.subr.mxu0 0.0
    %2346 = vmatpush1.msra.mxu0 0.0
    %2347 = vmatprep.subr.mxu0 0.0
    %2348 = vmatpush1.msra.mxu0 %v2317
    %2349 = vmatprep.subr.mxu0 0.0
    %2350 = vmatpush1.msra.mxu0 %v2314
    %2351 = vmatprep.subr.mxu0 0.0
    %2352 = vmatpush2.msra.mxu0 0.0
    %2353 = vmatprep.subr.mxu0 0.0
    %2354 = vmatpush2.msra.mxu0 0.0
    %2355 = vmatprep.subr.mxu0 0.0
    %2356 = vmatpush2.msra.mxu0 0.0
    %2357 = vmatprep.subr.mxu0 0.0
    %2358 = vmatpush2.msra.mxu0 0.0
    %2359 = vmatprep.subr.mxu0 0.0
    %2360 = vmatpush2.msra.mxu0 0.0
    %2361 = vmatprep.subr.mxu0 0.0
    %2362 = vmatpush2.msra.mxu0 0.0
    %2363 = vmatprep.subr.mxu0 0.0
    %2364 = vmatpush2.msra.mxu0 0.0
    %2365 = vmatprep.subr.mxu0 0.0
    %2366 = vmatpush2.msra.mxu0 0.0
    %2367 = vmatprep.subr.mxu0 0.0
    %2368 = vmatpush2.msra.mxu0 0.0
    %2369 = vmatprep.subr.mxu0 0.0
    %2370 = vmatpush2.msra.mxu0 0.0
    %2371 = vmatprep.subr.mxu0 0.0
    %2372 = vmatpush2.msra.mxu0 0.0
    %2373 = vmatprep.subr.mxu0 0.0
    %2374 = vmatpush2.msra.mxu0 0.0
    %2375 = vmatprep.subr.mxu0 0.0
    %2376 = vmatpush2.msra.mxu0 0.0
    %2377 = vmatprep.subr.mxu0 0.0
    %2378 = vmatpush2.msra.mxu0 0.0
    %2379 = vmatprep.subr.mxu0 0.0
    %2380 = vmatpush2.msra.mxu0 0.0
    %2381 = vmatprep.subr.mxu0 0.0
    %2382 = vmatpush2.msra.mxu0 0.0
    %2383 = vmatprep.mubr.f32.mxu0 0.0
    %2384 = vmatmul.mubr.f32.gmra.mxu0 %v846
    %v2385 = vpop.f32.mrf.mxu0
    %v2386 = vadd.f32 %v754, %v2385
    %v2387 = vpop.f32.mrf.mxu0
    %2388 = vmatprep.mubr.f32.mxu0 0.0
    %2389 = vmatmul.mubr.f32.gmra.mxu0 %v849
    %v2390 = vpop.f32.mrf.mxu0
    %v2391 = vadd.f32 %v759, %v2390
    %v2392 = vpop.f32.mrf.mxu0
    %2393 = vdwg.mxu0
    %v2394 = vtanh.pop %v2386
    %v2395 = vtanh.pop %v2391
    %v2397 = vsel %vm851, %v2395, 0
    %2399 = vmatprep.subr.mxu0 0.0
    %2400 = vmatpush1.msra.mxu0 0.0
    %2401 = vmatprep.subr.mxu0 0.0
    %2402 = vmatpush1.msra.mxu0 0.0
    %2403 = vmatprep.subr.mxu0 0.0
    %2404 = vmatpush1.msra.mxu0 0.0
    %2405 = vmatprep.subr.mxu0 0.0
    %2406 = vmatpush1.msra.mxu0 0.0
    %2407 = vmatprep.subr.mxu0 0.0
    %2408 = vmatpush1.msra.mxu0 0.0
    %2409 = vmatprep.subr.mxu0 0.0
    %2410 = vmatpush1.msra.mxu0 0.0
    %2411 = vmatprep.subr.mxu0 0.0
    %2412 = vmatpush1.msra.mxu0 0.0
    %2413 = vmatprep.subr.mxu0 0.0
    %2414 = vmatpush1.msra.mxu0 0.0
    %2415 = vmatprep.subr.mxu0 0.0
    %2416 = vmatpush1.msra.mxu0 0.0
    %2417 = vmatprep.subr.mxu0 0.0
    %2418 = vmatpush1.msra.mxu0 0.0
    %2419 = vmatprep.subr.mxu0 0.0
    %2420 = vmatpush1.msra.mxu0 0.0
    %2421 = vmatprep.subr.mxu0 0.0
    %2422 = vmatpush1.msra.mxu0 0.0
    %2423 = vmatprep.subr.mxu0 0.0
    %2424 = vmatpush1.msra.mxu0 0.0
    %2425 = vmatprep.subr.mxu0 0.0
    %2426 = vmatpush1.msra.mxu0 0.0
    %2427 = vmatprep.subr.mxu0 0.0
    %2428 = vmatpush1.msra.mxu0 %v2397
    %2429 = vmatprep.subr.mxu0 0.0
    %2430 = vmatpush1.msra.mxu0 %v2394
    %2431 = vmatprep.subr.mxu0 0.0
    %2432 = vmatpush2.msra.mxu0 0.0
    %2433 = vmatprep.subr.mxu0 0.0
    %2434 = vmatpush2.msra.mxu0 0.0
    %2435 = vmatprep.subr.mxu0 0.0
    %2436 = vmatpush2.msra.mxu0 0.0
    %2437 = vmatprep.subr.mxu0 0.0
    %2438 = vmatpush2.msra.mxu0 0.0
    %2439 = vmatprep.subr.mxu0 0.0
    %2440 = vmatpush2.msra.mxu0 0.0
    %2441 = vmatprep.subr.mxu0 0.0
    %2442 = vmatpush2.msra.mxu0 0.0
    %2443 = vmatprep.subr.mxu0 0.0
    %2444 = vmatpush2.msra.mxu0 0.0
    %2445 = vmatprep.subr.mxu0 0.0
    %2446 = vmatpush2.msra.mxu0 0.0
    %2447 = vmatprep.subr.mxu0 0.0
    %2448 = vmatpush2.msra.mxu0 0.0
    %2449 = vmatprep.subr.mxu0 0.0
    %2450 = vmatpush2.msra.mxu0 0.0
    %2451 = vmatprep.subr.mxu0 0.0
    %2452 = vmatpush2.msra.mxu0 0.0
    %2453 = vmatprep.subr.mxu0 0.0
    %2454 = vmatpush2.msra.mxu0 0.0
    %2455 = vmatprep.subr.mxu0 0.0
    %2456 = vmatpush2.msra.mxu0 0.0
    %2457 = vmatprep.subr.mxu0 0.0
    %2458 = vmatpush2.msra.mxu0 0.0
    %2459 = vmatprep.subr.mxu0 0.0
    %2460 = vmatpush2.msra.mxu0 0.0
    %2461 = vmatprep.subr.mxu0 0.0
    %2462 = vmatpush2.msra.mxu0 0.0
    %2463 = vmatprep.mubr.f32.mxu0 0.0
    %2464 = vmatmul.mubr.f32.gmra.mxu0 %v933
    %v2465 = vpop.f32.mrf.mxu0
    %v2466 = vadd.f32 %v174, %v2465
    %v2467 = vpop.f32.mrf.mxu0
    %2468 = vmatprep.mubr.f32.mxu0 0.0
    %2469 = vmatmul.mubr.f32.gmra.mxu0 %v936
    %v2470 = vpop.f32.mrf.mxu0
    %v2471 = vadd.f32 %v179, %v2470
    %v2472 = vpop.f32.mrf.mxu0
    %2473 = vdwg.mxu0
    %v2474 = vtanh.pop %v2466
    %v2475 = vtanh.pop %v2471
    %v2477 = vsel %vm851, %v2475, 0
    %2479 = vmatprep.subr.mxu0 0.0
    %2480 = vmatpush1.msra.mxu0 0.0
    %2481 = vmatprep.subr.mxu0 0.0
    %2482 = vmatpush1.msra.mxu0 0.0
    %2483 = vmatprep.subr.mxu0 0.0
    %2484 = vmatpush1.msra.mxu0 0.0
    %2485 = vmatprep.subr.mxu0 0.0
    %2486 = vmatpush1.msra.mxu0 0.0
    %2487 = vmatprep.subr.mxu0 0.0
    %2488 = vmatpush1.msra.mxu0 0.0
    %2489 = vmatprep.subr.mxu0 0.0
    %2490 = vmatpush1.msra.mxu0 0.0
    %2491 = vmatprep.subr.mxu0 0.0
    %2492 = vmatpush1.msra.mxu0 0.0
    %2493 = vmatprep.subr.mxu0 0.0
    %2494 = vmatpush1.msra.mxu0 0.0
    %2495 = vmatprep.subr.mxu0 0.0
    %2496 = vmatpush1.msra.mxu0 0.0
    %2497 = vmatprep.subr.mxu0 0.0
    %2498 = vmatpush1.msra.mxu0 0.0
    %2499 = vmatprep.subr.mxu0 0.0
    %2500 = vmatpush1.msra.mxu0 0.0
    %2501 = vmatprep.subr.mxu0 0.0
    %2502 = vmatpush1.msra.mxu0 0.0
    %2503 = vmatprep.subr.mxu0 0.0
    %2504 = vmatpush1.msra.mxu0 0.0
    %2505 = vmatprep.subr.mxu0 0.0
    %2506 = vmatpush1.msra.mxu0 0.0
    %2507 = vmatprep.subr.mxu0 0.0
    %2508 = vmatpush1.msra.mxu0 %v2477
    %2509 = vmatprep.subr.mxu0 0.0
    %2510 = vmatpush1.msra.mxu0 %v2474
    %2511 = vmatprep.subr.mxu0 0.0
    %2512 = vmatpush2.msra.mxu0 0.0
    %2513 = vmatprep.subr.mxu0 0.0
    %2514 = vmatpush2.msra.mxu0 0.0
    %2515 = vmatprep.subr.mxu0 0.0
    %2516 = vmatpush2.msra.mxu0 0.0
    %2517 = vmatprep.subr.mxu0 0.0
    %2518 = vmatpush2.msra.mxu0 0.0
    %2519 = vmatprep.subr.mxu0 0.0
    %2520 = vmatpush2.msra.mxu0 0.0
    %2521 = vmatprep.subr.mxu0 0.0
    %2522 = vmatpush2.msra.mxu0 0.0
    %2523 = vmatprep.subr.mxu0 0.0
    %2524 = vmatpush2.msra.mxu0 0.0
    %2525 = vmatprep.subr.mxu0 0.0
    %2526 = vmatpush2.msra.mxu0 0.0
    %2527 = vmatprep.subr.mxu0 0.0
    %2528 = vmatpush2.msra.mxu0 0.0
    %2529 = vmatprep.subr.mxu0 0.0
    %2530 = vmatpush2.msra.mxu0 0.0
    %2531 = vmatprep.subr.mxu0 0.0
    %2532 = vmatpush2.msra.mxu0 0.0
    %2533 = vmatprep.subr.mxu0 0.0
    %2534 = vmatpush2.msra.mxu0 0.0
    %2535 = vmatprep.subr.mxu0 0.0
    %2536 = vmatpush2.msra.mxu0 0.0
    %2537 = vmatprep.subr.mxu0 0.0
    %2538 = vmatpush2.msra.mxu0 0.0
    %2539 = vmatprep.subr.mxu0 0.0
    %2540 = vmatpush2.msra.mxu0 0.0
    %2541 = vmatprep.subr.mxu0 0.0
    %2542 = vmatpush2.msra.mxu0 0.0
    %2543 = vmatprep.mubr.f32.mxu0 0.0
    %2544 = vmatmul.mubr.f32.gmra.mxu0 %v1019
    %v2545 = vpop.f32.mrf.mxu0
    %v2546 = vadd.f32 0.0, %v2545
    %v2547 = vpop.f32.mrf.mxu0
    %2548 = vmatprep.mubr.f32.mxu0 0.0
    %2549 = vmatmul.mubr.f32.gmra.mxu0 %v1022
    %v2550 = vpop.f32.mrf.mxu0
    %v2551 = vadd.f32 0.0, %v2550
    %v2552 = vpop.f32.mrf.mxu0
    %2553 = vdwg.mxu0
    %v2554 = vadd.f32 %v2314, %v2546
    %v2555 = vadd.f32 %v2315, %v2551
    %v2556 = vadd.f32 %v2554, %v186
    %v2557 = vadd.f32 %v2555, %v191
    %v2559 = vsel %vm851, %v2557, 0
    %2561 = vmatprep.subr.mxu0 0.0
    %2562 = vmatpush1.msra.mxu0 0.0
    %2563 = vmatprep.subr.mxu0 0.0
    %2564 = vmatpush1.msra.mxu0 0.0
    %2565 = vmatprep.subr.mxu0 0.0
    %2566 = vmatpush1.msra.mxu0 0.0
    %2567 = vmatprep.subr.mxu0 0.0
    %2568 = vmatpush1.msra.mxu0 0.0
    %2569 = vmatprep.subr.mxu0 0.0
    %2570 = vmatpush1.msra.mxu0 0.0
    %2571 = vmatprep.subr.mxu0 0.0
    %2572 = vmatpush1.msra.mxu0 0.0
    %2573 = vmatprep.subr.mxu0 0.0
    %2574 = vmatpush1.msra.mxu0 0.0
    %2575 = vmatprep.subr.mxu0 0.0
    %2576 = vmatpush1.msra.mxu0 0.0
    %2577 = vmatprep.subr.mxu0 0.0
    %2578 = vmatpush1.msra.mxu0 0.0
    %2579 = vmatprep.subr.mxu0 0.0
    %2580 = vmatpush1.msra.mxu0 0.0
    %2581 = vmatprep.subr.mxu0 0.0
    %2582 = vmatpush1.msra.mxu0 0.0
    %2583 = vmatprep.subr.mxu0 0.0
    %2584 = vmatpush1.msra.mxu0 0.0
    %2585 = vmatprep.subr.mxu0 0.0
    %2586 = vmatpush1.msra.mxu0 0.0
    %2587 = vmatprep.subr.mxu0 0.0
    %2588 = vmatpush1.msra.mxu0 0.0
    %2589 = vmatprep.subr.mxu0 0.0
    %2590 = vmatpush1.msra.mxu0 %v2559
    %2591 = vmatprep.subr.mxu0 0.0
    %2592 = vmatpush1.msra.mxu0 %v2556
    %2593 = vmatprep.subr.mxu0 0.0
    %2594 = vmatpush2.msra.mxu0 0.0
    %2595 = vmatprep.subr.mxu0 0.0
    %2596 = vmatpush2.msra.mxu0 0.0
    %2597 = vmatprep.subr.mxu0 0.0
    %2598 = vmatpush2.msra.mxu0 0.0
    %2599 = vmatprep.subr.mxu0 0.0
    %2600 = vmatpush2.msra.mxu0 0.0
    %2601 = vmatprep.subr.mxu0 0.0
    %2602 = vmatpush2.msra.mxu0 0.0
    %2603 = vmatprep.subr.mxu0 0.0
    %2604 = vmatpush2.msra.mxu0 0.0
    %2605 = vmatprep.subr.mxu0 0.0
    %2606 = vmatpush2.msra.mxu0 0.0
    %2607 = vmatprep.subr.mxu0 0.0
    %2608 = vmatpush2.msra.mxu0 0.0
    %2609 = vmatprep.subr.mxu0 0.0
    %2610 = vmatpush2.msra.mxu0 0.0
    %2611 = vmatprep.subr.mxu0 0.0
    %2612 = vmatpush2.msra.mxu0 0.0
    %2613 = vmatprep.subr.mxu0 0.0
    %2614 = vmatpush2.msra.mxu0 0.0
    %2615 = vmatprep.subr.mxu0 0.0
    %2616 = vmatpush2.msra.mxu0 0.0
    %2617 = vmatprep.subr.mxu0 0.0
    %2618 = vmatpush2.msra.mxu0 0.0
    %2619 = vmatprep.subr.mxu0 0.0
    %2620 = vmatpush2.msra.mxu0 0.0
    %2621 = vmatprep.subr.mxu0 0.0
    %2622 = vmatpush2.msra.mxu0 0.0
    %2623 = vmatprep.subr.mxu0 0.0
    %2624 = vmatpush2.msra.mxu0 0.0
    %2625 = vmatprep.mubr.f32.mxu0 0.0
    %2626 = vmatmul.mubr.f32.gmra.mxu0 %v846
    %v2627 = vpop.f32.mrf.mxu0
    %v2628 = vadd.f32 %v834, %v2627
    %v2629 = vpop.f32.mrf.mxu0
    %2630 = vmatprep.mubr.f32.mxu0 0.0
    %2631 = vmatmul.mubr.f32.gmra.mxu0 %v849
    %v2632 = vpop.f32.mrf.mxu0
    %v2633 = vadd.f32 %v839, %v2632
    %v2634 = vpop.f32.mrf.mxu0
    %2635 = vdwg.mxu0
    %v2636 = vtanh.pop %v2628
    %v2637 = vtanh.pop %v2633
    %v2639 = vsel %vm851, %v2637, 0
    %2641 = vmatprep.subr.mxu0 0.0
    %2642 = vmatpush1.msra.mxu0 0.0
    %2643 = vmatprep.subr.mxu0 0.0
    %2644 = vmatpush1.msra.mxu0 0.0
    %2645 = vmatprep.subr.mxu0 0.0
    %2646 = vmatpush1.msra.mxu0 0.0
    %2647 = vmatprep.subr.mxu0 0.0
    %2648 = vmatpush1.msra.mxu0 0.0
    %2649 = vmatprep.subr.mxu0 0.0
    %2650 = vmatpush1.msra.mxu0 0.0
    %2651 = vmatprep.subr.mxu0 0.0
    %2652 = vmatpush1.msra.mxu0 0.0
    %2653 = vmatprep.subr.mxu0 0.0
    %2654 = vmatpush1.msra.mxu0 0.0
    %2655 = vmatprep.subr.mxu0 0.0
    %2656 = vmatpush1.msra.mxu0 0.0
    %2657 = vmatprep.subr.mxu0 0.0
    %2658 = vmatpush1.msra.mxu0 0.0
    %2659 = vmatprep.subr.mxu0 0.0
    %2660 = vmatpush1.msra.mxu0 0.0
    %2661 = vmatprep.subr.mxu0 0.0
    %2662 = vmatpush1.msra.mxu0 0.0
    %2663 = vmatprep.subr.mxu0 0.0
    %2664 = vmatpush1.msra.mxu0 0.0
    %2665 = vmatprep.subr.mxu0 0.0
    %2666 = vmatpush1.msra.mxu0 0.0
    %2667 = vmatprep.subr.mxu0 0.0
    %2668 = vmatpush1.msra.mxu0 0.0
    %2669 = vmatprep.subr.mxu0 0.0
    %2670 = vmatpush1.msra.mxu0 %v2639
    %2671 = vmatprep.subr.mxu0 0.0
    %2672 = vmatpush1.msra.mxu0 %v2636
    %2673 = vmatprep.subr.mxu0 0.0
    %2674 = vmatpush2.msra.mxu0 0.0
    %2675 = vmatprep.subr.mxu0 0.0
    %2676 = vmatpush2.msra.mxu0 0.0
    %2677 = vmatprep.subr.mxu0 0.0
    %2678 = vmatpush2.msra.mxu0 0.0
    %2679 = vmatprep.subr.mxu0 0.0
    %2680 = vmatpush2.msra.mxu0 0.0
    %2681 = vmatprep.subr.mxu0 0.0
    %2682 = vmatpush2.msra.mxu0 0.0
    %2683 = vmatprep.subr.mxu0 0.0
    %2684 = vmatpush2.msra.mxu0 0.0
    %2685 = vmatprep.subr.mxu0 0.0
    %2686 = vmatpush2.msra.mxu0 0.0
    %2687 = vmatprep.subr.mxu0 0.0
    %2688 = vmatpush2.msra.mxu0 0.0
    %2689 = vmatprep.subr.mxu0 0.0
    %2690 = vmatpush2.msra.mxu0 0.0
    %2691 = vmatprep.subr.mxu0 0.0
    %2692 = vmatpush2.msra.mxu0 0.0
    %2693 = vmatprep.subr.mxu0 0.0
    %2694 = vmatpush2.msra.mxu0 0.0
    %2695 = vmatprep.subr.mxu0 0.0
    %2696 = vmatpush2.msra.mxu0 0.0
    %2697 = vmatprep.subr.mxu0 0.0
    %2698 = vmatpush2.msra.mxu0 0.0
    %2699 = vmatprep.subr.mxu0 0.0
    %2700 = vmatpush2.msra.mxu0 0.0
    %2701 = vmatprep.subr.mxu0 0.0
    %2702 = vmatpush2.msra.mxu0 0.0
    %2703 = vmatprep.subr.mxu0 0.0
    %2704 = vmatpush2.msra.mxu0 0.0
    %2705 = vmatprep.mubr.f32.mxu0 0.0
    %2706 = vmatmul.mubr.f32.gmra.mxu0 %v933
    %v2707 = vpop.f32.mrf.mxu0
    %v2708 = vadd.f32 %v174, %v2707
    %v2709 = vpop.f32.mrf.mxu0
    %2710 = vmatprep.mubr.f32.mxu0 0.0
    %2711 = vmatmul.mubr.f32.gmra.mxu0 %v936
    %v2712 = vpop.f32.mrf.mxu0
    %v2713 = vadd.f32 %v179, %v2712
    %v2714 = vpop.f32.mrf.mxu0
    %2715 = vdwg.mxu0
    %v2716 = vtanh.pop %v2708
    %v2717 = vtanh.pop %v2713
    %v2719 = vsel %vm851, %v2717, 0
    %2721 = vmatprep.subr.mxu0 0.0
    %2722 = vmatpush1.msra.mxu0 0.0
    %2723 = vmatprep.subr.mxu0 0.0
    %2724 = vmatpush1.msra.mxu0 0.0
    %2725 = vmatprep.subr.mxu0 0.0
    %2726 = vmatpush1.msra.mxu0 0.0
    %2727 = vmatprep.subr.mxu0 0.0
    %2728 = vmatpush1.msra.mxu0 0.0
    %2729 = vmatprep.subr.mxu0 0.0
    %2730 = vmatpush1.msra.mxu0 0.0
    %2731 = vmatprep.subr.mxu0 0.0
    %2732 = vmatpush1.msra.mxu0 0.0
    %2733 = vmatprep.subr.mxu0 0.0
    %2734 = vmatpush1.msra.mxu0 0.0
    %2735 = vmatprep.subr.mxu0 0.0
    %2736 = vmatpush1.msra.mxu0 0.0
    %2737 = vmatprep.subr.mxu0 0.0
    %2738 = vmatpush1.msra.mxu0 0.0
    %2739 = vmatprep.subr.mxu0 0.0
    %2740 = vmatpush1.msra.mxu0 0.0
    %2741 = vmatprep.subr.mxu0 0.0
    %2742 = vmatpush1.msra.mxu0 0.0
    %2743 = vmatprep.subr.mxu0 0.0
    %2744 = vmatpush1.msra.mxu0 0.0
    %2745 = vmatprep.subr.mxu0 0.0
    %2746 = vmatpush1.msra.mxu0 0.0
    %2747 = vmatprep.subr.mxu0 0.0
    %2748 = vmatpush1.msra.mxu0 0.0
    %2749 = vmatprep.subr.mxu0 0.0
    %2750 = vmatpush1.msra.mxu0 %v2719
    %2751 = vmatprep.subr.mxu0 0.0
    %2752 = vmatpush1.msra.mxu0 %v2716
    %2753 = vmatprep.subr.mxu0 0.0
    %2754 = vmatpush2.msra.mxu0 0.0
    %2755 = vmatprep.subr.mxu0 0.0
    %2756 = vmatpush2.msra.mxu0 0.0
    %2757 = vmatprep.subr.mxu0 0.0
    %2758 = vmatpush2.msra.mxu0 0.0
    %2759 = vmatprep.subr.mxu0 0.0
    %2760 = vmatpush2.msra.mxu0 0.0
    %2761 = vmatprep.subr.mxu0 0.0
    %2762 = vmatpush2.msra.mxu0 0.0
    %2763 = vmatprep.subr.mxu0 0.0
    %2764 = vmatpush2.msra.mxu0 0.0
    %2765 = vmatprep.subr.mxu0 0.0
    %2766 = vmatpush2.msra.mxu0 0.0
    %2767 = vmatprep.subr.mxu0 0.0
    %2768 = vmatpush2.msra.mxu0 0.0
    %2769 = vmatprep.subr.mxu0 0.0
    %2770 = vmatpush2.msra.mxu0 0.0
    %2771 = vmatprep.subr.mxu0 0.0
    %2772 = vmatpush2.msra.mxu0 0.0
    %2773 = vmatprep.subr.mxu0 0.0
    %2774 = vmatpush2.msra.mxu0 0.0
    %2775 = vmatprep.subr.mxu0 0.0
    %2776 = vmatpush2.msra.mxu0 0.0
    %2777 = vmatprep.subr.mxu0 0.0
    %2778 = vmatpush2.msra.mxu0 0.0
    %2779 = vmatprep.subr.mxu0 0.0
    %2780 = vmatpush2.msra.mxu0 0.0
    %2781 = vmatprep.subr.mxu0 0.0
    %2782 = vmatpush2.msra.mxu0 0.0
    %2783 = vmatprep.subr.mxu0 0.0
    %2784 = vmatpush2.msra.mxu0 0.0
    %2785 = vmatprep.mubr.f32.mxu0 0.0
    %2786 = vmatmul.mubr.f32.gmra.mxu0 %v1019
    %v2787 = vpop.f32.mrf.mxu0
    %v2788 = vadd.f32 0.0, %v2787
    %v2789 = vpop.f32.mrf.mxu0
    %2790 = vmatprep.mubr.f32.mxu0 0.0
    %2791 = vmatmul.mubr.f32.gmra.mxu0 %v1022
    %v2792 = vpop.f32.mrf.mxu0
    %v2793 = vadd.f32 0.0, %v2792
    %v2794 = vpop.f32.mrf.mxu0
    %2795 = vdwg.mxu0
    %v2796 = vadd.f32 %v2556, %v2788
    %v2797 = vadd.f32 %v2557, %v2793
    %v2798 = vadd.f32 %v2796, %v186
    %v2799 = vadd.f32 %v2797, %v191
    %vm2800 = vcmask 15360
    %2801 = vst.msk [vmem:[#allocation2] sm:$0xff] %vm2800, %v2798
    %vm2802 = vcmask 9216
    %2803 = vst.msk [vmem:[#allocation2 + $0x8] sm:$0x3] %vm2802, %v2799
    // Predicated region
    $region62: #{tpu_custom_call.1} parent=1 // pred_check
      %p2804 = pneg %p50
    $region63: #{tpu_custom_call.1} parent=1 // pred_check_branch
      %2806 = sbr.rel (%p2804) target = $region65
    $region64: #{tpu_custom_call.1} parent=1 // pred_region
      %v2807 = vld [vmem:[%s10] sm:$0xff]
      %v2808 = vld [vmem:[%s10 + $0x8] sm:$0x3]
      %v2809 = vld [vmem:[%s11] sm:$0xff]
      %v2810 = vld [vmem:[%s11 + $0x8] sm:$0x3]
      %2812 = vset.pattern.permute.xlu0 0
      %2813 = vperm.xlu0 %2812, %v2809
      %v2814 = vpop.permute.xlu0 %2813
      %2817 = vset.pattern.permute.xlu0 0
      %2818 = vperm.xlu0 %2817, %v2810
      %v2819 = vpop.permute.xlu0 %2818
      %v2822 = vsel %vm844, %v2807, 0
      %v2825 = vsel %vm844, %v2808, 0
      %v2828 = vsel %vm851, %v2799, 0
      %2830 = vmatprep.subr.mxu0 0.0
      %2831 = vmatpush1.msra.mxu0 0.0
      %2832 = vmatprep.subr.mxu0 0.0
      %2833 = vmatpush1.msra.mxu0 0.0
      %2834 = vmatprep.subr.mxu0 0.0
      %2835 = vmatpush1.msra.mxu0 0.0
      %2836 = vmatprep.subr.mxu0 0.0
      %2837 = vmatpush1.msra.mxu0 0.0
      %2838 = vmatprep.subr.mxu0 0.0
      %2839 = vmatpush1.msra.mxu0 0.0
      %2840 = vmatprep.subr.mxu0 0.0
      %2841 = vmatpush1.msra.mxu0 0.0
      %2842 = vmatprep.subr.mxu0 0.0
      %2843 = vmatpush1.msra.mxu0 0.0
      %2844 = vmatprep.subr.mxu0 0.0
      %2845 = vmatpush1.msra.mxu0 0.0
      %2846 = vmatprep.subr.mxu0 0.0
      %2847 = vmatpush1.msra.mxu0 0.0
      %2848 = vmatprep.subr.mxu0 0.0
      %2849 = vmatpush1.msra.mxu0 0.0
      %2850 = vmatprep.subr.mxu0 0.0
      %2851 = vmatpush1.msra.mxu0 0.0
      %2852 = vmatprep.subr.mxu0 0.0
      %2853 = vmatpush1.msra.mxu0 0.0
      %2854 = vmatprep.subr.mxu0 0.0
      %2855 = vmatpush1.msra.mxu0 0.0
      %2856 = vmatprep.subr.mxu0 0.0
      %2857 = vmatpush1.msra.mxu0 0.0
      %2858 = vmatprep.subr.mxu0 0.0
      %2859 = vmatpush1.msra.mxu0 %v2828
      %2860 = vmatprep.subr.mxu0 0.0
      %2861 = vmatpush1.msra.mxu0 %v2798
      %2862 = vmatprep.subr.mxu0 0.0
      %2863 = vmatpush2.msra.mxu0 0.0
      %2864 = vmatprep.subr.mxu0 0.0
      %2865 = vmatpush2.msra.mxu0 0.0
      %2866 = vmatprep.subr.mxu0 0.0
      %2867 = vmatpush2.msra.mxu0 0.0
      %2868 = vmatprep.subr.mxu0 0.0
      %2869 = vmatpush2.msra.mxu0 0.0
      %2870 = vmatprep.subr.mxu0 0.0
      %2871 = vmatpush2.msra.mxu0 0.0
      %2872 = vmatprep.subr.mxu0 0.0
      %2873 = vmatpush2.msra.mxu0 0.0
      %2874 = vmatprep.subr.mxu0 0.0
      %2875 = vmatpush2.msra.mxu0 0.0
      %2876 = vmatprep.subr.mxu0 0.0
      %2877 = vmatpush2.msra.mxu0 0.0
      %2878 = vmatprep.subr.mxu0 0.0
      %2879 = vmatpush2.msra.mxu0 0.0
      %2880 = vmatprep.subr.mxu0 0.0
      %2881 = vmatpush2.msra.mxu0 0.0
      %2882 = vmatprep.subr.mxu0 0.0
      %2883 = vmatpush2.msra.mxu0 0.0
      %2884 = vmatprep.subr.mxu0 0.0
      %2885 = vmatpush2.msra.mxu0 0.0
      %2886 = vmatprep.subr.mxu0 0.0
      %2887 = vmatpush2.msra.mxu0 0.0
      %2888 = vmatprep.subr.mxu0 0.0
      %2889 = vmatpush2.msra.mxu0 0.0
      %2890 = vmatprep.subr.mxu0 0.0
      %2891 = vmatpush2.msra.mxu0 0.0
      %2892 = vmatprep.subr.mxu0 0.0
      %2893 = vmatpush2.msra.mxu0 0.0
      %2894 = vmatprep.mubr.f32.mxu0 0.0
      %2895 = vmatmul.mubr.f32.gmra.mxu0 %v2822
      %v2896 = vpop.f32.mrf.mxu0
      %v2897 = vadd.f32 %v2814, %v2896
      %v2898 = vpop.f32.mrf.mxu0
      %2899 = vmatprep.mubr.f32.mxu0 0.0
      %2900 = vmatmul.mubr.f32.gmra.mxu0 %v2825
      %v2901 = vpop.f32.mrf.mxu0
      %v2902 = vadd.f32 %v2819, %v2901
      %v2903 = vpop.f32.mrf.mxu0
      %2904 = vdwg.mxu0
      %v2905 = vtanh.pop %v2897
      %v2906 = vtanh.pop %v2902
      %v2907 = vld [vmem:[%s12] sm:$0x1]
      %v2908 = vld [vmem:[#allocation4] sm:$0x1]
      %2910 = vset.pattern.permute.xlu0 0
      %2911 = vperm.xlu0 %2910, %v2908
      %v2912 = vpop.permute.xlu0 %2911
      %v2914 = vlaneseq
      %v2915 = vshrl.u32 %v2914, 7
      %v2916 = vsub.s32 0, %v2915
      %v2917 = vrot.slane %v2912, %v2916
      %v2919 = vsel %vm844, %v2907, 0
      %v2922 = vsel %vm851, %v2906, 0
      %2924 = vmatprep.subr.mxu0 0.0
      %2925 = vmatpush1.msra.mxu0 0.0
      %2926 = vmatprep.subr.mxu0 0.0
      %2927 = vmatpush1.msra.mxu0 0.0
      %2928 = vmatprep.subr.mxu0 0.0
      %2929 = vmatpush1.msra.mxu0 0.0
      %2930 = vmatprep.subr.mxu0 0.0
      %2931 = vmatpush1.msra.mxu0 0.0
      %2932 = vmatprep.subr.mxu0 0.0
      %2933 = vmatpush1.msra.mxu0 0.0
      %2934 = vmatprep.subr.mxu0 0.0
      %2935 = vmatpush1.msra.mxu0 0.0
      %2936 = vmatprep.subr.mxu0 0.0
      %2937 = vmatpush1.msra.mxu0 0.0
      %2938 = vmatprep.subr.mxu0 0.0
      %2939 = vmatpush1.msra.mxu0 0.0
      %2940 = vmatprep.subr.mxu0 0.0
      %2941 = vmatpush1.msra.mxu0 0.0
      %2942 = vmatprep.subr.mxu0 0.0
      %2943 = vmatpush1.msra.mxu0 0.0
      %2944 = vmatprep.subr.mxu0 0.0
      %2945 = vmatpush1.msra.mxu0 0.0
      %2946 = vmatprep.subr.mxu0 0.0
      %2947 = vmatpush1.msra.mxu0 0.0
      %2948 = vmatprep.subr.mxu0 0.0
      %2949 = vmatpush1.msra.mxu0 0.0
      %2950 = vmatprep.subr.mxu0 0.0
      %2951 = vmatpush1.msra.mxu0 0.0
      %2952 = vmatprep.subr.mxu0 0.0
      %2953 = vmatpush1.msra.mxu0 %v2922
      %2954 = vmatprep.subr.mxu0 0.0
      %2955 = vmatpush1.msra.mxu0 %v2905
      %2956 = vmatprep.subr.mxu0 0.0
      %2957 = vmatpush2.msra.mxu0 0.0
      %2958 = vmatprep.subr.mxu0 0.0
      %2959 = vmatpush2.msra.mxu0 0.0
      %2960 = vmatprep.subr.mxu0 0.0
      %2961 = vmatpush2.msra.mxu0 0.0
      %2962 = vmatprep.subr.mxu0 0.0
      %2963 = vmatpush2.msra.mxu0 0.0
      %2964 = vmatprep.subr.mxu0 0.0
      %2965 = vmatpush2.msra.mxu0 0.0
      %2966 = vmatprep.subr.mxu0 0.0
      %2967 = vmatpush2.msra.mxu0 0.0
      %2968 = vmatprep.subr.mxu0 0.0
      %2969 = vmatpush2.msra.mxu0 0.0
      %2970 = vmatprep.subr.mxu0 0.0
      %2971 = vmatpush2.msra.mxu0 0.0
      %2972 = vmatprep.subr.mxu0 0.0
      %2973 = vmatpush2.msra.mxu0 0.0
      %2974 = vmatprep.subr.mxu0 0.0
      %2975 = vmatpush2.msra.mxu0 0.0
      %2976 = vmatprep.subr.mxu0 0.0
      %2977 = vmatpush2.msra.mxu0 0.0
      %2978 = vmatprep.subr.mxu0 0.0
      %2979 = vmatpush2.msra.mxu0 0.0
      %2980 = vmatprep.subr.mxu0 0.0
      %2981 = vmatpush2.msra.mxu0 0.0
      %2982 = vmatprep.subr.mxu0 0.0
      %2983 = vmatpush2.msra.mxu0 0.0
      %2984 = vmatprep.subr.mxu0 0.0
      %2985 = vmatpush2.msra.mxu0 0.0
      %2986 = vmatprep.subr.mxu0 0.0
      %2987 = vmatpush2.msra.mxu0 0.0
      %2988 = vmatprep.mubr.f32.mxu0 0.0
      %2989 = vmatmul.mubr.f32.gmra.mxu0 %v2919
      %v2990 = vpop.f32.mrf.mxu0
      %v2991 = vadd.f32 %v2917, %v2990
      %v2992 = vpop.f32.mrf.mxu0
      %2993 = vdwg.mxu0
      %vm2994 = vcmask 8192
      %2995 = vst.msk [vmem:[#allocation5] sm:$0x1] %vm2994, %v2991
    $region65: #{tpu_custom_call.1} parent=1 // pred_fallthru
      _
    // Predicated region
    $region66: #{tpu_custom_call.1} parent=1 // pred_check
      _
    $region67: #{tpu_custom_call.1} parent=1 // pred_check_branch
      %2997 = sbr.rel (0) target = $region69
    $region68: #{tpu_custom_call.1} parent=1 // pred_region
      %s2999 = ssub.s32 16, 16
      %3000 = vsyncadd [#allocation6], %s2999
      %s3002 = sshll.u32 [#allocation5], 4
      %s3003 = int_to_ptr.vmem [resolvable:$true] %s3002
      %3005 = dma.vmem_to_hbm [thread:$0]  %s3003, 16, %s14, [#allocation6]
    $region69: #{tpu_custom_call.1} parent=1 // pred_fallthru
      _
    // Predicated region
    $region70: #{tpu_custom_call.1} parent=1 // pred_check
      _
    $region71: #{tpu_custom_call.1} parent=1 // pred_check_branch
      %3007 = sbr.rel (0) target = $region73
    $region72: #{tpu_custom_call.1} parent=1 // pred_region
      %3008 = dma.done [#allocation6], 16
    $region73: #{tpu_custom_call.1} parent=1 // pred_fallthru
      _
    %3009 = vsyncpa [#allocation6], 1

</llo_original>
